<compile_context>
chip_gen: v7x
topology: tpu7x:2x2x1
jax: 0.10.0
libtpu: 0.0.40
codegen_flags: <defaults>
</compile_context>

<pallas_src>
import functools

import jax
import jax.numpy as jnp
from jax.experimental import pallas as pl
from jax.experimental.pallas import tpu as pltpu


# ---------------------------------------------------------------------------
# In-kernel building blocks
# ---------------------------------------------------------------------------
def _conv3x3_relu(xpad, w_ref, b_ref, mask_l, mask_r, *, H, W, top):
    """3x3 same-padding conv + bias + ReLU on a row-flattened, zero-padded image.

    xpad:    (top + H*W + W + 1, Cin) f32 value; the image lives at rows
             [top, top + H*W) in row-major (h*W + w) order, zeros elsewhere.
    w_ref:   (9, Cin, Cout) bf16 ref, tap order (kh, kw) row-major.
    b_ref:   (1, Cout) f32 ref.
    mask_l/mask_r: (H*W, 1) f32; zero where a horizontal tap would wrap to the
             previous/next image row in the flattened layout.
    Returns (H*W, Cout) f32.
    """
    HW = H * W
    acc = None
    for dw in (-1, 0, 1):
        part = None
        for dh in (-1, 0, 1):
            start = top + dh * W + dw           # static python int
            xs = xpad[start:start + HW, :].astype(w_ref.dtype)
            tap = 3 * (dh + 1) + (dw + 1)       # == 3*kh + kw
            d = jnp.dot(xs, w_ref[tap], preferred_element_type=jnp.float32)
            part = d if part is None else part + d
        if dw == -1:
            part = part * mask_l
        elif dw == 1:
            part = part * mask_r
        acc = part if acc is None else acc + part
    return jnp.maximum(acc + b_ref[...], 0.0)


def _exit_head(feat_f32, wh_ref, bh_ref, *, nc1):
    """Fused DETR exit head: one (C x NPAD) matmul; sigmoid on box columns.

    Column layout of wh/bh: [0, nc1) = class logits, [nc1, nc1+4) = boxes,
    remaining columns are zero padding (lane-dense output, sliced off outside).
    """
    head = jnp.dot(feat_f32.astype(wh_ref.dtype), wh_ref[...],
                   preferred_element_type=jnp.float32) + bh_ref[...]
    col = jax.lax.broadcasted_iota(jnp.int32, head.shape, 1)
    return jnp.where(col < nc1, head, jax.nn.sigmoid(head))


# ---------------------------------------------------------------------------
# Fused branch kernels (one grid step per image)
# ---------------------------------------------------------------------------
def _stage0_exit0_kernel(x_ref, ml_ref, mr_ref, w0_ref, b0_ref,
                         wh_ref, bh_ref, out_ref, *, H, W, top, nc1):
    xpad0 = x_ref[0].astype(jnp.float32)
    y0 = _conv3x3_relu(xpad0, w0_ref, b0_ref, ml_ref[...], mr_ref[...],
                       H=H, W=W, top=top)
    out_ref[0] = _exit_head(y0, wh_ref, bh_ref, nc1=nc1).astype(out_ref.dtype)


def _stage01_exit1_kernel(x_ref, ml_ref, mr_ref, w0_ref, b0_ref, w1_ref, b1_ref,
                          wh_ref, bh_ref, out_ref, pad_ref, *, H, W, top, nc1):
    HW = H * W
    ml = ml_ref[...]
    mr = mr_ref[...]

    # Zero the re-pad scratch once; only its padding rows must stay zero and
    # they are never overwritten across grid steps (scratch persists).
    @pl.when(pl.program_id(0) == 0)
    def _():
        pad_ref[...] = jnp.zeros_like(pad_ref)

    xpad0 = x_ref[0].astype(jnp.float32)
    y0 = _conv3x3_relu(xpad0, w0_ref, b0_ref, ml, mr, H=H, W=W, top=top)

    # Re-pad stage0's output entirely inside VMEM (no HBM round trip).
    pad_ref[top:top + HW, :] = y0
    y1 = _conv3x3_relu(pad_ref[...], w1_ref, b1_ref, ml, mr, H=H, W=W, top=top)

    out_ref[0] = _exit_head(y1, wh_ref, bh_ref, nc1=nc1).astype(out_ref.dtype)


# ---------------------------------------------------------------------------
# Host wrapper: one pallas_call per exit branch
# ---------------------------------------------------------------------------
@functools.partial(jax.jit, static_argnums=(2,))
def _fused_branch(x, p, num_stages):
    """x: [B, H, W, Cin] f32 (NHWC).  Returns {'pred_logits','pred_boxes'}."""
    B, H, W, Cin = x.shape
    HW = H * W
    TOP = ((W + 1 + 7) // 8) * 8        # sublane-aligned top padding (>= W+1)
    BOT = W + 1
    HWP = TOP + HW + BOT

    # Row-flatten the image and zero-pad rows so every 3x3 tap becomes a simple
    # row-shifted window in VMEM.  Activations cross HBM as bf16.
    x_pad = jnp.pad(x.reshape(B, HW, Cin),
                    ((0, 0), (TOP, BOT), (0, 0))).astype(jnp.bfloat16)

    # Masks killing horizontal taps that would wrap across flattened rows.
    col = jnp.arange(HW, dtype=jnp.int32) % W
    mask_l = (col != 0).astype(jnp.float32).reshape(HW, 1)        # dw = -1 valid
    mask_r = (col != (W - 1)).astype(jnp.float32).reshape(HW, 1)  # dw = +1 valid

    w0 = p["stage0_w"].reshape(9, Cin, -1).astype(jnp.bfloat16)
    Cmid = w0.shape[-1]
    b0 = p["stage0_b"].reshape(1, Cmid).astype(jnp.float32)

    if num_stages == 2:
        w1 = p["stage1_w"].reshape(9, Cmid, Cmid).astype(jnp.bfloat16)
        b1 = p["stage1_b"].reshape(1, Cmid).astype(jnp.float32)
        wc, bc, wb, bb = p["exit1_wc"], p["exit1_bc"], p["exit1_wb"], p["exit1_bb"]
    else:
        wc, bc, wb, bb = p["exit0_wc"], p["exit0_bc"], p["exit0_wb"], p["exit0_bb"]

    NC1 = wc.shape[-1]
    NTOT = NC1 + 4
    NPAD = max(128, ((NTOT + 127) // 128) * 128)   # lane-dense output width

    wh = jnp.concatenate([wc, wb], axis=-1)                         # (Cmid, NTOT)
    wh = jnp.pad(wh, ((0, 0), (0, NPAD - NTOT))).astype(jnp.bfloat16)
    bh = jnp.concatenate([bc, bb], axis=-1)
    bh = jnp.pad(bh, (0, NPAD - NTOT)).reshape(1, NPAD).astype(jnp.float32)

    bcast2 = lambda i: (0, 0)
    bcast3 = lambda i: (0, 0, 0)

    common_specs = [
        pl.BlockSpec((1, HWP, Cin), lambda i: (i, 0, 0)),   # x_pad
        pl.BlockSpec((HW, 1), bcast2),                      # mask_l
        pl.BlockSpec((HW, 1), bcast2),                      # mask_r
        pl.BlockSpec((9, Cin, Cmid), bcast3),               # w0
        pl.BlockSpec((1, Cmid), bcast2),                    # b0
    ]
    head_specs = [
        pl.BlockSpec((Cmid, NPAD), bcast2),                 # wh (class+box fused)
        pl.BlockSpec((1, NPAD), bcast2),                    # bh
    ]

    flops = 2 * B * HW * (9 * Cin * Cmid + Cmid * NPAD)
    if num_stages == 2:
        flops += 2 * B * HW * 9 * Cmid * Cmid
        kernel = functools.partial(_stage01_exit1_kernel, H=H, W=W, top=TOP, nc1=NC1)
        in_specs = common_specs + [
            pl.BlockSpec((9, Cmid, Cmid), bcast3),          # w1
            pl.BlockSpec((1, Cmid), bcast2),                # b1
        ] + head_specs
        args = (x_pad, mask_l, mask_r, w0, b0, w1, b1, wh, bh)
        scratch = [pltpu.VMEM((HWP, Cmid), jnp.float32)]    # in-VMEM re-padded y0
    else:
        kernel = functools.partial(_stage0_exit0_kernel, H=H, W=W, top=TOP, nc1=NC1)
        in_specs = common_specs + head_specs
        args = (x_pad, mask_l, mask_r, w0, b0, wh, bh)
        scratch = []

    bytes_accessed = sum(a.size * a.dtype.itemsize for a in args) + B * HW * NPAD * 4

    out = pl.pallas_call(
        kernel,
        out_shape=jax.ShapeDtypeStruct((B, HW, NPAD), jnp.float32),
        grid_spec=pltpu.PrefetchScalarGridSpec(
            num_scalar_prefetch=0,
            grid=(B,),
            in_specs=in_specs,
            out_specs=pl.BlockSpec((1, HW, NPAD), lambda i: (i, 0, 0)),
            scratch_shapes=scratch,
        ),
        compiler_params=pltpu.CompilerParams(dimension_semantics=("parallel",)),
        cost_estimate=pl.CostEstimate(flops=flops,
                                      transcendentals=B * HW * NPAD,
                                      bytes_accessed=int(bytes_accessed)),
    )(*args)

    return {"pred_logits": out[:, :, :NC1], "pred_boxes": out[:, :, NC1:NTOT]}


# ---------------------------------------------------------------------------
# FixEE_DETR: early-exit wrapper (stage00->exit00, or stage00->stage01->exit01)
# ---------------------------------------------------------------------------
class FixEEDETRPallas:
    def __init__(self, params):
        self.p = params

    def __call__(self, samples, exit_choice=1):
        if exit_choice == 0:
            return 0, _fused_branch(samples, self.p, 1)
        # exit_out0 is computed-then-discarded in the PyTorch forward; we skip
        # that dead work and return the identical (1, exit_out1) result.
        return 1, _fused_branch(samples, self.p, 2)

    # TODO(synk): exit_now() confidence gating (softmax/max/filtered-mean +
    # host-side branch) is a data-dependent host decision, not part of forward().


def init_params(key, cin, cmid, num_classes_plus_1):
    ks = jax.random.split(key, 8)
    s = 0.1
    return {
        "stage0_w": s * jax.random.normal(ks[0], (3, 3, cin, cmid), jnp.float32),
        "stage0_b": s * jax.random.normal(ks[1], (cmid,), jnp.float32),
        "stage1_w": s * jax.random.normal(ks[2], (3, 3, cmid, cmid), jnp.float32),
        "stage1_b": s * jax.random.normal(ks[3], (cmid,), jnp.float32),
        "exit0_wc": s * jax.random.normal(ks[4], (cmid, num_classes_plus_1), jnp.float32),
        "exit0_bc": jnp.zeros((num_classes_plus_1,), jnp.float32),
        "exit0_wb": s * jax.random.normal(ks[5], (cmid, 4), jnp.float32),
        "exit0_bb": jnp.zeros((4,), jnp.float32),
        "exit1_wc": s * jax.random.normal(ks[6], (cmid, num_classes_plus_1), jnp.float32),
        "exit1_bc": jnp.zeros((num_classes_plus_1,), jnp.float32),
        "exit1_wb": s * jax.random.normal(ks[7], (cmid, 4), jnp.float32),
        "exit1_bb": jnp.zeros((4,), jnp.float32),
    }


# ---------------------------------------------------------------------------
# Pure-JAX f32 reference (for numerical sanity checking)
# ---------------------------------------------------------------------------
def _reference_forward(x, p, num_stages):
    def conv(z, w, b):
        y = jax.lax.conv_general_dilated(
            z, w, window_strides=(1, 1), padding="SAME",
            dimension_numbers=("NHWC", "HWIO", "NHWC"))
        return jax.nn.relu(y + b)

    y = conv(x, p["stage0_w"], p["stage0_b"])
    if num_stages == 2:
        y = conv(y, p["stage1_w"], p["stage1_b"])
        wc, bc, wb, bb = p["exit1_wc"], p["exit1_bc"], p["exit1_wb"], p["exit1_bb"]
    else:
        wc, bc, wb, bb = p["exit0_wc"], p["exit0_bc"], p["exit0_wb"], p["exit0_bb"]
    B, H, W, C = y.shape
    feat = y.reshape(B, H * W, C)
    return {"pred_logits": feat @ wc + bc,
            "pred_boxes": jax.nn.sigmoid(feat @ wb + bb)}


if __name__ == "__main__":
    B, H, W, CIN = 2, 16, 16, 8
    CMID = 16
    NC1 = 12  # num_classes + 1 (incl. no-object class)

    key = jax.random.PRNGKey(0)
    k_x, k_p = jax.random.split(key)
    x = jax.random.normal(k_x, (B, H, W, CIN), jnp.float32)  # layout: NHWC
    params = init_params(k_p, CIN, CMID, NC1)

    model = FixEEDETRPallas(params)

    # exit_choice = 1 (default: stage0 -> stage1 -> exit1, single fused kernel)
    which, out1 = model(x, exit_choice=1)
    jax.block_until_ready(out1["pred_logits"])
    jax.block_until_ready(out1["pred_boxes"])
    assert which == 1
    assert out1["pred_logits"].shape == (B, H * W, NC1)
    assert out1["pred_boxes"].shape == (B, H * W, 4)

    # exit_choice = 0 (early exit: stage0 -> exit0, single fused kernel)
    which0, out0 = model(x, exit_choice=0)
    jax.block_until_ready(out0["pred_logits"])
    jax.block_until_ready(out0["pred_boxes"])
    assert which0 == 0
    assert out0["pred_logits"].shape == (B, H * W, NC1)

    # boxes are sigmoid-squashed
    assert bool(jnp.all(out1["pred_boxes"] >= 0.0) & jnp.all(out1["pred_boxes"] <= 1.0))

    # numerical check vs f32 reference (kernel uses bf16 MXU inputs)
    ref1 = _reference_forward(x, params, 2)
    assert jnp.allclose(out1["pred_logits"], ref1["pred_logits"], atol=5e-2, rtol=5e-2)
    assert jnp.allclose(out1["pred_boxes"], ref1["pred_boxes"], atol=5e-2, rtol=5e-2)
    ref0 = _reference_forward(x, params, 1)
    assert jnp.allclose(out0["pred_logits"], ref0["pred_logits"], atol=5e-2, rtol=5e-2)
    assert jnp.allclose(out0["pred_boxes"], ref0["pred_boxes"], atol=5e-2, rtol=5e-2)

    print("KERNEL_OK")
</pallas_src>

<mosaic_0001>
module attributes {stable_mosaic.version = 11 : i64} {
  func.func @_stage01_exit1_kernel(%arg0: i32, %arg1: memref<1x297x8xbf16, #tpu.memory_space<vmem>>, %arg2: memref<256x1xf32, #tpu.memory_space<vmem>>, %arg3: memref<256x1xf32, #tpu.memory_space<vmem>>, %arg4: memref<9x8x16xbf16, #tpu.memory_space<vmem>>, %arg5: memref<1x16xf32, #tpu.memory_space<vmem>>, %arg6: memref<9x16x16xbf16, #tpu.memory_space<vmem>>, %arg7: memref<1x16xf32, #tpu.memory_space<vmem>>, %arg8: memref<16x128xbf16, #tpu.memory_space<vmem>>, %arg9: memref<1x128xf32, #tpu.memory_space<vmem>>, %arg10: memref<1x256x128xf32, #tpu.memory_space<vmem>>, %arg11: memref<297x16xf32, #tpu.memory_space<vmem>>) attributes {dimension_semantics = [#tpu.dimension_semantics<parallel>], iteration_bounds = array<i64: 2>, scalar_prefetch = 0 : i64, scratch_operands = 1 : i64, tpu.core_type = #tpu.core_type<tc>, window_params = [{transform_indices = @transform_0, window_bounds = array<i64: 1, 297, 8>}, {pipeline_mode = #tpu.pipeline_mode<synchronous>, transform_indices = @transform_1, window_bounds = array<i64: 256, 1>}, {pipeline_mode = #tpu.pipeline_mode<synchronous>, transform_indices = @transform_2, window_bounds = array<i64: 256, 1>}, {pipeline_mode = #tpu.pipeline_mode<synchronous>, transform_indices = @transform_3, window_bounds = array<i64: 9, 8, 16>}, {pipeline_mode = #tpu.pipeline_mode<synchronous>, transform_indices = @transform_4, window_bounds = array<i64: 1, 16>}, {pipeline_mode = #tpu.pipeline_mode<synchronous>, transform_indices = @transform_5, window_bounds = array<i64: 9, 16, 16>}, {pipeline_mode = #tpu.pipeline_mode<synchronous>, transform_indices = @transform_6, window_bounds = array<i64: 1, 16>}, {pipeline_mode = #tpu.pipeline_mode<synchronous>, transform_indices = @transform_7, window_bounds = array<i64: 16, 128>}, {pipeline_mode = #tpu.pipeline_mode<synchronous>, transform_indices = @transform_8, window_bounds = array<i64: 1, 128>}, {transform_indices = @transform_9, window_bounds = array<i64: 1, 256, 128>}]} {
    %c0 = arith.constant 0 : index
    %c0_0 = arith.constant 0 : index
    %0 = vector.load %arg2[%c0, %c0_0] : memref<256x1xf32, #tpu.memory_space<vmem>>, vector<256x1xf32>
    %c0_1 = arith.constant 0 : index
    %c0_2 = arith.constant 0 : index
    %1 = vector.load %arg3[%c0_1, %c0_2] : memref<256x1xf32, #tpu.memory_space<vmem>>, vector<256x1xf32>
    %c0_i32 = arith.constant 0 : i32
    %2 = arith.cmpi eq, %arg0, %c0_i32 : i32
    %3 = arith.extui %2 : i1 to i32
    %c0_i32_3 = arith.constant 0 : i32
    %4 = arith.cmpi ne, %3, %c0_i32_3 : i32
    scf.if %4 {
      %cst_88 = arith.constant 0.000000e+00 : f32
      %152 = vector.broadcast %cst_88 : f32 to vector<297x16xf32>
      %c0_89 = arith.constant 0 : index
      %c0_90 = arith.constant 0 : index
      %153 = vector.load %arg11[%c0_89, %c0_90] : memref<297x16xf32, #tpu.memory_space<vmem>>, vector<297x16xf32>
      tpu.vector_store %arg11[%c0_89, %c0_90], %152 {strides = array<i32>} : memref<297x16xf32, #tpu.memory_space<vmem>>, vector<297x16xf32>,
    } else {
    }
    %c0_4 = arith.constant 0 : index
    %c0_5 = arith.constant 0 : index
    %c0_6 = arith.constant 0 : index
    %5 = vector.load %arg1[%c0_4, %c0_5, %c0_6] : memref<1x297x8xbf16, #tpu.memory_space<vmem>>, vector<1x297x8xbf16>
    %6 = vector.shape_cast %5 : vector<1x297x8xbf16> to vector<297x8xbf16>
    %7 = arith.extf %6 : vector<297x8xbf16> to vector<297x8xf32>
    %8 = vector.extract_strided_slice %7 {offsets = [7, 0], sizes = [256, 8], strides = [1, 1]} : vector<297x8xf32> to vector<256x8xf32>
    %9 = arith.truncf %8 : vector<256x8xf32> to vector<256x8xbf16>
    %c0_7 = arith.constant 0 : index
    %c0_8 = arith.constant 0 : index
    %c0_9 = arith.constant 0 : index
    %10 = vector.load %arg4[%c0_7, %c0_8, %c0_9] : memref<9x8x16xbf16, #tpu.memory_space<vmem>>, vector<1x8x16xbf16>
    %11 = vector.shape_cast %10 : vector<1x8x16xbf16> to vector<8x16xbf16>
    %cst = arith.constant dense<0.000000e+00> : vector<256x16xf32>
    %12 = tpu.matmul %9, %11, %cst {dimension_numbers = #tpu.dot_dimension_numbers<[1], [0], [0], [1], [0, 0, 1, 1], [], []>} : vector<256x8xbf16>, vector<8x16xbf16>, vector<256x16xf32> -> vector<256x16xf32>
    %13 = vector.extract_strided_slice %7 {offsets = [23, 0], sizes = [256, 8], strides = [1, 1]} : vector<297x8xf32> to vector<256x8xf32>
    %14 = arith.truncf %13 : vector<256x8xf32> to vector<256x8xbf16>
    %c3 = arith.constant 3 : index
    %c0_10 = arith.constant 0 : index
    %c0_11 = arith.constant 0 : index
    %15 = vector.load %arg4[%c3, %c0_10, %c0_11] : memref<9x8x16xbf16, #tpu.memory_space<vmem>>, vector<1x8x16xbf16>
    %16 = vector.shape_cast %15 : vector<1x8x16xbf16> to vector<8x16xbf16>
    %cst_12 = arith.constant dense<0.000000e+00> : vector<256x16xf32>
    %17 = tpu.matmul %14, %16, %cst_12 {dimension_numbers = #tpu.dot_dimension_numbers<[1], [0], [0], [1], [0, 0, 1, 1], [], []>} : vector<256x8xbf16>, vector<8x16xbf16>, vector<256x16xf32> -> vector<256x16xf32>
    %18 = arith.addf %12, %17 : vector<256x16xf32>
    %19 = vector.extract_strided_slice %7 {offsets = [39, 0], sizes = [256, 8], strides = [1, 1]} : vector<297x8xf32> to vector<256x8xf32>
    %20 = arith.truncf %19 : vector<256x8xf32> to vector<256x8xbf16>
    %c6 = arith.constant 6 : index
    %c0_13 = arith.constant 0 : index
    %c0_14 = arith.constant 0 : index
    %21 = vector.load %arg4[%c6, %c0_13, %c0_14] : memref<9x8x16xbf16, #tpu.memory_space<vmem>>, vector<1x8x16xbf16>
    %22 = vector.shape_cast %21 : vector<1x8x16xbf16> to vector<8x16xbf16>
    %cst_15 = arith.constant dense<0.000000e+00> : vector<256x16xf32>
    %23 = tpu.matmul %20, %22, %cst_15 {dimension_numbers = #tpu.dot_dimension_numbers<[1], [0], [0], [1], [0, 0, 1, 1], [], []>} : vector<256x8xbf16>, vector<8x16xbf16>, vector<256x16xf32> -> vector<256x16xf32>
    %24 = arith.addf %18, %23 : vector<256x16xf32>
    %25 = vector.broadcast %0 : vector<256x1xf32> to vector<256x16xf32>
    %26 = arith.mulf %24, %25 : vector<256x16xf32>
    %27 = vector.extract_strided_slice %7 {offsets = [8, 0], sizes = [256, 8], strides = [1, 1]} : vector<297x8xf32> to vector<256x8xf32>
    %28 = arith.truncf %27 : vector<256x8xf32> to vector<256x8xbf16>
    %c1 = arith.constant 1 : index
    %c0_16 = arith.constant 0 : index
    %c0_17 = arith.constant 0 : index
    %29 = vector.load %arg4[%c1, %c0_16, %c0_17] : memref<9x8x16xbf16, #tpu.memory_space<vmem>>, vector<1x8x16xbf16>
    %30 = vector.shape_cast %29 : vector<1x8x16xbf16> to vector<8x16xbf16>
    %cst_18 = arith.constant dense<0.000000e+00> : vector<256x16xf32>
    %31 = tpu.matmul %28, %30, %cst_18 {dimension_numbers = #tpu.dot_dimension_numbers<[1], [0], [0], [1], [0, 0, 1, 1], [], []>} : vector<256x8xbf16>, vector<8x16xbf16>, vector<256x16xf32> -> vector<256x16xf32>
    %32 = vector.extract_strided_slice %7 {offsets = [24, 0], sizes = [256, 8], strides = [1, 1]} : vector<297x8xf32> to vector<256x8xf32>
    %33 = arith.truncf %32 : vector<256x8xf32> to vector<256x8xbf16>
    %c4 = arith.constant 4 : index
    %c0_19 = arith.constant 0 : index
    %c0_20 = arith.constant 0 : index
    %34 = vector.load %arg4[%c4, %c0_19, %c0_20] : memref<9x8x16xbf16, #tpu.memory_space<vmem>>, vector<1x8x16xbf16>
    %35 = vector.shape_cast %34 : vector<1x8x16xbf16> to vector<8x16xbf16>
    %cst_21 = arith.constant dense<0.000000e+00> : vector<256x16xf32>
    %36 = tpu.matmul %33, %35, %cst_21 {dimension_numbers = #tpu.dot_dimension_numbers<[1], [0], [0], [1], [0, 0, 1, 1], [], []>} : vector<256x8xbf16>, vector<8x16xbf16>, vector<256x16xf32> -> vector<256x16xf32>
    %37 = arith.addf %31, %36 : vector<256x16xf32>
    %38 = vector.extract_strided_slice %7 {offsets = [40, 0], sizes = [256, 8], strides = [1, 1]} : vector<297x8xf32> to vector<256x8xf32>
    %39 = arith.truncf %38 : vector<256x8xf32> to vector<256x8xbf16>
    %c7 = arith.constant 7 : index
    %c0_22 = arith.constant 0 : index
    %c0_23 = arith.constant 0 : index
    %40 = vector.load %arg4[%c7, %c0_22, %c0_23] : memref<9x8x16xbf16, #tpu.memory_space<vmem>>, vector<1x8x16xbf16>
    %41 = vector.shape_cast %40 : vector<1x8x16xbf16> to vector<8x16xbf16>
    %cst_24 = arith.constant dense<0.000000e+00> : vector<256x16xf32>
    %42 = tpu.matmul %39, %41, %cst_24 {dimension_numbers = #tpu.dot_dimension_numbers<[1], [0], [0], [1], [0, 0, 1, 1], [], []>} : vector<256x8xbf16>, vector<8x16xbf16>, vector<256x16xf32> -> vector<256x16xf32>
    %43 = arith.addf %37, %42 : vector<256x16xf32>
    %44 = arith.addf %26, %43 : vector<256x16xf32>
    %45 = vector.extract_strided_slice %7 {offsets = [9, 0], sizes = [256, 8], strides = [1, 1]} : vector<297x8xf32> to vector<256x8xf32>
    %46 = arith.truncf %45 : vector<256x8xf32> to vector<256x8xbf16>
    %c2 = arith.constant 2 : index
    %c0_25 = arith.constant 0 : index
    %c0_26 = arith.constant 0 : index
    %47 = vector.load %arg4[%c2, %c0_25, %c0_26] : memref<9x8x16xbf16, #tpu.memory_space<vmem>>, vector<1x8x16xbf16>
    %48 = vector.shape_cast %47 : vector<1x8x16xbf16> to vector<8x16xbf16>
    %cst_27 = arith.constant dense<0.000000e+00> : vector<256x16xf32>
    %49 = tpu.matmul %46, %48, %cst_27 {dimension_numbers = #tpu.dot_dimension_numbers<[1], [0], [0], [1], [0, 0, 1, 1], [], []>} : vector<256x8xbf16>, vector<8x16xbf16>, vector<256x16xf32> -> vector<256x16xf32>
    %50 = vector.extract_strided_slice %7 {offsets = [25, 0], sizes = [256, 8], strides = [1, 1]} : vector<297x8xf32> to vector<256x8xf32>
    %51 = arith.truncf %50 : vector<256x8xf32> to vector<256x8xbf16>
    %c5 = arith.constant 5 : index
    %c0_28 = arith.constant 0 : index
    %c0_29 = arith.constant 0 : index
    %52 = vector.load %arg4[%c5, %c0_28, %c0_29] : memref<9x8x16xbf16, #tpu.memory_space<vmem>>, vector<1x8x16xbf16>
    %53 = vector.shape_cast %52 : vector<1x8x16xbf16> to vector<8x16xbf16>
    %cst_30 = arith.constant dense<0.000000e+00> : vector<256x16xf32>
    %54 = tpu.matmul %51, %53, %cst_30 {dimension_numbers = #tpu.dot_dimension_numbers<[1], [0], [0], [1], [0, 0, 1, 1], [], []>} : vector<256x8xbf16>, vector<8x16xbf16>, vector<256x16xf32> -> vector<256x16xf32>
    %55 = arith.addf %49, %54 : vector<256x16xf32>
    %56 = vector.extract_strided_slice %7 {offsets = [41, 0], sizes = [256, 8], strides = [1, 1]} : vector<297x8xf32> to vector<256x8xf32>
    %57 = arith.truncf %56 : vector<256x8xf32> to vector<256x8xbf16>
    %c8 = arith.constant 8 : index
    %c0_31 = arith.constant 0 : index
    %c0_32 = arith.constant 0 : index
    %58 = vector.load %arg4[%c8, %c0_31, %c0_32] : memref<9x8x16xbf16, #tpu.memory_space<vmem>>, vector<1x8x16xbf16>
    %59 = vector.shape_cast %58 : vector<1x8x16xbf16> to vector<8x16xbf16>
    %cst_33 = arith.constant dense<0.000000e+00> : vector<256x16xf32>
    %60 = tpu.matmul %57, %59, %cst_33 {dimension_numbers = #tpu.dot_dimension_numbers<[1], [0], [0], [1], [0, 0, 1, 1], [], []>} : vector<256x8xbf16>, vector<8x16xbf16>, vector<256x16xf32> -> vector<256x16xf32>
    %61 = arith.addf %55, %60 : vector<256x16xf32>
    %62 = vector.broadcast %1 : vector<256x1xf32> to vector<256x16xf32>
    %63 = arith.mulf %61, %62 : vector<256x16xf32>
    %64 = arith.addf %44, %63 : vector<256x16xf32>
    %c0_34 = arith.constant 0 : index
    %c0_35 = arith.constant 0 : index
    %65 = vector.load %arg5[%c0_34, %c0_35] : memref<1x16xf32, #tpu.memory_space<vmem>>, vector<1x16xf32>
    %66 = vector.broadcast %65 : vector<1x16xf32> to vector<256x16xf32>
    %67 = arith.addf %64, %66 : vector<256x16xf32>
    %cst_36 = arith.constant 0.000000e+00 : f32
    %68 = vector.broadcast %cst_36 : f32 to vector<256x16xf32>
    %69 = arith.maximumf %67, %68 : vector<256x16xf32>
    %c24 = arith.constant 24 : index
    %c0_37 = arith.constant 0 : index
    %70 = vector.load %arg11[%c24, %c0_37] : memref<297x16xf32, #tpu.memory_space<vmem>>, vector<256x16xf32>
    tpu.vector_store %arg11[%c24, %c0_37], %69 {strides = array<i32>} : memref<297x16xf32, #tpu.memory_space<vmem>>, vector<256x16xf32>,
    %c0_38 = arith.constant 0 : index
    %c0_39 = arith.constant 0 : index
    %71 = vector.load %arg11[%c0_38, %c0_39] : memref<297x16xf32, #tpu.memory_space<vmem>>, vector<297x16xf32>
    %72 = vector.extract_strided_slice %71 {offsets = [7, 0], sizes = [256, 16], strides = [1, 1]} : vector<297x16xf32> to vector<256x16xf32>
    %73 = arith.truncf %72 : vector<256x16xf32> to vector<256x16xbf16>
    %c0_40 = arith.constant 0 : index
    %c0_41 = arith.constant 0 : index
    %c0_42 = arith.constant 0 : index
    %74 = vector.load %arg6[%c0_40, %c0_41, %c0_42] : memref<9x16x16xbf16, #tpu.memory_space<vmem>>, vector<1x16x16xbf16>
    %75 = vector.shape_cast %74 : vector<1x16x16xbf16> to vector<16x16xbf16>
    %cst_43 = arith.constant dense<0.000000e+00> : vector<256x16xf32>
    %76 = tpu.matmul %73, %75, %cst_43 {dimension_numbers = #tpu.dot_dimension_numbers<[1], [0], [0], [1], [0, 0, 1, 1], [], []>} : vector<256x16xbf16>, vector<16x16xbf16>, vector<256x16xf32> -> vector<256x16xf32>
    %77 = vector.extract_strided_slice %71 {offsets = [23, 0], sizes = [256, 16], strides = [1, 1]} : vector<297x16xf32> to vector<256x16xf32>
    %78 = arith.truncf %77 : vector<256x16xf32> to vector<256x16xbf16>
    %c3_44 = arith.constant 3 : index
    %c0_45 = arith.constant 0 : index
    %c0_46 = arith.constant 0 : index
    %79 = vector.load %arg6[%c3_44, %c0_45, %c0_46] : memref<9x16x16xbf16, #tpu.memory_space<vmem>>, vector<1x16x16xbf16>
    %80 = vector.shape_cast %79 : vector<1x16x16xbf16> to vector<16x16xbf16>
    %cst_47 = arith.constant dense<0.000000e+00> : vector<256x16xf32>
    %81 = tpu.matmul %78, %80, %cst_47 {dimension_numbers = #tpu.dot_dimension_numbers<[1], [0], [0], [1], [0, 0, 1, 1], [], []>} : vector<256x16xbf16>, vector<16x16xbf16>, vector<256x16xf32> -> vector<256x16xf32>
    %82 = arith.addf %76, %81 : vector<256x16xf32>
    %83 = vector.extract_strided_slice %71 {offsets = [39, 0], sizes = [256, 16], strides = [1, 1]} : vector<297x16xf32> to vector<256x16xf32>
    %84 = arith.truncf %83 : vector<256x16xf32> to vector<256x16xbf16>
    %c6_48 = arith.constant 6 : index
    %c0_49 = arith.constant 0 : index
    %c0_50 = arith.constant 0 : index
    %85 = vector.load %arg6[%c6_48, %c0_49, %c0_50] : memref<9x16x16xbf16, #tpu.memory_space<vmem>>, vector<1x16x16xbf16>
    %86 = vector.shape_cast %85 : vector<1x16x16xbf16> to vector<16x16xbf16>
    %cst_51 = arith.constant dense<0.000000e+00> : vector<256x16xf32>
    %87 = tpu.matmul %84, %86, %cst_51 {dimension_numbers = #tpu.dot_dimension_numbers<[1], [0], [0], [1], [0, 0, 1, 1], [], []>} : vector<256x16xbf16>, vector<16x16xbf16>, vector<256x16xf32> -> vector<256x16xf32>
    %88 = arith.addf %82, %87 : vector<256x16xf32>
    %89 = vector.broadcast %0 : vector<256x1xf32> to vector<256x16xf32>
    %90 = arith.mulf %88, %89 : vector<256x16xf32>
    %91 = vector.extract_strided_slice %71 {offsets = [8, 0], sizes = [256, 16], strides = [1, 1]} : vector<297x16xf32> to vector<256x16xf32>
    %92 = arith.truncf %91 : vector<256x16xf32> to vector<256x16xbf16>
    %c1_52 = arith.constant 1 : index
    %c0_53 = arith.constant 0 : index
    %c0_54 = arith.constant 0 : index
    %93 = vector.load %arg6[%c1_52, %c0_53, %c0_54] : memref<9x16x16xbf16, #tpu.memory_space<vmem>>, vector<1x16x16xbf16>
    %94 = vector.shape_cast %93 : vector<1x16x16xbf16> to vector<16x16xbf16>
    %cst_55 = arith.constant dense<0.000000e+00> : vector<256x16xf32>
    %95 = tpu.matmul %92, %94, %cst_55 {dimension_numbers = #tpu.dot_dimension_numbers<[1], [0], [0], [1], [0, 0, 1, 1], [], []>} : vector<256x16xbf16>, vector<16x16xbf16>, vector<256x16xf32> -> vector<256x16xf32>
    %96 = vector.extract_strided_slice %71 {offsets = [24, 0], sizes = [256, 16], strides = [1, 1]} : vector<297x16xf32> to vector<256x16xf32>
    %97 = arith.truncf %96 : vector<256x16xf32> to vector<256x16xbf16>
    %c4_56 = arith.constant 4 : index
    %c0_57 = arith.constant 0 : index
    %c0_58 = arith.constant 0 : index
    %98 = vector.load %arg6[%c4_56, %c0_57, %c0_58] : memref<9x16x16xbf16, #tpu.memory_space<vmem>>, vector<1x16x16xbf16>
    %99 = vector.shape_cast %98 : vector<1x16x16xbf16> to vector<16x16xbf16>
    %cst_59 = arith.constant dense<0.000000e+00> : vector<256x16xf32>
    %100 = tpu.matmul %97, %99, %cst_59 {dimension_numbers = #tpu.dot_dimension_numbers<[1], [0], [0], [1], [0, 0, 1, 1], [], []>} : vector<256x16xbf16>, vector<16x16xbf16>, vector<256x16xf32> -> vector<256x16xf32>
    %101 = arith.addf %95, %100 : vector<256x16xf32>
    %102 = vector.extract_strided_slice %71 {offsets = [40, 0], sizes = [256, 16], strides = [1, 1]} : vector<297x16xf32> to vector<256x16xf32>
    %103 = arith.truncf %102 : vector<256x16xf32> to vector<256x16xbf16>
    %c7_60 = arith.constant 7 : index
    %c0_61 = arith.constant 0 : index
    %c0_62 = arith.constant 0 : index
    %104 = vector.load %arg6[%c7_60, %c0_61, %c0_62] : memref<9x16x16xbf16, #tpu.memory_space<vmem>>, vector<1x16x16xbf16>
    %105 = vector.shape_cast %104 : vector<1x16x16xbf16> to vector<16x16xbf16>
    %cst_63 = arith.constant dense<0.000000e+00> : vector<256x16xf32>
    %106 = tpu.matmul %103, %105, %cst_63 {dimension_numbers = #tpu.dot_dimension_numbers<[1], [0], [0], [1], [0, 0, 1, 1], [], []>} : vector<256x16xbf16>, vector<16x16xbf16>, vector<256x16xf32> -> vector<256x16xf32>
    %107 = arith.addf %101, %106 : vector<256x16xf32>
    %108 = arith.addf %90, %107 : vector<256x16xf32>
    %109 = vector.extract_strided_slice %71 {offsets = [9, 0], sizes = [256, 16], strides = [1, 1]} : vector<297x16xf32> to vector<256x16xf32>
    %110 = arith.truncf %109 : vector<256x16xf32> to vector<256x16xbf16>
    %c2_64 = arith.constant 2 : index
    %c0_65 = arith.constant 0 : index
    %c0_66 = arith.constant 0 : index
    %111 = vector.load %arg6[%c2_64, %c0_65, %c0_66] : memref<9x16x16xbf16, #tpu.memory_space<vmem>>, vector<1x16x16xbf16>
    %112 = vector.shape_cast %111 : vector<1x16x16xbf16> to vector<16x16xbf16>
    %cst_67 = arith.constant dense<0.000000e+00> : vector<256x16xf32>
    %113 = tpu.matmul %110, %112, %cst_67 {dimension_numbers = #tpu.dot_dimension_numbers<[1], [0], [0], [1], [0, 0, 1, 1], [], []>} : vector<256x16xbf16>, vector<16x16xbf16>, vector<256x16xf32> -> vector<256x16xf32>
    %114 = vector.extract_strided_slice %71 {offsets = [25, 0], sizes = [256, 16], strides = [1, 1]} : vector<297x16xf32> to vector<256x16xf32>
    %115 = arith.truncf %114 : vector<256x16xf32> to vector<256x16xbf16>
    %c5_68 = arith.constant 5 : index
    %c0_69 = arith.constant 0 : index
    %c0_70 = arith.constant 0 : index
    %116 = vector.load %arg6[%c5_68, %c0_69, %c0_70] : memref<9x16x16xbf16, #tpu.memory_space<vmem>>, vector<1x16x16xbf16>
    %117 = vector.shape_cast %116 : vector<1x16x16xbf16> to vector<16x16xbf16>
    %cst_71 = arith.constant dense<0.000000e+00> : vector<256x16xf32>
    %118 = tpu.matmul %115, %117, %cst_71 {dimension_numbers = #tpu.dot_dimension_numbers<[1], [0], [0], [1], [0, 0, 1, 1], [], []>} : vector<256x16xbf16>, vector<16x16xbf16>, vector<256x16xf32> -> vector<256x16xf32>
    %119 = arith.addf %113, %118 : vector<256x16xf32>
    %120 = vector.extract_strided_slice %71 {offsets = [41, 0], sizes = [256, 16], strides = [1, 1]} : vector<297x16xf32> to vector<256x16xf32>
    %121 = arith.truncf %120 : vector<256x16xf32> to vector<256x16xbf16>
    %c8_72 = arith.constant 8 : index
    %c0_73 = arith.constant 0 : index
    %c0_74 = arith.constant 0 : index
    %122 = vector.load %arg6[%c8_72, %c0_73, %c0_74] : memref<9x16x16xbf16, #tpu.memory_space<vmem>>, vector<1x16x16xbf16>
    %123 = vector.shape_cast %122 : vector<1x16x16xbf16> to vector<16x16xbf16>
    %cst_75 = arith.constant dense<0.000000e+00> : vector<256x16xf32>
    %124 = tpu.matmul %121, %123, %cst_75 {dimension_numbers = #tpu.dot_dimension_numbers<[1], [0], [0], [1], [0, 0, 1, 1], [], []>} : vector<256x16xbf16>, vector<16x16xbf16>, vector<256x16xf32> -> vector<256x16xf32>
    %125 = arith.addf %119, %124 : vector<256x16xf32>
    %126 = vector.broadcast %1 : vector<256x1xf32> to vector<256x16xf32>
    %127 = arith.mulf %125, %126 : vector<256x16xf32>
    %128 = arith.addf %108, %127 : vector<256x16xf32>
    %c0_76 = arith.constant 0 : index
    %c0_77 = arith.constant 0 : index
    %129 = vector.load %arg7[%c0_76, %c0_77] : memref<1x16xf32, #tpu.memory_space<vmem>>, vector<1x16xf32>
    %130 = vector.broadcast %129 : vector<1x16xf32> to vector<256x16xf32>
    %131 = arith.addf %128, %130 : vector<256x16xf32>
    %cst_78 = arith.constant 0.000000e+00 : f32
    %132 = vector.broadcast %cst_78 : f32 to vector<256x16xf32>
    %133 = arith.maximumf %131, %132 : vector<256x16xf32>
    %134 = arith.truncf %133 : vector<256x16xf32> to vector<256x16xbf16>
    %c0_79 = arith.constant 0 : index
    %c0_80 = arith.constant 0 : index
    %135 = vector.load %arg8[%c0_79, %c0_80] : memref<16x128xbf16, #tpu.memory_space<vmem>>, vector<16x128xbf16>
    %cst_81 = arith.constant dense<0.000000e+00> : vector<256x128xf32>
    %136 = tpu.matmul %134, %135, %cst_81 {dimension_numbers = #tpu.dot_dimension_numbers<[1], [0], [0], [1], [0, 0, 1, 1], [], []>} : vector<256x16xbf16>, vector<16x128xbf16>, vector<256x128xf32> -> vector<256x128xf32>
    %c0_82 = arith.constant 0 : index
    %c0_83 = arith.constant 0 : index
    %137 = vector.load %arg9[%c0_82, %c0_83] : memref<1x128xf32, #tpu.memory_space<vmem>>, vector<1x128xf32>
    %138 = vector.broadcast %137 : vector<1x128xf32> to vector<256x128xf32>
    %139 = arith.addf %136, %138 : vector<256x128xf32>
    %140 = tpu.iota {dimensions = array<i32: 1>} : vector<256x128xi32>
    %c12_i32 = arith.constant 12 : i32
    %141 = vector.broadcast %c12_i32 : i32 to vector<256x128xi32>
    %142 = arith.cmpi slt, %140, %141 : vector<256x128xi32>
    %143 = arith.negf %139 : vector<256x128xf32>
    %144 = math.exp %143 : vector<256x128xf32>
    %cst_84 = arith.constant 1.000000e+00 : f32
    %145 = vector.broadcast %cst_84 : f32 to vector<256x128xf32>
    %146 = arith.addf %145, %144 : vector<256x128xf32>
    %147 = arith.divf %145, %146 : vector<256x128xf32>
    %148 = arith.select %142, %139, %147 : vector<256x128xi1>, vector<256x128xf32>
    %c0_85 = arith.constant 0 : index
    %c0_86 = arith.constant 0 : index
    %c0_87 = arith.constant 0 : index
    %149 = vector.load %arg10[%c0_85, %c0_86, %c0_87] : memref<1x256x128xf32, #tpu.memory_space<vmem>>, vector<1x256x128xf32>
    %150 = vector.shape_cast %149 : vector<1x256x128xf32> to vector<256x128xf32>
    %151 = vector.shape_cast %148 : vector<256x128xf32> to vector<1x256x128xf32>
    tpu.vector_store %arg10[%c0_85, %c0_86, %c0_87], %151 {strides = array<i32>} : memref<1x256x128xf32, #tpu.memory_space<vmem>>, vector<1x256x128xf32>,
    return
  }
  func.func @transform_0(%arg0: i32) -> (i32, i32, i32) {
    %c0_i32 = arith.constant 0 : i32
    %c0_i32_0 = arith.constant 0 : i32
    %c0_i32_1 = arith.constant 0 : i32
    return %arg0, %c0_i32, %c0_i32_0 : i32, i32, i32
  }
  func.func @transform_1(%arg0: i32) -> (i32, i32) {
    %c0_i32 = arith.constant 0 : i32
    %c0_i32_0 = arith.constant 0 : i32
    %c0_i32_1 = arith.constant 0 : i32
    return %c0_i32, %c0_i32_0 : i32, i32
  }
  func.func @transform_2(%arg0: i32) -> (i32, i32) {
    %c0_i32 = arith.constant 0 : i32
    %c0_i32_0 = arith.constant 0 : i32
    %c0_i32_1 = arith.constant 0 : i32
    return %c0_i32, %c0_i32_0 : i32, i32
  }
  func.func @transform_3(%arg0: i32) -> (i32, i32, i32) {
    %c0_i32 = arith.constant 0 : i32
    %c0_i32_0 = arith.constant 0 : i32
    %c0_i32_1 = arith.constant 0 : i32
    %c0_i32_2 = arith.constant 0 : i32
    return %c0_i32, %c0_i32_0, %c0_i32_1 : i32, i32, i32
  }
  func.func @transform_4(%arg0: i32) -> (i32, i32) {
    %c0_i32 = arith.constant 0 : i32
    %c0_i32_0 = arith.constant 0 : i32
    %c0_i32_1 = arith.constant 0 : i32
    return %c0_i32, %c0_i32_0 : i32, i32
  }
  func.func @transform_5(%arg0: i32) -> (i32, i32, i32) {
    %c0_i32 = arith.constant 0 : i32
    %c0_i32_0 = arith.constant 0 : i32
    %c0_i32_1 = arith.constant 0 : i32
    %c0_i32_2 = arith.constant 0 : i32
    return %c0_i32, %c0_i32_0, %c0_i32_1 : i32, i32, i32
  }
  func.func @transform_6(%arg0: i32) -> (i32, i32) {
    %c0_i32 = arith.constant 0 : i32
    %c0_i32_0 = arith.constant 0 : i32
    %c0_i32_1 = arith.constant 0 : i32
    return %c0_i32, %c0_i32_0 : i32, i32
  }
  func.func @transform_7(%arg0: i32) -> (i32, i32) {
    %c0_i32 = arith.constant 0 : i32
    %c0_i32_0 = arith.constant 0 : i32
    %c0_i32_1 = arith.constant 0 : i32
    return %c0_i32, %c0_i32_0 : i32, i32
  }
  func.func @transform_8(%arg0: i32) -> (i32, i32) {
    %c0_i32 = arith.constant 0 : i32
    %c0_i32_0 = arith.constant 0 : i32
    %c0_i32_1 = arith.constant 0 : i32
    return %c0_i32, %c0_i32_0 : i32, i32
  }
  func.func @transform_9(%arg0: i32) -> (i32, i32, i32) {
    %c0_i32 = arith.constant 0 : i32
    %c0_i32_0 = arith.constant 0 : i32
    %c0_i32_1 = arith.constant 0 : i32
    return %arg0, %c0_i32, %c0_i32_0 : i32, i32, i32
  }
}

</mosaic_0001>

<llo_original>
// kernel: _fused_branch.1
$region0: #{_fused_branch.1}
  #allocation0 [shape = 'u32[]', space=smem, size = 0x4, offset = 0x4, fixed_abs, tag = 'smem constant byte address 0x4 - core index']
  #allocation1 [shape = 'u32[144,128]{1,0:T(1,128)}', space=vmem, size = 0x12000, scoped, tag = 'internal scratch']
  #allocation2 [shape = 'f32[297,16]{1,0:T(8,128)}', space=vmem, size = 0x26000, scoped, tag = 'scratch operand']
  %s0 = inlined_call_operand.vmem [shape: bf16[2,297,8], index: 0, kind: input, shape index: {}]
  %s1 = inlined_call_operand.vmem [shape: f32[256,1], index: 1, kind: input, shape index: {}]
  %s2 = inlined_call_operand.vmem [shape: f32[256,1], index: 2, kind: input, shape index: {}]
  %s3 = inlined_call_operand.vmem [shape: bf16[9,8,16], index: 3, kind: input, shape index: {}]
  %s4 = inlined_call_operand.vmem [shape: f32[1,16], index: 4, kind: input, shape index: {}]
  %s5 = inlined_call_operand.vmem [shape: bf16[9,16,16], index: 5, kind: input, shape index: {}]
  %s6 = inlined_call_operand.vmem [shape: f32[1,16], index: 6, kind: input, shape index: {}]
  %s7 = inlined_call_operand.vmem [shape: bf16[16,128], index: 7, kind: input, shape index: {}]
  %s8 = inlined_call_operand.vmem [shape: f32[1,128], index: 8, kind: input, shape index: {}]
  %s9 = inlined_call_operand.vmem [shape: f32[2,256,128], index: 9, kind: output, shape index: {}]
  %s10 = sld [smem:[#allocation0]]
  $region73: #{_fused_branch.1} parent=0
    _
  %s12 = ssub.s32 1, %s10
  %s13 = scalar_select 0, %s12, %s10
  loop: start=0, step=1, limit=4
  $region2: #{_fused_branch.1} parent=0 // loop_pre_header
    _
  $region3: #{_fused_branch.1} parent=0 // loop_header
    %s15 = sphi 0, %s19
    %p16 = scmp.ge.s32.totalorder %s15, 4
    %s25 = sphi 0, %s27
    %s28 = sphi 0, %s25
    %s29 = sphi 0, %s28
    %s45 = sphi 0, %s29
    %s49 = sphi 0, %s49
    %s51 = sphi 0, %s49
    %s52 = sphi 0, %s51
    %s66 = sphi 0, %s52
    %s70 = sphi 0, %s70
    %s72 = sphi 0, %s70
    %s73 = sphi 0, %s72
    %s87 = sphi 0, %s73
    %s91 = sphi 0, %s91
    %s93 = sphi 0, %s91
    %s94 = sphi 0, %s93
    %s108 = sphi 0, %s94
    %s112 = sphi 0, %s112
    %s114 = sphi 0, %s112
    %s115 = sphi 0, %s114
    %s129 = sphi 0, %s115
    %s133 = sphi 0, %s133
    %s135 = sphi 0, %s133
    %s136 = sphi 0, %s135
    %s150 = sphi 0, %s136
    %s154 = sphi 0, %s154
    %s156 = sphi 0, %s154
    %s157 = sphi 0, %s156
    %s171 = sphi 0, %s157
    %s175 = sphi 0, %s175
    %s177 = sphi 0, %s175
    %s178 = sphi 0, %s177
    %s192 = sphi 0, %s178
    %s196 = sphi 0, %s196
    %s198 = sphi 0, %s196
    %s199 = sphi 0, %s198
    %s213 = sphi 0, %s199
    %s219 = sphi 0, %s221
    %s222 = sphi 0, %s219
    %s223 = sphi 0, %s222
    %s239 = sphi 0, %s223
  $region4: #{_fused_branch.1} parent=0 // loop_header_branch
    %18 = sbr.rel (%p16) target = $region8
  $region5: #{_fused_branch.1} parent=0 // loop_body
    %s20 = ssub.s32 %s15, 1
    %s21 = ssub.s32 %s15, 2
    %s22 = sadd.s32 %s15, 1
    %s23 = ssub.s32 %s15, %s22
    %p24 = scmp.eq.s32.totalorder %s23, 0
    %s26 = sadd.s32 %s25, 1
    %s27 = scalar_select %p24, %s25, %s26
    %p30 = pneg %p24
    %p31 = scmp.eq.s32.totalorder %s15, 1
    %p32 = por %p30, %p31
    %p33 = scmp.ne.s32.totalorder %s25, %s28
    %p34 = scmp.eq.s32.totalorder %s15, 0
    %p35 = por %p33, %p34
    %p36 = scmp.ne.s32.totalorder %s25, %s28
    %p37 = scmp.eq.s32.totalorder %s20, 1
    %p38 = por %p36, %p37
    %p39 = scmp.ne.s32.totalorder %s28, %s29
    %p40 = scmp.eq.s32.totalorder %s20, 0
    %p41 = por %p39, %p40
    %p42 = scmp.ne.s32.totalorder %s28, %s29
    %p43 = scmp.eq.s32.totalorder %s21, 1
    %p44 = por %p42, %p43
    %p46 = scmp.ne.s32.totalorder %s29, %s45
    %p47 = scmp.eq.s32.totalorder %s21, 0
    %p48 = por %p46, %p47
    %s50 = sadd.s32 %s49, 1
    %p53 = scmp.eq.s32.totalorder %s15, 1
    %p54 = scmp.ne.s32.totalorder %s49, %s51
    %p55 = scmp.eq.s32.totalorder %s15, 0
    %p56 = por %p54, %p55
    %p57 = scmp.ne.s32.totalorder %s49, %s51
    %p58 = scmp.eq.s32.totalorder %s20, 1
    %p59 = por %p57, %p58
    %p60 = scmp.ne.s32.totalorder %s51, %s52
    %p61 = scmp.eq.s32.totalorder %s20, 0
    %p62 = por %p60, %p61
    %p63 = scmp.ne.s32.totalorder %s51, %s52
    %p64 = scmp.eq.s32.totalorder %s21, 1
    %p65 = por %p63, %p64
    %p67 = scmp.ne.s32.totalorder %s52, %s66
    %p68 = scmp.eq.s32.totalorder %s21, 0
    %p69 = por %p67, %p68
    %s71 = sadd.s32 %s70, 1
    %p74 = scmp.eq.s32.totalorder %s15, 1
    %p75 = scmp.ne.s32.totalorder %s70, %s72
    %p76 = scmp.eq.s32.totalorder %s15, 0
    %p77 = por %p75, %p76
    %p78 = scmp.ne.s32.totalorder %s70, %s72
    %p79 = scmp.eq.s32.totalorder %s20, 1
    %p80 = por %p78, %p79
    %p81 = scmp.ne.s32.totalorder %s72, %s73
    %p82 = scmp.eq.s32.totalorder %s20, 0
    %p83 = por %p81, %p82
    %p84 = scmp.ne.s32.totalorder %s72, %s73
    %p85 = scmp.eq.s32.totalorder %s21, 1
    %p86 = por %p84, %p85
    %p88 = scmp.ne.s32.totalorder %s73, %s87
    %p89 = scmp.eq.s32.totalorder %s21, 0
    %p90 = por %p88, %p89
    %s92 = sadd.s32 %s91, 1
    %p95 = scmp.eq.s32.totalorder %s15, 1
    %p96 = scmp.ne.s32.totalorder %s91, %s93
    %p97 = scmp.eq.s32.totalorder %s15, 0
    %p98 = por %p96, %p97
    %p99 = scmp.ne.s32.totalorder %s91, %s93
    %p100 = scmp.eq.s32.totalorder %s20, 1
    %p101 = por %p99, %p100
    %p102 = scmp.ne.s32.totalorder %s93, %s94
    %p103 = scmp.eq.s32.totalorder %s20, 0
    %p104 = por %p102, %p103
    %p105 = scmp.ne.s32.totalorder %s93, %s94
    %p106 = scmp.eq.s32.totalorder %s21, 1
    %p107 = por %p105, %p106
    %p109 = scmp.ne.s32.totalorder %s94, %s108
    %p110 = scmp.eq.s32.totalorder %s21, 0
    %p111 = por %p109, %p110
    %s113 = sadd.s32 %s112, 1
    %p116 = scmp.eq.s32.totalorder %s15, 1
    %p117 = scmp.ne.s32.totalorder %s112, %s114
    %p118 = scmp.eq.s32.totalorder %s15, 0
    %p119 = por %p117, %p118
    %p120 = scmp.ne.s32.totalorder %s112, %s114
    %p121 = scmp.eq.s32.totalorder %s20, 1
    %p122 = por %p120, %p121
    %p123 = scmp.ne.s32.totalorder %s114, %s115
    %p124 = scmp.eq.s32.totalorder %s20, 0
    %p125 = por %p123, %p124
    %p126 = scmp.ne.s32.totalorder %s114, %s115
    %p127 = scmp.eq.s32.totalorder %s21, 1
    %p128 = por %p126, %p127
    %p130 = scmp.ne.s32.totalorder %s115, %s129
    %p131 = scmp.eq.s32.totalorder %s21, 0
    %p132 = por %p130, %p131
    %s134 = sadd.s32 %s133, 1
    %p137 = scmp.eq.s32.totalorder %s15, 1
    %p138 = scmp.ne.s32.totalorder %s133, %s135
    %p139 = scmp.eq.s32.totalorder %s15, 0
    %p140 = por %p138, %p139
    %p141 = scmp.ne.s32.totalorder %s133, %s135
    %p142 = scmp.eq.s32.totalorder %s20, 1
    %p143 = por %p141, %p142
    %p144 = scmp.ne.s32.totalorder %s135, %s136
    %p145 = scmp.eq.s32.totalorder %s20, 0
    %p146 = por %p144, %p145
    %p147 = scmp.ne.s32.totalorder %s135, %s136
    %p148 = scmp.eq.s32.totalorder %s21, 1
    %p149 = por %p147, %p148
    %p151 = scmp.ne.s32.totalorder %s136, %s150
    %p152 = scmp.eq.s32.totalorder %s21, 0
    %p153 = por %p151, %p152
    %s155 = sadd.s32 %s154, 1
    %p158 = scmp.eq.s32.totalorder %s15, 1
    %p159 = scmp.ne.s32.totalorder %s154, %s156
    %p160 = scmp.eq.s32.totalorder %s15, 0
    %p161 = por %p159, %p160
    %p162 = scmp.ne.s32.totalorder %s154, %s156
    %p163 = scmp.eq.s32.totalorder %s20, 1
    %p164 = por %p162, %p163
    %p165 = scmp.ne.s32.totalorder %s156, %s157
    %p166 = scmp.eq.s32.totalorder %s20, 0
    %p167 = por %p165, %p166
    %p168 = scmp.ne.s32.totalorder %s156, %s157
    %p169 = scmp.eq.s32.totalorder %s21, 1
    %p170 = por %p168, %p169
    %p172 = scmp.ne.s32.totalorder %s157, %s171
    %p173 = scmp.eq.s32.totalorder %s21, 0
    %p174 = por %p172, %p173
    %s176 = sadd.s32 %s175, 1
    %p179 = scmp.eq.s32.totalorder %s15, 1
    %p180 = scmp.ne.s32.totalorder %s175, %s177
    %p181 = scmp.eq.s32.totalorder %s15, 0
    %p182 = por %p180, %p181
    %p183 = scmp.ne.s32.totalorder %s175, %s177
    %p184 = scmp.eq.s32.totalorder %s20, 1
    %p185 = por %p183, %p184
    %p186 = scmp.ne.s32.totalorder %s177, %s178
    %p187 = scmp.eq.s32.totalorder %s20, 0
    %p188 = por %p186, %p187
    %p189 = scmp.ne.s32.totalorder %s177, %s178
    %p190 = scmp.eq.s32.totalorder %s21, 1
    %p191 = por %p189, %p190
    %p193 = scmp.ne.s32.totalorder %s178, %s192
    %p194 = scmp.eq.s32.totalorder %s21, 0
    %p195 = por %p193, %p194
    %s197 = sadd.s32 %s196, 1
    %p200 = scmp.eq.s32.totalorder %s15, 1
    %p201 = scmp.ne.s32.totalorder %s196, %s198
    %p202 = scmp.eq.s32.totalorder %s15, 0
    %p203 = por %p201, %p202
    %p204 = scmp.ne.s32.totalorder %s196, %s198
    %p205 = scmp.eq.s32.totalorder %s20, 1
    %p206 = por %p204, %p205
    %p207 = scmp.ne.s32.totalorder %s198, %s199
    %p208 = scmp.eq.s32.totalorder %s20, 0
    %p209 = por %p207, %p208
    %p210 = scmp.ne.s32.totalorder %s198, %s199
    %p211 = scmp.eq.s32.totalorder %s21, 1
    %p212 = por %p210, %p211
    %p214 = scmp.ne.s32.totalorder %s199, %s213
    %p215 = scmp.eq.s32.totalorder %s21, 0
    %p216 = por %p214, %p215
    %s217 = ssub.s32 %s15, %s22
    %p218 = scmp.eq.s32.totalorder %s217, 0
    %s220 = sadd.s32 %s219, 1
    %s221 = scalar_select %p218, %s219, %s220
    %p224 = pneg %p218
    %p225 = scmp.eq.s32.totalorder %s15, 1
    %p226 = por %p224, %p225
    %p227 = scmp.ne.s32.totalorder %s219, %s222
    %p228 = scmp.eq.s32.totalorder %s15, 0
    %p229 = por %p227, %p228
    %p230 = scmp.ne.s32.totalorder %s219, %s222
    %p231 = scmp.eq.s32.totalorder %s20, 1
    %p232 = por %p230, %p231
    %p233 = scmp.ne.s32.totalorder %s222, %s223
    %p234 = scmp.eq.s32.totalorder %s20, 0
    %p235 = por %p233, %p234
    %p236 = scmp.ne.s32.totalorder %s222, %s223
    %p237 = scmp.eq.s32.totalorder %s21, 1
    %p238 = por %p236, %p237
    %p240 = scmp.ne.s32.totalorder %s223, %s239
    %p241 = scmp.eq.s32.totalorder %s21, 0
    %p242 = por %p240, %p241
    %p243 = scmp.le.s32.totalorder 1, %s15
    %p244 = scmp.lt.s32.totalorder %s15, 3
    %p245 = pnand %p243, %p244
    %p246 = pneg %p245
    // Predicated region
    $region9: #{_fused_branch.1} parent=5 // pred_check
      _
    $region10: #{_fused_branch.1} parent=5 // pred_check_branch
      %248 = sbr.rel (%p245) target = $region12
    $region11: #{_fused_branch.1} parent=5 // pred_region
      %s249 = ssub.s32 %s15, 1
      // Predicated region
      $region13: #{_fused_branch.1} parent=11 // pred_check
        %p250 = pneg %p62
      $region14: #{_fused_branch.1} parent=11 // pred_check_branch
        %252 = sbr.rel (%p250) target = $region16
      $region15: #{_fused_branch.1} parent=11 // pred_region
        _
      $region16: #{_fused_branch.1} parent=11 // pred_fallthru
        _
      // Predicated region
      $region17: #{_fused_branch.1} parent=11 // pred_check
        %p253 = pneg %p83
      $region18: #{_fused_branch.1} parent=11 // pred_check_branch
        %255 = sbr.rel (%p253) target = $region20
      $region19: #{_fused_branch.1} parent=11 // pred_region
        _
      $region20: #{_fused_branch.1} parent=11 // pred_fallthru
        _
      // Predicated region
      $region21: #{_fused_branch.1} parent=11 // pred_check
        %p256 = pneg %p104
      $region22: #{_fused_branch.1} parent=11 // pred_check_branch
        %258 = sbr.rel (%p256) target = $region24
      $region23: #{_fused_branch.1} parent=11 // pred_region
        _
      $region24: #{_fused_branch.1} parent=11 // pred_fallthru
        _
      // Predicated region
      $region25: #{_fused_branch.1} parent=11 // pred_check
        %p259 = pneg %p125
      $region26: #{_fused_branch.1} parent=11 // pred_check_branch
        %261 = sbr.rel (%p259) target = $region28
      $region27: #{_fused_branch.1} parent=11 // pred_region
        _
      $region28: #{_fused_branch.1} parent=11 // pred_fallthru
        _
      // Predicated region
      $region29: #{_fused_branch.1} parent=11 // pred_check
        %p262 = pneg %p146
      $region30: #{_fused_branch.1} parent=11 // pred_check_branch
        %264 = sbr.rel (%p262) target = $region32
      $region31: #{_fused_branch.1} parent=11 // pred_region
        _
      $region32: #{_fused_branch.1} parent=11 // pred_fallthru
        _
      // Predicated region
      $region33: #{_fused_branch.1} parent=11 // pred_check
        %p265 = pneg %p167
      $region34: #{_fused_branch.1} parent=11 // pred_check_branch
        %267 = sbr.rel (%p265) target = $region36
      $region35: #{_fused_branch.1} parent=11 // pred_region
        _
      $region36: #{_fused_branch.1} parent=11 // pred_fallthru
        _
      // Predicated region
      $region37: #{_fused_branch.1} parent=11 // pred_check
        %p268 = pneg %p188
      $region38: #{_fused_branch.1} parent=11 // pred_check_branch
        %270 = sbr.rel (%p268) target = $region40
      $region39: #{_fused_branch.1} parent=11 // pred_region
        _
      $region40: #{_fused_branch.1} parent=11 // pred_fallthru
        _
      // Predicated region
      $region41: #{_fused_branch.1} parent=11 // pred_check
        %p271 = pneg %p209
      $region42: #{_fused_branch.1} parent=11 // pred_check_branch
        %273 = sbr.rel (%p271) target = $region44
      $region43: #{_fused_branch.1} parent=11 // pred_region
        _
      $region44: #{_fused_branch.1} parent=11 // pred_fallthru
        _
    $region12: #{_fused_branch.1} parent=5 // pred_fallthru
      _
    %p274 = scmp.lt.s32.totalorder %s15, 2
    // Predicated region
    $region45: #{_fused_branch.1} parent=5 // pred_check
      %p275 = pneg %p274
    $region46: #{_fused_branch.1} parent=5 // pred_check_branch
      %277 = sbr.rel (%p275) target = $region48
    $region47: #{_fused_branch.1} parent=5 // pred_region
      // Predicated region
      $region49: #{_fused_branch.1} parent=47 // pred_check
        %p278 = pneg %p35
      $region50: #{_fused_branch.1} parent=47 // pred_check_branch
        %280 = sbr.rel (%p278) target = $region52
      $region51: #{_fused_branch.1} parent=47 // pred_region
        %p281 = scmp.lt.s32.totalorder %s15, 1
        %s282 = scalar_select %p281, %s15, 1
        %s283 = smul.addr %s282, 38
        %s284 = smul.addr %s283, 4
        %s285 = scalar_lea.vmem %s0, %s284
      $region52: #{_fused_branch.1} parent=47 // pred_fallthru
        _
    $region48: #{_fused_branch.1} parent=5 // pred_fallthru
      _
    %p286 = scmp.le.s32.totalorder 1, %s15
    %p287 = scmp.lt.s32.totalorder %s15, 3
    %p288 = pnand %p286, %p287
    %p289 = pneg %p288
    // Predicated region
    $region53: #{_fused_branch.1} parent=5 // pred_check
      _
    $region54: #{_fused_branch.1} parent=5 // pred_check_branch
      %291 = sbr.rel (%p288) target = $region56
    $region55: #{_fused_branch.1} parent=5 // pred_region
      %s292 = ssub.s32 %s15, 1
      %p293 = scmp.lt.s32.totalorder %s20, 1
      %s294 = scalar_select %p293, %s20, 1
      %s295 = smul.addr %s294, 38
      %s296 = smul.addr %s295, 4
      %s297 = scalar_lea.vmem %s0, %s296
      %p298 = pneg %p41
      %p299 = pneg %p38
      %p300 = pneg %p62
      %p301 = pneg %p59
      %p302 = pneg %p83
      %p303 = pneg %p80
      %p304 = pneg %p104
      %p305 = pneg %p101
      %p306 = pneg %p125
      %p307 = pneg %p122
      %p308 = pneg %p146
      %p309 = pneg %p143
      %p310 = pneg %p167
      %p311 = pneg %p164
      %p312 = pneg %p188
      %p313 = pneg %p185
      %p314 = pneg %p209
      %p315 = pneg %p206
      %p316 = pneg %p235
      %p317 = pneg %p232
      %p318 = scmp.lt.s32.totalorder %s20, 1
      %s319 = scalar_select %p318, %s20, 1
      %s320 = smul.addr %s319, 32
      %s321 = smul.addr %s320, 8
      %s322 = scalar_lea.vmem %s9, %s321
      %p323 = scmp.lt.s32.totalorder %s20, 1
      %s324 = scalar_select %p323, %s20, 1
      %s325 = smul.addr %s324, 38
      %s326 = smul.addr %s325, 4
      %s327 = scalar_lea.vmem %s0, %s326
      %p328 = scmp.lt.s32.totalorder %s20, 1
      %s329 = scalar_select %p328, %s20, 1
      %s330 = smul.addr %s329, 32
      %s331 = smul.addr %s330, 8
      %s332 = scalar_lea.vmem %s9, %s331
      %v334 = vld [vmem:[%s1] sm:$0xff]
      %v335 = vld [vmem:[%s1 + $0x8] sm:$0xff]
      %v336 = vld [vmem:[%s1 + $0x10] sm:$0xff]
      %v337 = vld [vmem:[%s1 + $0x18] sm:$0xff]
      %v338 = vld [vmem:[%s1 + $0x20] sm:$0xff]
      %v339 = vld [vmem:[%s1 + $0x28] sm:$0xff]
      %v340 = vld [vmem:[%s1 + $0x30] sm:$0xff]
      %v341 = vld [vmem:[%s1 + $0x38] sm:$0xff]
      %v342 = vld [vmem:[%s1 + $0x40] sm:$0xff]
      %v343 = vld [vmem:[%s1 + $0x48] sm:$0xff]
      %v344 = vld [vmem:[%s1 + $0x50] sm:$0xff]
      %v345 = vld [vmem:[%s1 + $0x58] sm:$0xff]
      %v346 = vld [vmem:[%s1 + $0x60] sm:$0xff]
      %v347 = vld [vmem:[%s1 + $0x68] sm:$0xff]
      %v348 = vld [vmem:[%s1 + $0x70] sm:$0xff]
      %v349 = vld [vmem:[%s1 + $0x78] sm:$0xff]
      %v350 = vld [vmem:[%s1 + $0x80] sm:$0xff]
      %v351 = vld [vmem:[%s1 + $0x88] sm:$0xff]
      %v352 = vld [vmem:[%s1 + $0x90] sm:$0xff]
      %v353 = vld [vmem:[%s1 + $0x98] sm:$0xff]
      %v354 = vld [vmem:[%s1 + $0xa0] sm:$0xff]
      %v355 = vld [vmem:[%s1 + $0xa8] sm:$0xff]
      %v356 = vld [vmem:[%s1 + $0xb0] sm:$0xff]
      %v357 = vld [vmem:[%s1 + $0xb8] sm:$0xff]
      %v358 = vld [vmem:[%s1 + $0xc0] sm:$0xff]
      %v359 = vld [vmem:[%s1 + $0xc8] sm:$0xff]
      %v360 = vld [vmem:[%s1 + $0xd0] sm:$0xff]
      %v361 = vld [vmem:[%s1 + $0xd8] sm:$0xff]
      %v362 = vld [vmem:[%s1 + $0xe0] sm:$0xff]
      %v363 = vld [vmem:[%s1 + $0xe8] sm:$0xff]
      %v364 = vld [vmem:[%s1 + $0xf0] sm:$0xff]
      %v365 = vld [vmem:[%s1 + $0xf8] sm:$0xff]
      %v366 = vld [vmem:[%s2] sm:$0xff]
      %v367 = vld [vmem:[%s2 + $0x8] sm:$0xff]
      %v368 = vld [vmem:[%s2 + $0x10] sm:$0xff]
      %v369 = vld [vmem:[%s2 + $0x18] sm:$0xff]
      %v370 = vld [vmem:[%s2 + $0x20] sm:$0xff]
      %v371 = vld [vmem:[%s2 + $0x28] sm:$0xff]
      %v372 = vld [vmem:[%s2 + $0x30] sm:$0xff]
      %v373 = vld [vmem:[%s2 + $0x38] sm:$0xff]
      %v374 = vld [vmem:[%s2 + $0x40] sm:$0xff]
      %v375 = vld [vmem:[%s2 + $0x48] sm:$0xff]
      %v376 = vld [vmem:[%s2 + $0x50] sm:$0xff]
      %v377 = vld [vmem:[%s2 + $0x58] sm:$0xff]
      %v378 = vld [vmem:[%s2 + $0x60] sm:$0xff]
      %v379 = vld [vmem:[%s2 + $0x68] sm:$0xff]
      %v380 = vld [vmem:[%s2 + $0x70] sm:$0xff]
      %v381 = vld [vmem:[%s2 + $0x78] sm:$0xff]
      %v382 = vld [vmem:[%s2 + $0x80] sm:$0xff]
      %v383 = vld [vmem:[%s2 + $0x88] sm:$0xff]
      %v384 = vld [vmem:[%s2 + $0x90] sm:$0xff]
      %v385 = vld [vmem:[%s2 + $0x98] sm:$0xff]
      %v386 = vld [vmem:[%s2 + $0xa0] sm:$0xff]
      %v387 = vld [vmem:[%s2 + $0xa8] sm:$0xff]
      %v388 = vld [vmem:[%s2 + $0xb0] sm:$0xff]
      %v389 = vld [vmem:[%s2 + $0xb8] sm:$0xff]
      %v390 = vld [vmem:[%s2 + $0xc0] sm:$0xff]
      %v391 = vld [vmem:[%s2 + $0xc8] sm:$0xff]
      %v392 = vld [vmem:[%s2 + $0xd0] sm:$0xff]
      %v393 = vld [vmem:[%s2 + $0xd8] sm:$0xff]
      %v394 = vld [vmem:[%s2 + $0xe0] sm:$0xff]
      %v395 = vld [vmem:[%s2 + $0xe8] sm:$0xff]
      %v396 = vld [vmem:[%s2 + $0xf0] sm:$0xff]
      %v397 = vld [vmem:[%s2 + $0xf8] sm:$0xff]
      %p398 = scmp.eq.s32.totalorder %s20, 0
      // Predicated region
      $region57: #{_fused_branch.1} parent=55 // pred_check
        %p399 = pneg %p398
      $region58: #{_fused_branch.1} parent=55 // pred_check_branch
        %401 = sbr.rel (%p399) target = $region60
      $region59: #{_fused_branch.1} parent=55 // pred_region
        %vm402 = vcmask 130048
        %403 = vst.msk [vmem:[#allocation2] sm:$0xff] %vm402, 0.0
        %404 = vst.msk [vmem:[#allocation2 + $0x8] sm:$0xff] %vm402, 0.0
        %405 = vst.msk [vmem:[#allocation2 + $0x10] sm:$0xff] %vm402, 0.0
        %406 = vst.msk [vmem:[#allocation2 + $0x18] sm:$0xff] %vm402, 0.0
        %407 = vst.msk [vmem:[#allocation2 + $0x20] sm:$0xff] %vm402, 0.0
        %408 = vst.msk [vmem:[#allocation2 + $0x28] sm:$0xff] %vm402, 0.0
        %409 = vst.msk [vmem:[#allocation2 + $0x30] sm:$0xff] %vm402, 0.0
        %410 = vst.msk [vmem:[#allocation2 + $0x38] sm:$0xff] %vm402, 0.0
        %411 = vst.msk [vmem:[#allocation2 + $0x40] sm:$0xff] %vm402, 0.0
        %412 = vst.msk [vmem:[#allocation2 + $0x48] sm:$0xff] %vm402, 0.0
        %413 = vst.msk [vmem:[#allocation2 + $0x50] sm:$0xff] %vm402, 0.0
        %414 = vst.msk [vmem:[#allocation2 + $0x58] sm:$0xff] %vm402, 0.0
        %415 = vst.msk [vmem:[#allocation2 + $0x60] sm:$0xff] %vm402, 0.0
        %416 = vst.msk [vmem:[#allocation2 + $0x68] sm:$0xff] %vm402, 0.0
        %417 = vst.msk [vmem:[#allocation2 + $0x70] sm:$0xff] %vm402, 0.0
        %418 = vst.msk [vmem:[#allocation2 + $0x78] sm:$0xff] %vm402, 0.0
        %419 = vst.msk [vmem:[#allocation2 + $0x80] sm:$0xff] %vm402, 0.0
        %420 = vst.msk [vmem:[#allocation2 + $0x88] sm:$0xff] %vm402, 0.0
        %421 = vst.msk [vmem:[#allocation2 + $0x90] sm:$0xff] %vm402, 0.0
        %422 = vst.msk [vmem:[#allocation2 + $0x98] sm:$0xff] %vm402, 0.0
        %423 = vst.msk [vmem:[#allocation2 + $0xa0] sm:$0xff] %vm402, 0.0
        %424 = vst.msk [vmem:[#allocation2 + $0xa8] sm:$0xff] %vm402, 0.0
        %425 = vst.msk [vmem:[#allocation2 + $0xb0] sm:$0xff] %vm402, 0.0
        %426 = vst.msk [vmem:[#allocation2 + $0xb8] sm:$0xff] %vm402, 0.0
        %427 = vst.msk [vmem:[#allocation2 + $0xc0] sm:$0xff] %vm402, 0.0
        %428 = vst.msk [vmem:[#allocation2 + $0xc8] sm:$0xff] %vm402, 0.0
        %429 = vst.msk [vmem:[#allocation2 + $0xd0] sm:$0xff] %vm402, 0.0
        %430 = vst.msk [vmem:[#allocation2 + $0xd8] sm:$0xff] %vm402, 0.0
        %431 = vst.msk [vmem:[#allocation2 + $0xe0] sm:$0xff] %vm402, 0.0
        %432 = vst.msk [vmem:[#allocation2 + $0xe8] sm:$0xff] %vm402, 0.0
        %433 = vst.msk [vmem:[#allocation2 + $0xf0] sm:$0xff] %vm402, 0.0
        %434 = vst.msk [vmem:[#allocation2 + $0xf8] sm:$0xff] %vm402, 0.0
        %435 = vst.msk [vmem:[#allocation2 + $0x100] sm:$0xff] %vm402, 0.0
        %436 = vst.msk [vmem:[#allocation2 + $0x108] sm:$0xff] %vm402, 0.0
        %437 = vst.msk [vmem:[#allocation2 + $0x110] sm:$0xff] %vm402, 0.0
        %438 = vst.msk [vmem:[#allocation2 + $0x118] sm:$0xff] %vm402, 0.0
        %439 = vst.msk [vmem:[#allocation2 + $0x120] sm:$0xff] %vm402, 0.0
        %vm440 = vcmask 122880
        %441 = vst.msk [vmem:[#allocation2 + $0x128] sm:$0x1] %vm440, 0.0
      $region60: #{_fused_branch.1} parent=55 // pred_fallthru
        _
      %v442 = vld [vmem:[%s327] sm:$0xf]
      %v443 = vld [vmem:[%s327 + $0x4] sm:$0xf]
      %v444 = vld [vmem:[%s327 + $0x8] sm:$0xf]
      %v445 = vld [vmem:[%s327 + $0xc] sm:$0xf]
      %v446 = vld [vmem:[%s327 + $0x10] sm:$0xf]
      %v447 = vld [vmem:[%s327 + $0x14] sm:$0xf]
      %v448 = vld [vmem:[%s327 + $0x18] sm:$0xf]
      %v449 = vld [vmem:[%s327 + $0x1c] sm:$0xf]
      %v450 = vld [vmem:[%s327 + $0x20] sm:$0xf]
      %v451 = vld [vmem:[%s327 + $0x24] sm:$0xf]
      %v452 = vld [vmem:[%s327 + $0x28] sm:$0xf]
      %v453 = vld [vmem:[%s327 + $0x2c] sm:$0xf]
      %v454 = vld [vmem:[%s327 + $0x30] sm:$0xf]
      %v455 = vld [vmem:[%s327 + $0x34] sm:$0xf]
      %v456 = vld [vmem:[%s327 + $0x38] sm:$0xf]
      %v457 = vld [vmem:[%s327 + $0x3c] sm:$0xf]
      %v458 = vld [vmem:[%s327 + $0x40] sm:$0xf]
      %v459 = vld [vmem:[%s327 + $0x44] sm:$0xf]
      %v460 = vld [vmem:[%s327 + $0x48] sm:$0xf]
      %v461 = vld [vmem:[%s327 + $0x4c] sm:$0xf]
      %v462 = vld [vmem:[%s327 + $0x50] sm:$0xf]
      %v463 = vld [vmem:[%s327 + $0x54] sm:$0xf]
      %v464 = vld [vmem:[%s327 + $0x58] sm:$0xf]
      %v465 = vld [vmem:[%s327 + $0x5c] sm:$0xf]
      %v466 = vld [vmem:[%s327 + $0x60] sm:$0xf]
      %v467 = vld [vmem:[%s327 + $0x64] sm:$0xf]
      %v468 = vld [vmem:[%s327 + $0x68] sm:$0xf]
      %v469 = vld [vmem:[%s327 + $0x6c] sm:$0xf]
      %v470 = vld [vmem:[%s327 + $0x70] sm:$0xf]
      %v471 = vld [vmem:[%s327 + $0x74] sm:$0xf]
      %v472 = vld [vmem:[%s327 + $0x78] sm:$0xf]
      %v473 = vld [vmem:[%s327 + $0x7c] sm:$0xf]
      %v474 = vld [vmem:[%s327 + $0x80] sm:$0xf]
      %v475 = vld [vmem:[%s327 + $0x84] sm:$0xf]
      %v476 = vld [vmem:[%s327 + $0x88] sm:$0xf]
      %v477 = vld [vmem:[%s327 + $0x8c] sm:$0xf]
      %v478 = vld [vmem:[%s327 + $0x90] sm:$0xf]
      %v479 = vld [vmem:[%s327 + $0x94] sm:$0x1]
      %v480 = vunpack.c.l.bf16 %v442
      %v481 = vunpack.c.l.bf16 %v443
      %v482 = vunpack.c.l.bf16 %v444
      %v483 = vunpack.c.l.bf16 %v445
      %v484 = vunpack.c.l.bf16 %v446
      %v485 = vunpack.c.l.bf16 %v447
      %v486 = vunpack.c.l.bf16 %v448
      %v487 = vunpack.c.l.bf16 %v449
      %v488 = vunpack.c.l.bf16 %v450
      %v489 = vunpack.c.l.bf16 %v451
      %v490 = vunpack.c.l.bf16 %v452
      %v491 = vunpack.c.l.bf16 %v453
      %v492 = vunpack.c.l.bf16 %v454
      %v493 = vunpack.c.l.bf16 %v455
      %v494 = vunpack.c.l.bf16 %v456
      %v495 = vunpack.c.l.bf16 %v457
      %v496 = vunpack.c.l.bf16 %v458
      %v497 = vunpack.c.l.bf16 %v459
      %v498 = vunpack.c.l.bf16 %v460
      %v499 = vunpack.c.l.bf16 %v461
      %v500 = vunpack.c.l.bf16 %v462
      %v501 = vunpack.c.l.bf16 %v463
      %v502 = vunpack.c.l.bf16 %v464
      %v503 = vunpack.c.l.bf16 %v465
      %v504 = vunpack.c.l.bf16 %v466
      %v505 = vunpack.c.l.bf16 %v467
      %v506 = vunpack.c.l.bf16 %v468
      %v507 = vunpack.c.l.bf16 %v469
      %v508 = vunpack.c.l.bf16 %v470
      %v509 = vunpack.c.l.bf16 %v471
      %v510 = vunpack.c.l.bf16 %v472
      %v511 = vunpack.c.l.bf16 %v473
      %v512 = vunpack.c.l.bf16 %v474
      %v513 = vunpack.c.l.bf16 %v475
      %v514 = vunpack.c.l.bf16 %v476
      %v515 = vunpack.c.l.bf16 %v477
      %v516 = vunpack.c.l.bf16 %v478
      %v517 = vunpack.c.l.bf16 %v479
      %v518 = vpack.c.bf16 %v481, %v480
      %v519 = vpack.c.bf16 %v483, %v482
      %v520 = vpack.c.bf16 %v485, %v484
      %v521 = vpack.c.bf16 %v487, %v486
      %v522 = vpack.c.bf16 %v489, %v488
      %v523 = vpack.c.bf16 %v491, %v490
      %v524 = vpack.c.bf16 %v493, %v492
      %v525 = vpack.c.bf16 %v495, %v494
      %v526 = vpack.c.bf16 %v497, %v496
      %v527 = vpack.c.bf16 %v499, %v498
      %v528 = vpack.c.bf16 %v501, %v500
      %v529 = vpack.c.bf16 %v503, %v502
      %v530 = vpack.c.bf16 %v505, %v504
      %v531 = vpack.c.bf16 %v507, %v506
      %v532 = vpack.c.bf16 %v509, %v508
      %v533 = vpack.c.bf16 %v511, %v510
      %v534 = vpack.c.bf16 %v512, %v512
      %v535 = vld [vmem:[%s3] sm:$0xf]
      %v536 = vpack.c.bf16 %v513, %v512
      %v537 = vpack.c.bf16 %v514, %v514
      %s538 = scalar_lea.vmem %s3, 12
      %v539 = vld [vmem:[%s538] sm:$0xf]
      %vm540 = vsmask.f32 4352
      %v542 = vshrl.u32 %v519, 16
      %v544 = vrot.slane %v542, 3
      %v545 = vshll.u32 %v519, 16
      %v547 = vrot.slane %v545, 4
      %v548 = vor.u32 %v544, %v547
      %v550 = vshrl.u32 %v520, 16
      %v552 = vrot.slane %v550, 3
      %v553 = vshll.u32 %v520, 16
      %v555 = vrot.slane %v553, 4
      %v556 = vor.u32 %v552, %v555
      %v557 = vsel %vm540, %v548, %v556
      %v559 = vshrl.u32 %v521, 16
      %v561 = vrot.slane %v559, 3
      %v562 = vshll.u32 %v521, 16
      %v564 = vrot.slane %v562, 4
      %v565 = vor.u32 %v561, %v564
      %v566 = vsel %vm540, %v556, %v565
      %v568 = vshrl.u32 %v522, 16
      %v570 = vrot.slane %v568, 3
      %v571 = vshll.u32 %v522, 16
      %v573 = vrot.slane %v571, 4
      %v574 = vor.u32 %v570, %v573
      %v575 = vsel %vm540, %v565, %v574
      %v577 = vshrl.u32 %v523, 16
      %v579 = vrot.slane %v577, 3
      %v580 = vshll.u32 %v523, 16
      %v582 = vrot.slane %v580, 4
      %v583 = vor.u32 %v579, %v582
      %v584 = vsel %vm540, %v574, %v583
      %v586 = vshrl.u32 %v524, 16
      %v588 = vrot.slane %v586, 3
      %v589 = vshll.u32 %v524, 16
      %v591 = vrot.slane %v589, 4
      %v592 = vor.u32 %v588, %v591
      %v593 = vsel %vm540, %v583, %v592
      %v595 = vshrl.u32 %v525, 16
      %v597 = vrot.slane %v595, 3
      %v598 = vshll.u32 %v525, 16
      %v600 = vrot.slane %v598, 4
      %v601 = vor.u32 %v597, %v600
      %v602 = vsel %vm540, %v592, %v601
      %v604 = vshrl.u32 %v526, 16
      %v606 = vrot.slane %v604, 3
      %v607 = vshll.u32 %v526, 16
      %v609 = vrot.slane %v607, 4
      %v610 = vor.u32 %v606, %v609
      %v611 = vsel %vm540, %v601, %v610
      %v613 = vshrl.u32 %v527, 16
      %v615 = vrot.slane %v613, 3
      %v616 = vshll.u32 %v527, 16
      %v618 = vrot.slane %v616, 4
      %v619 = vor.u32 %v615, %v618
      %v620 = vsel %vm540, %v610, %v619
      %v622 = vshrl.u32 %v528, 16
      %v624 = vrot.slane %v622, 3
      %v625 = vshll.u32 %v528, 16
      %v627 = vrot.slane %v625, 4
      %v628 = vor.u32 %v624, %v627
      %v629 = vsel %vm540, %v619, %v628
      %v631 = vshrl.u32 %v529, 16
      %v633 = vrot.slane %v631, 3
      %v634 = vshll.u32 %v529, 16
      %v636 = vrot.slane %v634, 4
      %v637 = vor.u32 %v633, %v636
      %v638 = vsel %vm540, %v628, %v637
      %v640 = vshrl.u32 %v530, 16
      %v642 = vrot.slane %v640, 3
      %v643 = vshll.u32 %v530, 16
      %v645 = vrot.slane %v643, 4
      %v646 = vor.u32 %v642, %v645
      %v647 = vsel %vm540, %v637, %v646
      %v649 = vshrl.u32 %v531, 16
      %v651 = vrot.slane %v649, 3
      %v652 = vshll.u32 %v531, 16
      %v654 = vrot.slane %v652, 4
      %v655 = vor.u32 %v651, %v654
      %v656 = vsel %vm540, %v646, %v655
      %v658 = vshrl.u32 %v532, 16
      %v660 = vrot.slane %v658, 3
      %v661 = vshll.u32 %v532, 16
      %v663 = vrot.slane %v661, 4
      %v664 = vor.u32 %v660, %v663
      %v665 = vsel %vm540, %v655, %v664
      %v667 = vshrl.u32 %v533, 16
      %v669 = vrot.slane %v667, 3
      %v670 = vshll.u32 %v533, 16
      %v672 = vrot.slane %v670, 4
      %v673 = vor.u32 %v669, %v672
      %v674 = vsel %vm540, %v664, %v673
      %v676 = vshrl.u32 %v536, 16
      %v678 = vrot.slane %v676, 3
      %v679 = vshll.u32 %v536, 16
      %v681 = vrot.slane %v679, 4
      %v682 = vor.u32 %v678, %v681
      %v683 = vsel %vm540, %v673, %v682
      %v685 = vshrl.u32 %v537, 16
      %v687 = vrot.slane %v685, 3
      %v688 = vshll.u32 %v537, 16
      %v690 = vrot.slane %v688, 4
      %v691 = vor.u32 %v687, %v690
      %v692 = vsel %vm540, %v682, %v691
      %vm693 = vcmask 64512
      %v695 = vsel %vm693, %v557, 0
      %v698 = vsel %vm693, %v566, 0
      %v701 = vsel %vm693, %v575, 0
      %v704 = vsel %vm693, %v584, 0
      %v707 = vsel %vm693, %v593, 0
      %v710 = vsel %vm693, %v602, 0
      %v713 = vsel %vm693, %v611, 0
      %v716 = vsel %vm693, %v620, 0
      %v719 = vsel %vm693, %v629, 0
      %v722 = vsel %vm693, %v638, 0
      %v725 = vsel %vm693, %v647, 0
      %v728 = vsel %vm693, %v656, 0
      %v731 = vsel %vm693, %v665, 0
      %v734 = vsel %vm693, %v674, 0
      %v737 = vsel %vm693, %v683, 0
      %v740 = vsel %vm693, %v692, 0
      %vm742 = vcmask 1043456
      %v744 = vsel %vm742, %v539, 0
      %746 = vmatprep.subr.bf16.mxu0 0
      %747 = vmatpush1.bf16.msra.mxu0 %v744
      %748 = vmatprep.subr.bf16.mxu0 0
      %749 = vmatpush1.bf16.msra.mxu0 0
      %750 = vmatprep.subr.bf16.mxu0 0
      %751 = vmatpush1.bf16.msra.mxu0 0
      %752 = vmatprep.subr.bf16.mxu0 0
      %753 = vmatpush1.bf16.msra.mxu0 0
      %754 = vmatprep.subr.bf16.mxu0 0
      %755 = vmatpush1.bf16.msra.mxu0 0
      %756 = vmatprep.subr.bf16.mxu0 0
      %757 = vmatpush1.bf16.msra.mxu0 0
      %758 = vmatprep.subr.bf16.mxu0 0
      %759 = vmatpush1.bf16.msra.mxu0 0
      %760 = vmatprep.subr.bf16.mxu0 0
      %761 = vmatpush1.bf16.msra.mxu0 0
      %762 = vmatprep.subr.bf16.mxu0 0
      %763 = vmatpush1.bf16.msra.mxu0 0
      %764 = vmatprep.subr.bf16.mxu0 0
      %765 = vmatpush1.bf16.msra.mxu0 0
      %766 = vmatprep.subr.bf16.mxu0 0
      %767 = vmatpush1.bf16.msra.mxu0 0
      %768 = vmatprep.subr.bf16.mxu0 0
      %769 = vmatpush1.bf16.msra.mxu0 0
      %770 = vmatprep.subr.bf16.mxu0 0
      %771 = vmatpush1.bf16.msra.mxu0 0
      %772 = vmatprep.subr.bf16.mxu0 0
      %773 = vmatpush1.bf16.msra.mxu0 0
      %774 = vmatprep.subr.bf16.mxu0 0
      %775 = vmatpush1.bf16.msra.mxu0 0
      %776 = vmatprep.subr.bf16.mxu0 0
      %777 = vmatpush1.bf16.msra.mxu0 0
      %778 = vmatprep.mubr.bf16.mxu0 0
      %779 = vmatmul.mubr.bf16.gmra.mrb[0].mxu0 %v695
      %v780 = vpop.f32.mrb[0].mxu0
      %v781 = vadd.f32 0.0, %v780
      %v782 = vpop.f32.mrb[0].mxu0
      %v783 = vpop.f32.mrb[0].mxu0
      %v784 = vadd.f32 0.0, %v783
      %v785 = vpop.f32.mrb[0].mxu0
      %786 = vmatprep.mubr.bf16.mxu0 0
      %787 = vmatmul.mubr.bf16.gmra.mrb[0].mxu0 %v698
      %v788 = vpop.f32.mrb[0].mxu0
      %v789 = vadd.f32 0.0, %v788
      %v790 = vpop.f32.mrb[0].mxu0
      %v791 = vpop.f32.mrb[0].mxu0
      %v792 = vadd.f32 0.0, %v791
      %v793 = vpop.f32.mrb[0].mxu0
      %794 = vmatprep.mubr.bf16.mxu0 0
      %795 = vmatmul.mubr.bf16.gmra.mrb[0].mxu0 %v701
      %v796 = vpop.f32.mrb[0].mxu0
      %v797 = vadd.f32 0.0, %v796
      %v798 = vpop.f32.mrb[0].mxu0
      %v799 = vpop.f32.mrb[0].mxu0
      %v800 = vadd.f32 0.0, %v799
      %v801 = vpop.f32.mrb[0].mxu0
      %802 = vmatprep.mubr.bf16.mxu0 0
      %803 = vmatmul.mubr.bf16.gmra.mrb[0].mxu0 %v704
      %v804 = vpop.f32.mrb[0].mxu0
      %v805 = vadd.f32 0.0, %v804
      %v806 = vpop.f32.mrb[0].mxu0
      %v807 = vpop.f32.mrb[0].mxu0
      %v808 = vadd.f32 0.0, %v807
      %v809 = vpop.f32.mrb[0].mxu0
      %810 = vmatprep.mubr.bf16.mxu0 0
      %811 = vmatmul.mubr.bf16.gmra.mrb[0].mxu0 %v707
      %v812 = vpop.f32.mrb[0].mxu0
      %v813 = vadd.f32 0.0, %v812
      %v814 = vpop.f32.mrb[0].mxu0
      %v815 = vpop.f32.mrb[0].mxu0
      %v816 = vadd.f32 0.0, %v815
      %v817 = vpop.f32.mrb[0].mxu0
      %818 = vmatprep.mubr.bf16.mxu0 0
      %819 = vmatmul.mubr.bf16.gmra.mrb[0].mxu0 %v710
      %v820 = vpop.f32.mrb[0].mxu0
      %v821 = vadd.f32 0.0, %v820
      %v822 = vpop.f32.mrb[0].mxu0
      %v823 = vpop.f32.mrb[0].mxu0
      %v824 = vadd.f32 0.0, %v823
      %v825 = vpop.f32.mrb[0].mxu0
      %826 = vmatprep.mubr.bf16.mxu0 0
      %827 = vmatmul.mubr.bf16.gmra.mrb[0].mxu0 %v713
      %v828 = vpop.f32.mrb[0].mxu0
      %v829 = vadd.f32 0.0, %v828
      %v830 = vpop.f32.mrb[0].mxu0
      %v831 = vpop.f32.mrb[0].mxu0
      %v832 = vadd.f32 0.0, %v831
      %v833 = vpop.f32.mrb[0].mxu0
      %834 = vmatprep.mubr.bf16.mxu0 0
      %835 = vmatmul.mubr.bf16.gmra.mrb[0].mxu0 %v716
      %v836 = vpop.f32.mrb[0].mxu0
      %v837 = vadd.f32 0.0, %v836
      %v838 = vpop.f32.mrb[0].mxu0
      %v839 = vpop.f32.mrb[0].mxu0
      %v840 = vadd.f32 0.0, %v839
      %v841 = vpop.f32.mrb[0].mxu0
      %842 = vmatprep.mubr.bf16.mxu0 0
      %843 = vmatmul.mubr.bf16.gmra.mrb[0].mxu0 %v719
      %v844 = vpop.f32.mrb[0].mxu0
      %v845 = vadd.f32 0.0, %v844
      %v846 = vpop.f32.mrb[0].mxu0
      %v847 = vpop.f32.mrb[0].mxu0
      %v848 = vadd.f32 0.0, %v847
      %v849 = vpop.f32.mrb[0].mxu0
      %850 = vmatprep.mubr.bf16.mxu0 0
      %851 = vmatmul.mubr.bf16.gmra.mrb[0].mxu0 %v722
      %v852 = vpop.f32.mrb[0].mxu0
      %v853 = vadd.f32 0.0, %v852
      %v854 = vpop.f32.mrb[0].mxu0
      %v855 = vpop.f32.mrb[0].mxu0
      %v856 = vadd.f32 0.0, %v855
      %v857 = vpop.f32.mrb[0].mxu0
      %858 = vmatprep.mubr.bf16.mxu0 0
      %859 = vmatmul.mubr.bf16.gmra.mrb[0].mxu0 %v725
      %v860 = vpop.f32.mrb[0].mxu0
      %v861 = vadd.f32 0.0, %v860
      %v862 = vpop.f32.mrb[0].mxu0
      %v863 = vpop.f32.mrb[0].mxu0
      %v864 = vadd.f32 0.0, %v863
      %v865 = vpop.f32.mrb[0].mxu0
      %866 = vmatprep.mubr.bf16.mxu0 0
      %867 = vmatmul.mubr.bf16.gmra.mrb[0].mxu0 %v728
      %v868 = vpop.f32.mrb[0].mxu0
      %v869 = vadd.f32 0.0, %v868
      %v870 = vpop.f32.mrb[0].mxu0
      %v871 = vpop.f32.mrb[0].mxu0
      %v872 = vadd.f32 0.0, %v871
      %v873 = vpop.f32.mrb[0].mxu0
      %874 = vmatprep.mubr.bf16.mxu0 0
      %875 = vmatmul.mubr.bf16.gmra.mrb[0].mxu0 %v731
      %v876 = vpop.f32.mrb[0].mxu0
      %v877 = vadd.f32 0.0, %v876
      %v878 = vpop.f32.mrb[0].mxu0
      %v879 = vpop.f32.mrb[0].mxu0
      %v880 = vadd.f32 0.0, %v879
      %v881 = vpop.f32.mrb[0].mxu0
      %882 = vmatprep.mubr.bf16.mxu0 0
      %883 = vmatmul.mubr.bf16.gmra.mrb[0].mxu0 %v734
      %v884 = vpop.f32.mrb[0].mxu0
      %v885 = vadd.f32 0.0, %v884
      %v886 = vpop.f32.mrb[0].mxu0
      %v887 = vpop.f32.mrb[0].mxu0
      %v888 = vadd.f32 0.0, %v887
      %v889 = vpop.f32.mrb[0].mxu0
      %890 = vmatprep.mubr.bf16.mxu0 0
      %891 = vmatmul.mubr.bf16.gmra.mrb[0].mxu0 %v737
      %v892 = vpop.f32.mrb[0].mxu0
      %v893 = vadd.f32 0.0, %v892
      %v894 = vpop.f32.mrb[0].mxu0
      %v895 = vpop.f32.mrb[0].mxu0
      %v896 = vadd.f32 0.0, %v895
      %v897 = vpop.f32.mrb[0].mxu0
      %898 = vmatprep.mubr.bf16.mxu0 0
      %899 = vmatmul.mubr.bf16.gmra.mrb[0].mxu0 %v740
      %v900 = vpop.f32.mrb[0].mxu0
      %v901 = vadd.f32 0.0, %v900
      %v902 = vpop.f32.mrb[0].mxu0
      %v903 = vpop.f32.mrb[0].mxu0
      %v904 = vadd.f32 0.0, %v903
      %v905 = vpop.f32.mrb[0].mxu0
      %906 = vdwg.mxu0
      %v908 = vshrl.u32 %v518, 16
      %v910 = vrot.slane %v908, 3
      %v911 = vshll.u32 %v518, 16
      %v913 = vrot.slane %v911, 4
      %v914 = vor.u32 %v910, %v913
      %v915 = vsel %vm540, %v914, %v548
      %v917 = vshrl.u32 %v534, 16
      %v919 = vrot.slane %v917, 3
      %v920 = vshll.u32 %v534, 16
      %v922 = vrot.slane %v920, 4
      %v923 = vor.u32 %v919, %v922
      %v924 = vsel %vm540, %v673, %v923
      %v926 = vsel %vm693, %v915, 0
      %v929 = vsel %vm693, %v924, 0
      %v932 = vsel %vm742, %v535, 0
      %934 = vmatprep.subr.bf16.mxu0 0
      %935 = vmatpush1.bf16.msra.mxu0 %v932
      %936 = vmatprep.subr.bf16.mxu0 0
      %937 = vmatpush1.bf16.msra.mxu0 0
      %938 = vmatprep.subr.bf16.mxu0 0
      %939 = vmatpush1.bf16.msra.mxu0 0
      %940 = vmatprep.subr.bf16.mxu0 0
      %941 = vmatpush1.bf16.msra.mxu0 0
      %942 = vmatprep.subr.bf16.mxu0 0
      %943 = vmatpush1.bf16.msra.mxu0 0
      %944 = vmatprep.subr.bf16.mxu0 0
      %945 = vmatpush1.bf16.msra.mxu0 0
      %946 = vmatprep.subr.bf16.mxu0 0
      %947 = vmatpush1.bf16.msra.mxu0 0
      %948 = vmatprep.subr.bf16.mxu0 0
      %949 = vmatpush1.bf16.msra.mxu0 0
      %950 = vmatprep.subr.bf16.mxu0 0
      %951 = vmatpush1.bf16.msra.mxu0 0
      %952 = vmatprep.subr.bf16.mxu0 0
      %953 = vmatpush1.bf16.msra.mxu0 0
      %954 = vmatprep.subr.bf16.mxu0 0
      %955 = vmatpush1.bf16.msra.mxu0 0
      %956 = vmatprep.subr.bf16.mxu0 0
      %957 = vmatpush1.bf16.msra.mxu0 0
      %958 = vmatprep.subr.bf16.mxu0 0
      %959 = vmatpush1.bf16.msra.mxu0 0
      %960 = vmatprep.subr.bf16.mxu0 0
      %961 = vmatpush1.bf16.msra.mxu0 0
      %962 = vmatprep.subr.bf16.mxu0 0
      %963 = vmatpush1.bf16.msra.mxu0 0
      %964 = vmatprep.subr.bf16.mxu0 0
      %965 = vmatpush1.bf16.msra.mxu0 0
      %966 = vmatprep.mubr.bf16.mxu0 0
      %967 = vmatmul.mubr.bf16.gmra.mrb[0].mxu0 %v926
      %v968 = vpop.f32.mrb[0].mxu0
      %v969 = vadd.f32 %v781, %v968
      %v970 = vpop.f32.mrb[0].mxu0
      %v971 = vpop.f32.mrb[0].mxu0
      %v972 = vadd.f32 %v784, %v971
      %v973 = vpop.f32.mrb[0].mxu0
      %974 = vmatprep.mubr.bf16.mxu0 0
      %975 = vmatmul.mubr.bf16.gmra.mrb[0].mxu0 %v695
      %v976 = vpop.f32.mrb[0].mxu0
      %v977 = vadd.f32 %v789, %v976
      %v978 = vpop.f32.mrb[0].mxu0
      %v979 = vpop.f32.mrb[0].mxu0
      %v980 = vadd.f32 %v792, %v979
      %v981 = vpop.f32.mrb[0].mxu0
      %982 = vmatprep.mubr.bf16.mxu0 0
      %983 = vmatmul.mubr.bf16.gmra.mrb[0].mxu0 %v698
      %v984 = vpop.f32.mrb[0].mxu0
      %v985 = vadd.f32 %v797, %v984
      %v986 = vpop.f32.mrb[0].mxu0
      %v987 = vpop.f32.mrb[0].mxu0
      %v988 = vadd.f32 %v800, %v987
      %v989 = vpop.f32.mrb[0].mxu0
      %990 = vmatprep.mubr.bf16.mxu0 0
      %991 = vmatmul.mubr.bf16.gmra.mrb[0].mxu0 %v701
      %v992 = vpop.f32.mrb[0].mxu0
      %v993 = vadd.f32 %v805, %v992
      %v994 = vpop.f32.mrb[0].mxu0
      %v995 = vpop.f32.mrb[0].mxu0
      %v996 = vadd.f32 %v808, %v995
      %v997 = vpop.f32.mrb[0].mxu0
      %998 = vmatprep.mubr.bf16.mxu0 0
      %999 = vmatmul.mubr.bf16.gmra.mrb[0].mxu0 %v704
      %v1000 = vpop.f32.mrb[0].mxu0
      %v1001 = vadd.f32 %v813, %v1000
      %v1002 = vpop.f32.mrb[0].mxu0
      %v1003 = vpop.f32.mrb[0].mxu0
      %v1004 = vadd.f32 %v816, %v1003
      %v1005 = vpop.f32.mrb[0].mxu0
      %1006 = vmatprep.mubr.bf16.mxu0 0
      %1007 = vmatmul.mubr.bf16.gmra.mrb[0].mxu0 %v707
      %v1008 = vpop.f32.mrb[0].mxu0
      %v1009 = vadd.f32 %v821, %v1008
      %v1010 = vpop.f32.mrb[0].mxu0
      %v1011 = vpop.f32.mrb[0].mxu0
      %v1012 = vadd.f32 %v824, %v1011
      %v1013 = vpop.f32.mrb[0].mxu0
      %1014 = vmatprep.mubr.bf16.mxu0 0
      %1015 = vmatmul.mubr.bf16.gmra.mrb[0].mxu0 %v710
      %v1016 = vpop.f32.mrb[0].mxu0
      %v1017 = vadd.f32 %v829, %v1016
      %v1018 = vpop.f32.mrb[0].mxu0
      %v1019 = vpop.f32.mrb[0].mxu0
      %v1020 = vadd.f32 %v832, %v1019
      %v1021 = vpop.f32.mrb[0].mxu0
      %1022 = vmatprep.mubr.bf16.mxu0 0
      %1023 = vmatmul.mubr.bf16.gmra.mrb[0].mxu0 %v713
      %v1024 = vpop.f32.mrb[0].mxu0
      %v1025 = vadd.f32 %v837, %v1024
      %v1026 = vpop.f32.mrb[0].mxu0
      %v1027 = vpop.f32.mrb[0].mxu0
      %v1028 = vadd.f32 %v840, %v1027
      %v1029 = vpop.f32.mrb[0].mxu0
      %1030 = vmatprep.mubr.bf16.mxu0 0
      %1031 = vmatmul.mubr.bf16.gmra.mrb[0].mxu0 %v716
      %v1032 = vpop.f32.mrb[0].mxu0
      %v1033 = vadd.f32 %v845, %v1032
      %v1034 = vpop.f32.mrb[0].mxu0
      %v1035 = vpop.f32.mrb[0].mxu0
      %v1036 = vadd.f32 %v848, %v1035
      %v1037 = vpop.f32.mrb[0].mxu0
      %1038 = vmatprep.mubr.bf16.mxu0 0
      %1039 = vmatmul.mubr.bf16.gmra.mrb[0].mxu0 %v719
      %v1040 = vpop.f32.mrb[0].mxu0
      %v1041 = vadd.f32 %v853, %v1040
      %v1042 = vpop.f32.mrb[0].mxu0
      %v1043 = vpop.f32.mrb[0].mxu0
      %v1044 = vadd.f32 %v856, %v1043
      %v1045 = vpop.f32.mrb[0].mxu0
      %1046 = vmatprep.mubr.bf16.mxu0 0
      %1047 = vmatmul.mubr.bf16.gmra.mrb[0].mxu0 %v722
      %v1048 = vpop.f32.mrb[0].mxu0
      %v1049 = vadd.f32 %v861, %v1048
      %v1050 = vpop.f32.mrb[0].mxu0
      %v1051 = vpop.f32.mrb[0].mxu0
      %v1052 = vadd.f32 %v864, %v1051
      %v1053 = vpop.f32.mrb[0].mxu0
      %1054 = vmatprep.mubr.bf16.mxu0 0
      %1055 = vmatmul.mubr.bf16.gmra.mrb[0].mxu0 %v725
      %v1056 = vpop.f32.mrb[0].mxu0
      %v1057 = vadd.f32 %v869, %v1056
      %v1058 = vpop.f32.mrb[0].mxu0
      %v1059 = vpop.f32.mrb[0].mxu0
      %v1060 = vadd.f32 %v872, %v1059
      %v1061 = vpop.f32.mrb[0].mxu0
      %1062 = vmatprep.mubr.bf16.mxu0 0
      %1063 = vmatmul.mubr.bf16.gmra.mrb[0].mxu0 %v728
      %v1064 = vpop.f32.mrb[0].mxu0
      %v1065 = vadd.f32 %v877, %v1064
      %v1066 = vpop.f32.mrb[0].mxu0
      %v1067 = vpop.f32.mrb[0].mxu0
      %v1068 = vadd.f32 %v880, %v1067
      %v1069 = vpop.f32.mrb[0].mxu0
      %1070 = vmatprep.mubr.bf16.mxu0 0
      %1071 = vmatmul.mubr.bf16.gmra.mrb[0].mxu0 %v731
      %v1072 = vpop.f32.mrb[0].mxu0
      %v1073 = vadd.f32 %v885, %v1072
      %v1074 = vpop.f32.mrb[0].mxu0
      %v1075 = vpop.f32.mrb[0].mxu0
      %v1076 = vadd.f32 %v888, %v1075
      %v1077 = vpop.f32.mrb[0].mxu0
      %1078 = vmatprep.mubr.bf16.mxu0 0
      %1079 = vmatmul.mubr.bf16.gmra.mrb[0].mxu0 %v734
      %v1080 = vpop.f32.mrb[0].mxu0
      %v1081 = vadd.f32 %v893, %v1080
      %v1082 = vpop.f32.mrb[0].mxu0
      %v1083 = vpop.f32.mrb[0].mxu0
      %v1084 = vadd.f32 %v896, %v1083
      %v1085 = vpop.f32.mrb[0].mxu0
      %1086 = vmatprep.mubr.bf16.mxu0 0
      %1087 = vmatmul.mubr.bf16.gmra.mrb[0].mxu0 %v929
      %v1088 = vpop.f32.mrb[0].mxu0
      %v1089 = vadd.f32 %v901, %v1088
      %v1090 = vpop.f32.mrb[0].mxu0
      %v1091 = vpop.f32.mrb[0].mxu0
      %v1092 = vadd.f32 %v904, %v1091
      %v1093 = vpop.f32.mrb[0].mxu0
      %1094 = vdwg.mxu0
      %v1095 = vpack.c.bf16 %v515, %v514
      %v1096 = vpack.c.bf16 %v516, %v516
      %s1097 = scalar_lea.vmem %s3, 24
      %v1098 = vld [vmem:[%s1097] sm:$0xf]
      %v1100 = vshrl.u32 %v1095, 16
      %v1102 = vrot.slane %v1100, 3
      %v1103 = vshll.u32 %v1095, 16
      %v1105 = vrot.slane %v1103, 4
      %v1106 = vor.u32 %v1102, %v1105
      %v1107 = vsel %vm540, %v682, %v1106
      %v1109 = vshrl.u32 %v1096, 16
      %v1111 = vrot.slane %v1109, 3
      %v1112 = vshll.u32 %v1096, 16
      %v1114 = vrot.slane %v1112, 4
      %v1115 = vor.u32 %v1111, %v1114
      %v1116 = vsel %vm540, %v1106, %v1115
      %v1118 = vsel %vm693, %v1107, 0
      %v1121 = vsel %vm693, %v1116, 0
      %v1124 = vsel %vm742, %v1098, 0
      %1126 = vmatprep.subr.bf16.mxu0 0
      %1127 = vmatpush1.bf16.msra.mxu0 %v1124
      %1128 = vmatprep.subr.bf16.mxu0 0
      %1129 = vmatpush1.bf16.msra.mxu0 0
      %1130 = vmatprep.subr.bf16.mxu0 0
      %1131 = vmatpush1.bf16.msra.mxu0 0
      %1132 = vmatprep.subr.bf16.mxu0 0
      %1133 = vmatpush1.bf16.msra.mxu0 0
      %1134 = vmatprep.subr.bf16.mxu0 0
      %1135 = vmatpush1.bf16.msra.mxu0 0
      %1136 = vmatprep.subr.bf16.mxu0 0
      %1137 = vmatpush1.bf16.msra.mxu0 0
      %1138 = vmatprep.subr.bf16.mxu0 0
      %1139 = vmatpush1.bf16.msra.mxu0 0
      %1140 = vmatprep.subr.bf16.mxu0 0
      %1141 = vmatpush1.bf16.msra.mxu0 0
      %1142 = vmatprep.subr.bf16.mxu0 0
      %1143 = vmatpush1.bf16.msra.mxu0 0
      %1144 = vmatprep.subr.bf16.mxu0 0
      %1145 = vmatpush1.bf16.msra.mxu0 0
      %1146 = vmatprep.subr.bf16.mxu0 0
      %1147 = vmatpush1.bf16.msra.mxu0 0
      %1148 = vmatprep.subr.bf16.mxu0 0
      %1149 = vmatpush1.bf16.msra.mxu0 0
      %1150 = vmatprep.subr.bf16.mxu0 0
      %1151 = vmatpush1.bf16.msra.mxu0 0
      %1152 = vmatprep.subr.bf16.mxu0 0
      %1153 = vmatpush1.bf16.msra.mxu0 0
      %1154 = vmatprep.subr.bf16.mxu0 0
      %1155 = vmatpush1.bf16.msra.mxu0 0
      %1156 = vmatprep.subr.bf16.mxu0 0
      %1157 = vmatpush1.bf16.msra.mxu0 0
      %1158 = vmatprep.mubr.bf16.mxu0 0
      %1159 = vmatmul.mubr.bf16.gmra.mrb[0].mxu0 %v698
      %v1160 = vpop.f32.mrb[0].mxu0
      %v1161 = vadd.f32 0.0, %v1160
      %v1162 = vpop.f32.mrb[0].mxu0
      %v1163 = vpop.f32.mrb[0].mxu0
      %v1164 = vadd.f32 0.0, %v1163
      %v1165 = vpop.f32.mrb[0].mxu0
      %1166 = vmatprep.mubr.bf16.mxu0 0
      %1167 = vmatmul.mubr.bf16.gmra.mrb[0].mxu0 %v701
      %v1168 = vpop.f32.mrb[0].mxu0
      %v1169 = vadd.f32 0.0, %v1168
      %v1170 = vpop.f32.mrb[0].mxu0
      %v1171 = vpop.f32.mrb[0].mxu0
      %v1172 = vadd.f32 0.0, %v1171
      %v1173 = vpop.f32.mrb[0].mxu0
      %1174 = vmatprep.mubr.bf16.mxu0 0
      %1175 = vmatmul.mubr.bf16.gmra.mrb[0].mxu0 %v704
      %v1176 = vpop.f32.mrb[0].mxu0
      %v1177 = vadd.f32 0.0, %v1176
      %v1178 = vpop.f32.mrb[0].mxu0
      %v1179 = vpop.f32.mrb[0].mxu0
      %v1180 = vadd.f32 0.0, %v1179
      %v1181 = vpop.f32.mrb[0].mxu0
      %1182 = vmatprep.mubr.bf16.mxu0 0
      %1183 = vmatmul.mubr.bf16.gmra.mrb[0].mxu0 %v707
      %v1184 = vpop.f32.mrb[0].mxu0
      %v1185 = vadd.f32 0.0, %v1184
      %v1186 = vpop.f32.mrb[0].mxu0
      %v1187 = vpop.f32.mrb[0].mxu0
      %v1188 = vadd.f32 0.0, %v1187
      %v1189 = vpop.f32.mrb[0].mxu0
      %1190 = vmatprep.mubr.bf16.mxu0 0
      %1191 = vmatmul.mubr.bf16.gmra.mrb[0].mxu0 %v710
      %v1192 = vpop.f32.mrb[0].mxu0
      %v1193 = vadd.f32 0.0, %v1192
      %v1194 = vpop.f32.mrb[0].mxu0
      %v1195 = vpop.f32.mrb[0].mxu0
      %v1196 = vadd.f32 0.0, %v1195
      %v1197 = vpop.f32.mrb[0].mxu0
      %1198 = vmatprep.mubr.bf16.mxu0 0
      %1199 = vmatmul.mubr.bf16.gmra.mrb[0].mxu0 %v713
      %v1200 = vpop.f32.mrb[0].mxu0
      %v1201 = vadd.f32 0.0, %v1200
      %v1202 = vpop.f32.mrb[0].mxu0
      %v1203 = vpop.f32.mrb[0].mxu0
      %v1204 = vadd.f32 0.0, %v1203
      %v1205 = vpop.f32.mrb[0].mxu0
      %1206 = vmatprep.mubr.bf16.mxu0 0
      %1207 = vmatmul.mubr.bf16.gmra.mrb[0].mxu0 %v716
      %v1208 = vpop.f32.mrb[0].mxu0
      %v1209 = vadd.f32 0.0, %v1208
      %v1210 = vpop.f32.mrb[0].mxu0
      %v1211 = vpop.f32.mrb[0].mxu0
      %v1212 = vadd.f32 0.0, %v1211
      %v1213 = vpop.f32.mrb[0].mxu0
      %1214 = vmatprep.mubr.bf16.mxu0 0
      %1215 = vmatmul.mubr.bf16.gmra.mrb[0].mxu0 %v719
      %v1216 = vpop.f32.mrb[0].mxu0
      %v1217 = vadd.f32 0.0, %v1216
      %v1218 = vpop.f32.mrb[0].mxu0
      %v1219 = vpop.f32.mrb[0].mxu0
      %v1220 = vadd.f32 0.0, %v1219
      %v1221 = vpop.f32.mrb[0].mxu0
      %1222 = vmatprep.mubr.bf16.mxu0 0
      %1223 = vmatmul.mubr.bf16.gmra.mrb[0].mxu0 %v722
      %v1224 = vpop.f32.mrb[0].mxu0
      %v1225 = vadd.f32 0.0, %v1224
      %v1226 = vpop.f32.mrb[0].mxu0
      %v1227 = vpop.f32.mrb[0].mxu0
      %v1228 = vadd.f32 0.0, %v1227
      %v1229 = vpop.f32.mrb[0].mxu0
      %1230 = vmatprep.mubr.bf16.mxu0 0
      %1231 = vmatmul.mubr.bf16.gmra.mrb[0].mxu0 %v725
      %v1232 = vpop.f32.mrb[0].mxu0
      %v1233 = vadd.f32 0.0, %v1232
      %v1234 = vpop.f32.mrb[0].mxu0
      %v1235 = vpop.f32.mrb[0].mxu0
      %v1236 = vadd.f32 0.0, %v1235
      %v1237 = vpop.f32.mrb[0].mxu0
      %1238 = vmatprep.mubr.bf16.mxu0 0
      %1239 = vmatmul.mubr.bf16.gmra.mrb[0].mxu0 %v728
      %v1240 = vpop.f32.mrb[0].mxu0
      %v1241 = vadd.f32 0.0, %v1240
      %v1242 = vpop.f32.mrb[0].mxu0
      %v1243 = vpop.f32.mrb[0].mxu0
      %v1244 = vadd.f32 0.0, %v1243
      %v1245 = vpop.f32.mrb[0].mxu0
      %1246 = vmatprep.mubr.bf16.mxu0 0
      %1247 = vmatmul.mubr.bf16.gmra.mrb[0].mxu0 %v731
      %v1248 = vpop.f32.mrb[0].mxu0
      %v1249 = vadd.f32 0.0, %v1248
      %v1250 = vpop.f32.mrb[0].mxu0
      %v1251 = vpop.f32.mrb[0].mxu0
      %v1252 = vadd.f32 0.0, %v1251
      %v1253 = vpop.f32.mrb[0].mxu0
      %1254 = vmatprep.mubr.bf16.mxu0 0
      %1255 = vmatmul.mubr.bf16.gmra.mrb[0].mxu0 %v734
      %v1256 = vpop.f32.mrb[0].mxu0
      %v1257 = vadd.f32 0.0, %v1256
      %v1258 = vpop.f32.mrb[0].mxu0
      %v1259 = vpop.f32.mrb[0].mxu0
      %v1260 = vadd.f32 0.0, %v1259
      %v1261 = vpop.f32.mrb[0].mxu0
      %1262 = vmatprep.mubr.bf16.mxu0 0
      %1263 = vmatmul.mubr.bf16.gmra.mrb[0].mxu0 %v737
      %v1264 = vpop.f32.mrb[0].mxu0
      %v1265 = vadd.f32 0.0, %v1264
      %v1266 = vpop.f32.mrb[0].mxu0
      %v1267 = vpop.f32.mrb[0].mxu0
      %v1268 = vadd.f32 0.0, %v1267
      %v1269 = vpop.f32.mrb[0].mxu0
      %1270 = vmatprep.mubr.bf16.mxu0 0
      %1271 = vmatmul.mubr.bf16.gmra.mrb[0].mxu0 %v1118
      %v1272 = vpop.f32.mrb[0].mxu0
      %v1273 = vadd.f32 0.0, %v1272
      %v1274 = vpop.f32.mrb[0].mxu0
      %v1275 = vpop.f32.mrb[0].mxu0
      %v1276 = vadd.f32 0.0, %v1275
      %v1277 = vpop.f32.mrb[0].mxu0
      %1278 = vmatprep.mubr.bf16.mxu0 0
      %1279 = vmatmul.mubr.bf16.gmra.mrb[0].mxu0 %v1121
      %v1280 = vpop.f32.mrb[0].mxu0
      %v1281 = vadd.f32 0.0, %v1280
      %v1282 = vpop.f32.mrb[0].mxu0
      %v1283 = vpop.f32.mrb[0].mxu0
      %v1284 = vadd.f32 0.0, %v1283
      %v1285 = vpop.f32.mrb[0].mxu0
      %1286 = vdwg.mxu0
      %v1287 = vadd.f32 %v969, %v1161
      %v1288 = vadd.f32 %v972, %v1164
      %v1289 = vadd.f32 %v977, %v1169
      %v1290 = vadd.f32 %v980, %v1172
      %v1291 = vadd.f32 %v985, %v1177
      %v1292 = vadd.f32 %v988, %v1180
      %v1293 = vadd.f32 %v993, %v1185
      %v1294 = vadd.f32 %v996, %v1188
      %v1295 = vadd.f32 %v1001, %v1193
      %v1296 = vadd.f32 %v1004, %v1196
      %v1297 = vadd.f32 %v1009, %v1201
      %v1298 = vadd.f32 %v1012, %v1204
      %v1299 = vadd.f32 %v1017, %v1209
      %v1300 = vadd.f32 %v1020, %v1212
      %v1301 = vadd.f32 %v1025, %v1217
      %v1302 = vadd.f32 %v1028, %v1220
      %v1303 = vadd.f32 %v1033, %v1225
      %v1304 = vadd.f32 %v1036, %v1228
      %v1305 = vadd.f32 %v1041, %v1233
      %v1306 = vadd.f32 %v1044, %v1236
      %v1307 = vadd.f32 %v1049, %v1241
      %v1308 = vadd.f32 %v1052, %v1244
      %v1309 = vadd.f32 %v1057, %v1249
      %v1310 = vadd.f32 %v1060, %v1252
      %v1311 = vadd.f32 %v1065, %v1257
      %v1312 = vadd.f32 %v1068, %v1260
      %v1313 = vadd.f32 %v1073, %v1265
      %v1314 = vadd.f32 %v1076, %v1268
      %v1315 = vadd.f32 %v1081, %v1273
      %v1316 = vadd.f32 %v1084, %v1276
      %v1317 = vadd.f32 %v1089, %v1281
      %v1318 = vadd.f32 %v1092, %v1284
      %1320 = vset.pattern.permute.xlu0 0
      %1321 = vperm.xlu0 %1320, %v334
      %v1322 = vpop.permute.xlu0 %1321
      %1325 = vset.pattern.permute.xlu0 0
      %1326 = vperm.xlu0 %1325, %v335
      %v1327 = vpop.permute.xlu0 %1326
      %1330 = vset.pattern.permute.xlu0 0
      %1331 = vperm.xlu0 %1330, %v336
      %v1332 = vpop.permute.xlu0 %1331
      %1335 = vset.pattern.permute.xlu0 0
      %1336 = vperm.xlu0 %1335, %v337
      %v1337 = vpop.permute.xlu0 %1336
      %1340 = vset.pattern.permute.xlu0 0
      %1341 = vperm.xlu0 %1340, %v338
      %v1342 = vpop.permute.xlu0 %1341
      %1345 = vset.pattern.permute.xlu0 0
      %1346 = vperm.xlu0 %1345, %v339
      %v1347 = vpop.permute.xlu0 %1346
      %1350 = vset.pattern.permute.xlu0 0
      %1351 = vperm.xlu0 %1350, %v340
      %v1352 = vpop.permute.xlu0 %1351
      %1355 = vset.pattern.permute.xlu0 0
      %1356 = vperm.xlu0 %1355, %v341
      %v1357 = vpop.permute.xlu0 %1356
      %1360 = vset.pattern.permute.xlu0 0
      %1361 = vperm.xlu0 %1360, %v342
      %v1362 = vpop.permute.xlu0 %1361
      %1365 = vset.pattern.permute.xlu0 0
      %1366 = vperm.xlu0 %1365, %v343
      %v1367 = vpop.permute.xlu0 %1366
      %1370 = vset.pattern.permute.xlu0 0
      %1371 = vperm.xlu0 %1370, %v344
      %v1372 = vpop.permute.xlu0 %1371
      %1375 = vset.pattern.permute.xlu0 0
      %1376 = vperm.xlu0 %1375, %v345
      %v1377 = vpop.permute.xlu0 %1376
      %1380 = vset.pattern.permute.xlu0 0
      %1381 = vperm.xlu0 %1380, %v346
      %v1382 = vpop.permute.xlu0 %1381
      %1385 = vset.pattern.permute.xlu0 0
      %1386 = vperm.xlu0 %1385, %v347
      %v1387 = vpop.permute.xlu0 %1386
      %1390 = vset.pattern.permute.xlu0 0
      %1391 = vperm.xlu0 %1390, %v348
      %v1392 = vpop.permute.xlu0 %1391
      %1395 = vset.pattern.permute.xlu0 0
      %1396 = vperm.xlu0 %1395, %v349
      %v1397 = vpop.permute.xlu0 %1396
      %1400 = vset.pattern.permute.xlu0 0
      %1401 = vperm.xlu0 %1400, %v350
      %v1402 = vpop.permute.xlu0 %1401
      %1405 = vset.pattern.permute.xlu0 0
      %1406 = vperm.xlu0 %1405, %v351
      %v1407 = vpop.permute.xlu0 %1406
      %1410 = vset.pattern.permute.xlu0 0
      %1411 = vperm.xlu0 %1410, %v352
      %v1412 = vpop.permute.xlu0 %1411
      %1415 = vset.pattern.permute.xlu0 0
      %1416 = vperm.xlu0 %1415, %v353
      %v1417 = vpop.permute.xlu0 %1416
      %1420 = vset.pattern.permute.xlu0 0
      %1421 = vperm.xlu0 %1420, %v354
      %v1422 = vpop.permute.xlu0 %1421
      %1425 = vset.pattern.permute.xlu0 0
      %1426 = vperm.xlu0 %1425, %v355
      %v1427 = vpop.permute.xlu0 %1426
      %1430 = vset.pattern.permute.xlu0 0
      %1431 = vperm.xlu0 %1430, %v356
      %v1432 = vpop.permute.xlu0 %1431
      %1435 = vset.pattern.permute.xlu0 0
      %1436 = vperm.xlu0 %1435, %v357
      %v1437 = vpop.permute.xlu0 %1436
      %1440 = vset.pattern.permute.xlu0 0
      %1441 = vperm.xlu0 %1440, %v358
      %v1442 = vpop.permute.xlu0 %1441
      %1445 = vset.pattern.permute.xlu0 0
      %1446 = vperm.xlu0 %1445, %v359
      %v1447 = vpop.permute.xlu0 %1446
      %1450 = vset.pattern.permute.xlu0 0
      %1451 = vperm.xlu0 %1450, %v360
      %v1452 = vpop.permute.xlu0 %1451
      %1455 = vset.pattern.permute.xlu0 0
      %1456 = vperm.xlu0 %1455, %v361
      %v1457 = vpop.permute.xlu0 %1456
      %1460 = vset.pattern.permute.xlu0 0
      %1461 = vperm.xlu0 %1460, %v362
      %v1462 = vpop.permute.xlu0 %1461
      %1465 = vset.pattern.permute.xlu0 0
      %1466 = vperm.xlu0 %1465, %v363
      %v1467 = vpop.permute.xlu0 %1466
      %1470 = vset.pattern.permute.xlu0 0
      %1471 = vperm.xlu0 %1470, %v364
      %v1472 = vpop.permute.xlu0 %1471
      %1475 = vset.pattern.permute.xlu0 0
      %1476 = vperm.xlu0 %1475, %v365
      %v1477 = vpop.permute.xlu0 %1476
      %v1479 = vmul.f32 %v1287, %v1322
      %v1480 = vmul.f32 %v1288, %v1327
      %v1481 = vmul.f32 %v1289, %v1332
      %v1482 = vmul.f32 %v1290, %v1337
      %v1483 = vmul.f32 %v1291, %v1342
      %v1484 = vmul.f32 %v1292, %v1347
      %v1485 = vmul.f32 %v1293, %v1352
      %v1486 = vmul.f32 %v1294, %v1357
      %v1487 = vmul.f32 %v1295, %v1362
      %v1488 = vmul.f32 %v1296, %v1367
      %v1489 = vmul.f32 %v1297, %v1372
      %v1490 = vmul.f32 %v1298, %v1377
      %v1491 = vmul.f32 %v1299, %v1382
      %v1492 = vmul.f32 %v1300, %v1387
      %v1493 = vmul.f32 %v1301, %v1392
      %v1494 = vmul.f32 %v1302, %v1397
      %v1495 = vmul.f32 %v1303, %v1402
      %v1496 = vmul.f32 %v1304, %v1407
      %v1497 = vmul.f32 %v1305, %v1412
      %v1498 = vmul.f32 %v1306, %v1417
      %v1499 = vmul.f32 %v1307, %v1422
      %v1500 = vmul.f32 %v1308, %v1427
      %v1501 = vmul.f32 %v1309, %v1432
      %v1502 = vmul.f32 %v1310, %v1437
      %v1503 = vmul.f32 %v1311, %v1442
      %v1504 = vmul.f32 %v1312, %v1447
      %v1505 = vmul.f32 %v1313, %v1452
      %v1506 = vmul.f32 %v1314, %v1457
      %v1507 = vmul.f32 %v1315, %v1462
      %v1508 = vmul.f32 %v1316, %v1467
      %v1509 = vmul.f32 %v1317, %v1472
      %v1510 = vmul.f32 %v1318, %v1477
      %v1511 = vpack.c.bf16 %v482, %v481
      %v1512 = vpack.c.bf16 %v484, %v483
      %v1513 = vpack.c.bf16 %v486, %v485
      %v1514 = vpack.c.bf16 %v488, %v487
      %v1515 = vpack.c.bf16 %v490, %v489
      %v1516 = vpack.c.bf16 %v492, %v491
      %v1517 = vpack.c.bf16 %v494, %v493
      %v1518 = vpack.c.bf16 %v496, %v495
      %v1519 = vpack.c.bf16 %v498, %v497
      %v1520 = vpack.c.bf16 %v500, %v499
      %v1521 = vpack.c.bf16 %v502, %v501
      %v1522 = vpack.c.bf16 %v504, %v503
      %v1523 = vpack.c.bf16 %v506, %v505
      %v1524 = vpack.c.bf16 %v508, %v507
      %v1525 = vpack.c.bf16 %v510, %v509
      %v1526 = vpack.c.bf16 %v512, %v511
      %s1527 = scalar_lea.vmem %s3, 4
      %v1528 = vld [vmem:[%s1527] sm:$0xf]
      %v1529 = vpack.c.bf16 %v514, %v513
      %s1530 = scalar_lea.vmem %s3, 16
      %v1531 = vld [vmem:[%s1530] sm:$0xf]
      %v1533 = vsel %vm693, %v1512, 0
      %v1536 = vsel %vm693, %v1513, 0
      %v1539 = vsel %vm693, %v1514, 0
      %v1542 = vsel %vm693, %v1515, 0
      %v1545 = vsel %vm693, %v1516, 0
      %v1548 = vsel %vm693, %v1517, 0
      %v1551 = vsel %vm693, %v1518, 0
      %v1554 = vsel %vm693, %v1519, 0
      %v1557 = vsel %vm693, %v1520, 0
      %v1560 = vsel %vm693, %v1521, 0
      %v1563 = vsel %vm693, %v1522, 0
      %v1566 = vsel %vm693, %v1523, 0
      %v1569 = vsel %vm693, %v1524, 0
      %v1572 = vsel %vm693, %v1525, 0
      %v1575 = vsel %vm693, %v1526, 0
      %v1578 = vsel %vm693, %v1529, 0
      %v1581 = vsel %vm742, %v1531, 0
      %1583 = vmatprep.subr.bf16.mxu0 0
      %1584 = vmatpush1.bf16.msra.mxu0 %v1581
      %1585 = vmatprep.subr.bf16.mxu0 0
      %1586 = vmatpush1.bf16.msra.mxu0 0
      %1587 = vmatprep.subr.bf16.mxu0 0
      %1588 = vmatpush1.bf16.msra.mxu0 0
      %1589 = vmatprep.subr.bf16.mxu0 0
      %1590 = vmatpush1.bf16.msra.mxu0 0
      %1591 = vmatprep.subr.bf16.mxu0 0
      %1592 = vmatpush1.bf16.msra.mxu0 0
      %1593 = vmatprep.subr.bf16.mxu0 0
      %1594 = vmatpush1.bf16.msra.mxu0 0
      %1595 = vmatprep.subr.bf16.mxu0 0
      %1596 = vmatpush1.bf16.msra.mxu0 0
      %1597 = vmatprep.subr.bf16.mxu0 0
      %1598 = vmatpush1.bf16.msra.mxu0 0
      %1599 = vmatprep.subr.bf16.mxu0 0
      %1600 = vmatpush1.bf16.msra.mxu0 0
      %1601 = vmatprep.subr.bf16.mxu0 0
      %1602 = vmatpush1.bf16.msra.mxu0 0
      %1603 = vmatprep.subr.bf16.mxu0 0
      %1604 = vmatpush1.bf16.msra.mxu0 0
      %1605 = vmatprep.subr.bf16.mxu0 0
      %1606 = vmatpush1.bf16.msra.mxu0 0
      %1607 = vmatprep.subr.bf16.mxu0 0
      %1608 = vmatpush1.bf16.msra.mxu0 0
      %1609 = vmatprep.subr.bf16.mxu0 0
      %1610 = vmatpush1.bf16.msra.mxu0 0
      %1611 = vmatprep.subr.bf16.mxu0 0
      %1612 = vmatpush1.bf16.msra.mxu0 0
      %1613 = vmatprep.subr.bf16.mxu0 0
      %1614 = vmatpush1.bf16.msra.mxu0 0
      %1615 = vmatprep.mubr.bf16.mxu0 0
      %1616 = vmatmul.mubr.bf16.gmra.mrb[0].mxu0 %v1533
      %v1617 = vpop.f32.mrb[0].mxu0
      %v1618 = vadd.f32 0.0, %v1617
      %v1619 = vpop.f32.mrb[0].mxu0
      %v1620 = vpop.f32.mrb[0].mxu0
      %v1621 = vadd.f32 0.0, %v1620
      %v1622 = vpop.f32.mrb[0].mxu0
      %1623 = vmatprep.mubr.bf16.mxu0 0
      %1624 = vmatmul.mubr.bf16.gmra.mrb[0].mxu0 %v1536
      %v1625 = vpop.f32.mrb[0].mxu0
      %v1626 = vadd.f32 0.0, %v1625
      %v1627 = vpop.f32.mrb[0].mxu0
      %v1628 = vpop.f32.mrb[0].mxu0
      %v1629 = vadd.f32 0.0, %v1628
      %v1630 = vpop.f32.mrb[0].mxu0
      %1631 = vmatprep.mubr.bf16.mxu0 0
      %1632 = vmatmul.mubr.bf16.gmra.mrb[0].mxu0 %v1539
      %v1633 = vpop.f32.mrb[0].mxu0
      %v1634 = vadd.f32 0.0, %v1633
      %v1635 = vpop.f32.mrb[0].mxu0
      %v1636 = vpop.f32.mrb[0].mxu0
      %v1637 = vadd.f32 0.0, %v1636
      %v1638 = vpop.f32.mrb[0].mxu0
      %1639 = vmatprep.mubr.bf16.mxu0 0
      %1640 = vmatmul.mubr.bf16.gmra.mrb[0].mxu0 %v1542
      %v1641 = vpop.f32.mrb[0].mxu0
      %v1642 = vadd.f32 0.0, %v1641
      %v1643 = vpop.f32.mrb[0].mxu0
      %v1644 = vpop.f32.mrb[0].mxu0
      %v1645 = vadd.f32 0.0, %v1644
      %v1646 = vpop.f32.mrb[0].mxu0
      %1647 = vmatprep.mubr.bf16.mxu0 0
      %1648 = vmatmul.mubr.bf16.gmra.mrb[0].mxu0 %v1545
      %v1649 = vpop.f32.mrb[0].mxu0
      %v1650 = vadd.f32 0.0, %v1649
      %v1651 = vpop.f32.mrb[0].mxu0
      %v1652 = vpop.f32.mrb[0].mxu0
      %v1653 = vadd.f32 0.0, %v1652
      %v1654 = vpop.f32.mrb[0].mxu0
      %1655 = vmatprep.mubr.bf16.mxu0 0
      %1656 = vmatmul.mubr.bf16.gmra.mrb[0].mxu0 %v1548
      %v1657 = vpop.f32.mrb[0].mxu0
      %v1658 = vadd.f32 0.0, %v1657
      %v1659 = vpop.f32.mrb[0].mxu0
      %v1660 = vpop.f32.mrb[0].mxu0
      %v1661 = vadd.f32 0.0, %v1660
      %v1662 = vpop.f32.mrb[0].mxu0
      %1663 = vmatprep.mubr.bf16.mxu0 0
      %1664 = vmatmul.mubr.bf16.gmra.mrb[0].mxu0 %v1551
      %v1665 = vpop.f32.mrb[0].mxu0
      %v1666 = vadd.f32 0.0, %v1665
      %v1667 = vpop.f32.mrb[0].mxu0
      %v1668 = vpop.f32.mrb[0].mxu0
      %v1669 = vadd.f32 0.0, %v1668
      %v1670 = vpop.f32.mrb[0].mxu0
      %1671 = vmatprep.mubr.bf16.mxu0 0
      %1672 = vmatmul.mubr.bf16.gmra.mrb[0].mxu0 %v1554
      %v1673 = vpop.f32.mrb[0].mxu0
      %v1674 = vadd.f32 0.0, %v1673
      %v1675 = vpop.f32.mrb[0].mxu0
      %v1676 = vpop.f32.mrb[0].mxu0
      %v1677 = vadd.f32 0.0, %v1676
      %v1678 = vpop.f32.mrb[0].mxu0
      %1679 = vmatprep.mubr.bf16.mxu0 0
      %1680 = vmatmul.mubr.bf16.gmra.mrb[0].mxu0 %v1557
      %v1681 = vpop.f32.mrb[0].mxu0
      %v1682 = vadd.f32 0.0, %v1681
      %v1683 = vpop.f32.mrb[0].mxu0
      %v1684 = vpop.f32.mrb[0].mxu0
      %v1685 = vadd.f32 0.0, %v1684
      %v1686 = vpop.f32.mrb[0].mxu0
      %1687 = vmatprep.mubr.bf16.mxu0 0
      %1688 = vmatmul.mubr.bf16.gmra.mrb[0].mxu0 %v1560
      %v1689 = vpop.f32.mrb[0].mxu0
      %v1690 = vadd.f32 0.0, %v1689
      %v1691 = vpop.f32.mrb[0].mxu0
      %v1692 = vpop.f32.mrb[0].mxu0
      %v1693 = vadd.f32 0.0, %v1692
      %v1694 = vpop.f32.mrb[0].mxu0
      %1695 = vmatprep.mubr.bf16.mxu0 0
      %1696 = vmatmul.mubr.bf16.gmra.mrb[0].mxu0 %v1563
      %v1697 = vpop.f32.mrb[0].mxu0
      %v1698 = vadd.f32 0.0, %v1697
      %v1699 = vpop.f32.mrb[0].mxu0
      %v1700 = vpop.f32.mrb[0].mxu0
      %v1701 = vadd.f32 0.0, %v1700
      %v1702 = vpop.f32.mrb[0].mxu0
      %1703 = vmatprep.mubr.bf16.mxu0 0
      %1704 = vmatmul.mubr.bf16.gmra.mrb[0].mxu0 %v1566
      %v1705 = vpop.f32.mrb[0].mxu0
      %v1706 = vadd.f32 0.0, %v1705
      %v1707 = vpop.f32.mrb[0].mxu0
      %v1708 = vpop.f32.mrb[0].mxu0
      %v1709 = vadd.f32 0.0, %v1708
      %v1710 = vpop.f32.mrb[0].mxu0
      %1711 = vmatprep.mubr.bf16.mxu0 0
      %1712 = vmatmul.mubr.bf16.gmra.mrb[0].mxu0 %v1569
      %v1713 = vpop.f32.mrb[0].mxu0
      %v1714 = vadd.f32 0.0, %v1713
      %v1715 = vpop.f32.mrb[0].mxu0
      %v1716 = vpop.f32.mrb[0].mxu0
      %v1717 = vadd.f32 0.0, %v1716
      %v1718 = vpop.f32.mrb[0].mxu0
      %1719 = vmatprep.mubr.bf16.mxu0 0
      %1720 = vmatmul.mubr.bf16.gmra.mrb[0].mxu0 %v1572
      %v1721 = vpop.f32.mrb[0].mxu0
      %v1722 = vadd.f32 0.0, %v1721
      %v1723 = vpop.f32.mrb[0].mxu0
      %v1724 = vpop.f32.mrb[0].mxu0
      %v1725 = vadd.f32 0.0, %v1724
      %v1726 = vpop.f32.mrb[0].mxu0
      %1727 = vmatprep.mubr.bf16.mxu0 0
      %1728 = vmatmul.mubr.bf16.gmra.mrb[0].mxu0 %v1575
      %v1729 = vpop.f32.mrb[0].mxu0
      %v1730 = vadd.f32 0.0, %v1729
      %v1731 = vpop.f32.mrb[0].mxu0
      %v1732 = vpop.f32.mrb[0].mxu0
      %v1733 = vadd.f32 0.0, %v1732
      %v1734 = vpop.f32.mrb[0].mxu0
      %1735 = vmatprep.mubr.bf16.mxu0 0
      %1736 = vmatmul.mubr.bf16.gmra.mrb[0].mxu0 %v1578
      %v1737 = vpop.f32.mrb[0].mxu0
      %v1738 = vadd.f32 0.0, %v1737
      %v1739 = vpop.f32.mrb[0].mxu0
      %v1740 = vpop.f32.mrb[0].mxu0
      %v1741 = vadd.f32 0.0, %v1740
      %v1742 = vpop.f32.mrb[0].mxu0
      %1743 = vdwg.mxu0
      %v1745 = vsel %vm693, %v1511, 0
      %v1748 = vsel %vm742, %v1528, 0
      %1750 = vmatprep.subr.bf16.mxu0 0
      %1751 = vmatpush1.bf16.msra.mxu0 %v1748
      %1752 = vmatprep.subr.bf16.mxu0 0
      %1753 = vmatpush1.bf16.msra.mxu0 0
      %1754 = vmatprep.subr.bf16.mxu0 0
      %1755 = vmatpush1.bf16.msra.mxu0 0
      %1756 = vmatprep.subr.bf16.mxu0 0
      %1757 = vmatpush1.bf16.msra.mxu0 0
      %1758 = vmatprep.subr.bf16.mxu0 0
      %1759 = vmatpush1.bf16.msra.mxu0 0
      %1760 = vmatprep.subr.bf16.mxu0 0
      %1761 = vmatpush1.bf16.msra.mxu0 0
      %1762 = vmatprep.subr.bf16.mxu0 0
      %1763 = vmatpush1.bf16.msra.mxu0 0
      %1764 = vmatprep.subr.bf16.mxu0 0
      %1765 = vmatpush1.bf16.msra.mxu0 0
      %1766 = vmatprep.subr.bf16.mxu0 0
      %1767 = vmatpush1.bf16.msra.mxu0 0
      %1768 = vmatprep.subr.bf16.mxu0 0
      %1769 = vmatpush1.bf16.msra.mxu0 0
      %1770 = vmatprep.subr.bf16.mxu0 0
      %1771 = vmatpush1.bf16.msra.mxu0 0
      %1772 = vmatprep.subr.bf16.mxu0 0
      %1773 = vmatpush1.bf16.msra.mxu0 0
      %1774 = vmatprep.subr.bf16.mxu0 0
      %1775 = vmatpush1.bf16.msra.mxu0 0
      %1776 = vmatprep.subr.bf16.mxu0 0
      %1777 = vmatpush1.bf16.msra.mxu0 0
      %1778 = vmatprep.subr.bf16.mxu0 0
      %1779 = vmatpush1.bf16.msra.mxu0 0
      %1780 = vmatprep.subr.bf16.mxu0 0
      %1781 = vmatpush1.bf16.msra.mxu0 0
      %1782 = vmatprep.mubr.bf16.mxu0 0
      %1783 = vmatmul.mubr.bf16.gmra.mrb[0].mxu0 %v1745
      %v1784 = vpop.f32.mrb[0].mxu0
      %v1785 = vadd.f32 %v1618, %v1784
      %v1786 = vpop.f32.mrb[0].mxu0
      %v1787 = vpop.f32.mrb[0].mxu0
      %v1788 = vadd.f32 %v1621, %v1787
      %v1789 = vpop.f32.mrb[0].mxu0
      %1790 = vmatprep.mubr.bf16.mxu0 0
      %1791 = vmatmul.mubr.bf16.gmra.mrb[0].mxu0 %v1533
      %v1792 = vpop.f32.mrb[0].mxu0
      %v1793 = vadd.f32 %v1626, %v1792
      %v1794 = vpop.f32.mrb[0].mxu0
      %v1795 = vpop.f32.mrb[0].mxu0
      %v1796 = vadd.f32 %v1629, %v1795
      %v1797 = vpop.f32.mrb[0].mxu0
      %1798 = vmatprep.mubr.bf16.mxu0 0
      %1799 = vmatmul.mubr.bf16.gmra.mrb[0].mxu0 %v1536
      %v1800 = vpop.f32.mrb[0].mxu0
      %v1801 = vadd.f32 %v1634, %v1800
      %v1802 = vpop.f32.mrb[0].mxu0
      %v1803 = vpop.f32.mrb[0].mxu0
      %v1804 = vadd.f32 %v1637, %v1803
      %v1805 = vpop.f32.mrb[0].mxu0
      %1806 = vmatprep.mubr.bf16.mxu0 0
      %1807 = vmatmul.mubr.bf16.gmra.mrb[0].mxu0 %v1539
      %v1808 = vpop.f32.mrb[0].mxu0
      %v1809 = vadd.f32 %v1642, %v1808
      %v1810 = vpop.f32.mrb[0].mxu0
      %v1811 = vpop.f32.mrb[0].mxu0
      %v1812 = vadd.f32 %v1645, %v1811
      %v1813 = vpop.f32.mrb[0].mxu0
      %1814 = vmatprep.mubr.bf16.mxu0 0
      %1815 = vmatmul.mubr.bf16.gmra.mrb[0].mxu0 %v1542
      %v1816 = vpop.f32.mrb[0].mxu0
      %v1817 = vadd.f32 %v1650, %v1816
      %v1818 = vpop.f32.mrb[0].mxu0
      %v1819 = vpop.f32.mrb[0].mxu0
      %v1820 = vadd.f32 %v1653, %v1819
      %v1821 = vpop.f32.mrb[0].mxu0
      %1822 = vmatprep.mubr.bf16.mxu0 0
      %1823 = vmatmul.mubr.bf16.gmra.mrb[0].mxu0 %v1545
      %v1824 = vpop.f32.mrb[0].mxu0
      %v1825 = vadd.f32 %v1658, %v1824
      %v1826 = vpop.f32.mrb[0].mxu0
      %v1827 = vpop.f32.mrb[0].mxu0
      %v1828 = vadd.f32 %v1661, %v1827
      %v1829 = vpop.f32.mrb[0].mxu0
      %1830 = vmatprep.mubr.bf16.mxu0 0
      %1831 = vmatmul.mubr.bf16.gmra.mrb[0].mxu0 %v1548
      %v1832 = vpop.f32.mrb[0].mxu0
      %v1833 = vadd.f32 %v1666, %v1832
      %v1834 = vpop.f32.mrb[0].mxu0
      %v1835 = vpop.f32.mrb[0].mxu0
      %v1836 = vadd.f32 %v1669, %v1835
      %v1837 = vpop.f32.mrb[0].mxu0
      %1838 = vmatprep.mubr.bf16.mxu0 0
      %1839 = vmatmul.mubr.bf16.gmra.mrb[0].mxu0 %v1551
      %v1840 = vpop.f32.mrb[0].mxu0
      %v1841 = vadd.f32 %v1674, %v1840
      %v1842 = vpop.f32.mrb[0].mxu0
      %v1843 = vpop.f32.mrb[0].mxu0
      %v1844 = vadd.f32 %v1677, %v1843
      %v1845 = vpop.f32.mrb[0].mxu0
      %1846 = vmatprep.mubr.bf16.mxu0 0
      %1847 = vmatmul.mubr.bf16.gmra.mrb[0].mxu0 %v1554
      %v1848 = vpop.f32.mrb[0].mxu0
      %v1849 = vadd.f32 %v1682, %v1848
      %v1850 = vpop.f32.mrb[0].mxu0
      %v1851 = vpop.f32.mrb[0].mxu0
      %v1852 = vadd.f32 %v1685, %v1851
      %v1853 = vpop.f32.mrb[0].mxu0
      %1854 = vmatprep.mubr.bf16.mxu0 0
      %1855 = vmatmul.mubr.bf16.gmra.mrb[0].mxu0 %v1557
      %v1856 = vpop.f32.mrb[0].mxu0
      %v1857 = vadd.f32 %v1690, %v1856
      %v1858 = vpop.f32.mrb[0].mxu0
      %v1859 = vpop.f32.mrb[0].mxu0
      %v1860 = vadd.f32 %v1693, %v1859
      %v1861 = vpop.f32.mrb[0].mxu0
      %1862 = vmatprep.mubr.bf16.mxu0 0
      %1863 = vmatmul.mubr.bf16.gmra.mrb[0].mxu0 %v1560
      %v1864 = vpop.f32.mrb[0].mxu0
      %v1865 = vadd.f32 %v1698, %v1864
      %v1866 = vpop.f32.mrb[0].mxu0
      %v1867 = vpop.f32.mrb[0].mxu0
      %v1868 = vadd.f32 %v1701, %v1867
      %v1869 = vpop.f32.mrb[0].mxu0
      %1870 = vmatprep.mubr.bf16.mxu0 0
      %1871 = vmatmul.mubr.bf16.gmra.mrb[0].mxu0 %v1563
      %v1872 = vpop.f32.mrb[0].mxu0
      %v1873 = vadd.f32 %v1706, %v1872
      %v1874 = vpop.f32.mrb[0].mxu0
      %v1875 = vpop.f32.mrb[0].mxu0
      %v1876 = vadd.f32 %v1709, %v1875
      %v1877 = vpop.f32.mrb[0].mxu0
      %1878 = vmatprep.mubr.bf16.mxu0 0
      %1879 = vmatmul.mubr.bf16.gmra.mrb[0].mxu0 %v1566
      %v1880 = vpop.f32.mrb[0].mxu0
      %v1881 = vadd.f32 %v1714, %v1880
      %v1882 = vpop.f32.mrb[0].mxu0
      %v1883 = vpop.f32.mrb[0].mxu0
      %v1884 = vadd.f32 %v1717, %v1883
      %v1885 = vpop.f32.mrb[0].mxu0
      %1886 = vmatprep.mubr.bf16.mxu0 0
      %1887 = vmatmul.mubr.bf16.gmra.mrb[0].mxu0 %v1569
      %v1888 = vpop.f32.mrb[0].mxu0
      %v1889 = vadd.f32 %v1722, %v1888
      %v1890 = vpop.f32.mrb[0].mxu0
      %v1891 = vpop.f32.mrb[0].mxu0
      %v1892 = vadd.f32 %v1725, %v1891
      %v1893 = vpop.f32.mrb[0].mxu0
      %1894 = vmatprep.mubr.bf16.mxu0 0
      %1895 = vmatmul.mubr.bf16.gmra.mrb[0].mxu0 %v1572
      %v1896 = vpop.f32.mrb[0].mxu0
      %v1897 = vadd.f32 %v1730, %v1896
      %v1898 = vpop.f32.mrb[0].mxu0
      %v1899 = vpop.f32.mrb[0].mxu0
      %v1900 = vadd.f32 %v1733, %v1899
      %v1901 = vpop.f32.mrb[0].mxu0
      %1902 = vmatprep.mubr.bf16.mxu0 0
      %1903 = vmatmul.mubr.bf16.gmra.mrb[0].mxu0 %v1575
      %v1904 = vpop.f32.mrb[0].mxu0
      %v1905 = vadd.f32 %v1738, %v1904
      %v1906 = vpop.f32.mrb[0].mxu0
      %v1907 = vpop.f32.mrb[0].mxu0
      %v1908 = vadd.f32 %v1741, %v1907
      %v1909 = vpop.f32.mrb[0].mxu0
      %1910 = vdwg.mxu0
      %v1911 = vpack.c.bf16 %v516, %v515
      %s1912 = scalar_lea.vmem %s3, 28
      %v1913 = vld [vmem:[%s1912] sm:$0xf]
      %v1915 = vsel %vm693, %v1911, 0
      %v1918 = vsel %vm742, %v1913, 0
      %1920 = vmatprep.subr.bf16.mxu0 0
      %1921 = vmatpush1.bf16.msra.mxu0 %v1918
      %1922 = vmatprep.subr.bf16.mxu0 0
      %1923 = vmatpush1.bf16.msra.mxu0 0
      %1924 = vmatprep.subr.bf16.mxu0 0
      %1925 = vmatpush1.bf16.msra.mxu0 0
      %1926 = vmatprep.subr.bf16.mxu0 0
      %1927 = vmatpush1.bf16.msra.mxu0 0
      %1928 = vmatprep.subr.bf16.mxu0 0
      %1929 = vmatpush1.bf16.msra.mxu0 0
      %1930 = vmatprep.subr.bf16.mxu0 0
      %1931 = vmatpush1.bf16.msra.mxu0 0
      %1932 = vmatprep.subr.bf16.mxu0 0
      %1933 = vmatpush1.bf16.msra.mxu0 0
      %1934 = vmatprep.subr.bf16.mxu0 0
      %1935 = vmatpush1.bf16.msra.mxu0 0
      %1936 = vmatprep.subr.bf16.mxu0 0
      %1937 = vmatpush1.bf16.msra.mxu0 0
      %1938 = vmatprep.subr.bf16.mxu0 0
      %1939 = vmatpush1.bf16.msra.mxu0 0
      %1940 = vmatprep.subr.bf16.mxu0 0
      %1941 = vmatpush1.bf16.msra.mxu0 0
      %1942 = vmatprep.subr.bf16.mxu0 0
      %1943 = vmatpush1.bf16.msra.mxu0 0
      %1944 = vmatprep.subr.bf16.mxu0 0
      %1945 = vmatpush1.bf16.msra.mxu0 0
      %1946 = vmatprep.subr.bf16.mxu0 0
      %1947 = vmatpush1.bf16.msra.mxu0 0
      %1948 = vmatprep.subr.bf16.mxu0 0
      %1949 = vmatpush1.bf16.msra.mxu0 0
      %1950 = vmatprep.subr.bf16.mxu0 0
      %1951 = vmatpush1.bf16.msra.mxu0 0
      %1952 = vmatprep.mubr.bf16.mxu0 0
      %1953 = vmatmul.mubr.bf16.gmra.mrb[0].mxu0 %v1536
      %v1954 = vpop.f32.mrb[0].mxu0
      %v1955 = vadd.f32 0.0, %v1954
      %v1956 = vpop.f32.mrb[0].mxu0
      %v1957 = vpop.f32.mrb[0].mxu0
      %v1958 = vadd.f32 0.0, %v1957
      %v1959 = vpop.f32.mrb[0].mxu0
      %1960 = vmatprep.mubr.bf16.mxu0 0
      %1961 = vmatmul.mubr.bf16.gmra.mrb[0].mxu0 %v1539
      %v1962 = vpop.f32.mrb[0].mxu0
      %v1963 = vadd.f32 0.0, %v1962
      %v1964 = vpop.f32.mrb[0].mxu0
      %v1965 = vpop.f32.mrb[0].mxu0
      %v1966 = vadd.f32 0.0, %v1965
      %v1967 = vpop.f32.mrb[0].mxu0
      %1968 = vmatprep.mubr.bf16.mxu0 0
      %1969 = vmatmul.mubr.bf16.gmra.mrb[0].mxu0 %v1542
      %v1970 = vpop.f32.mrb[0].mxu0
      %v1971 = vadd.f32 0.0, %v1970
      %v1972 = vpop.f32.mrb[0].mxu0
      %v1973 = vpop.f32.mrb[0].mxu0
      %v1974 = vadd.f32 0.0, %v1973
      %v1975 = vpop.f32.mrb[0].mxu0
      %1976 = vmatprep.mubr.bf16.mxu0 0
      %1977 = vmatmul.mubr.bf16.gmra.mrb[0].mxu0 %v1545
      %v1978 = vpop.f32.mrb[0].mxu0
      %v1979 = vadd.f32 0.0, %v1978
      %v1980 = vpop.f32.mrb[0].mxu0
      %v1981 = vpop.f32.mrb[0].mxu0
      %v1982 = vadd.f32 0.0, %v1981
      %v1983 = vpop.f32.mrb[0].mxu0
      %1984 = vmatprep.mubr.bf16.mxu0 0
      %1985 = vmatmul.mubr.bf16.gmra.mrb[0].mxu0 %v1548
      %v1986 = vpop.f32.mrb[0].mxu0
      %v1987 = vadd.f32 0.0, %v1986
      %v1988 = vpop.f32.mrb[0].mxu0
      %v1989 = vpop.f32.mrb[0].mxu0
      %v1990 = vadd.f32 0.0, %v1989
      %v1991 = vpop.f32.mrb[0].mxu0
      %1992 = vmatprep.mubr.bf16.mxu0 0
      %1993 = vmatmul.mubr.bf16.gmra.mrb[0].mxu0 %v1551
      %v1994 = vpop.f32.mrb[0].mxu0
      %v1995 = vadd.f32 0.0, %v1994
      %v1996 = vpop.f32.mrb[0].mxu0
      %v1997 = vpop.f32.mrb[0].mxu0
      %v1998 = vadd.f32 0.0, %v1997
      %v1999 = vpop.f32.mrb[0].mxu0
      %2000 = vmatprep.mubr.bf16.mxu0 0
      %2001 = vmatmul.mubr.bf16.gmra.mrb[0].mxu0 %v1554
      %v2002 = vpop.f32.mrb[0].mxu0
      %v2003 = vadd.f32 0.0, %v2002
      %v2004 = vpop.f32.mrb[0].mxu0
      %v2005 = vpop.f32.mrb[0].mxu0
      %v2006 = vadd.f32 0.0, %v2005
      %v2007 = vpop.f32.mrb[0].mxu0
      %2008 = vmatprep.mubr.bf16.mxu0 0
      %2009 = vmatmul.mubr.bf16.gmra.mrb[0].mxu0 %v1557
      %v2010 = vpop.f32.mrb[0].mxu0
      %v2011 = vadd.f32 0.0, %v2010
      %v2012 = vpop.f32.mrb[0].mxu0
      %v2013 = vpop.f32.mrb[0].mxu0
      %v2014 = vadd.f32 0.0, %v2013
      %v2015 = vpop.f32.mrb[0].mxu0
      %2016 = vmatprep.mubr.bf16.mxu0 0
      %2017 = vmatmul.mubr.bf16.gmra.mrb[0].mxu0 %v1560
      %v2018 = vpop.f32.mrb[0].mxu0
      %v2019 = vadd.f32 0.0, %v2018
      %v2020 = vpop.f32.mrb[0].mxu0
      %v2021 = vpop.f32.mrb[0].mxu0
      %v2022 = vadd.f32 0.0, %v2021
      %v2023 = vpop.f32.mrb[0].mxu0
      %2024 = vmatprep.mubr.bf16.mxu0 0
      %2025 = vmatmul.mubr.bf16.gmra.mrb[0].mxu0 %v1563
      %v2026 = vpop.f32.mrb[0].mxu0
      %v2027 = vadd.f32 0.0, %v2026
      %v2028 = vpop.f32.mrb[0].mxu0
      %v2029 = vpop.f32.mrb[0].mxu0
      %v2030 = vadd.f32 0.0, %v2029
      %v2031 = vpop.f32.mrb[0].mxu0
      %2032 = vmatprep.mubr.bf16.mxu0 0
      %2033 = vmatmul.mubr.bf16.gmra.mrb[0].mxu0 %v1566
      %v2034 = vpop.f32.mrb[0].mxu0
      %v2035 = vadd.f32 0.0, %v2034
      %v2036 = vpop.f32.mrb[0].mxu0
      %v2037 = vpop.f32.mrb[0].mxu0
      %v2038 = vadd.f32 0.0, %v2037
      %v2039 = vpop.f32.mrb[0].mxu0
      %2040 = vmatprep.mubr.bf16.mxu0 0
      %2041 = vmatmul.mubr.bf16.gmra.mrb[0].mxu0 %v1569
      %v2042 = vpop.f32.mrb[0].mxu0
      %v2043 = vadd.f32 0.0, %v2042
      %v2044 = vpop.f32.mrb[0].mxu0
      %v2045 = vpop.f32.mrb[0].mxu0
      %v2046 = vadd.f32 0.0, %v2045
      %v2047 = vpop.f32.mrb[0].mxu0
      %2048 = vmatprep.mubr.bf16.mxu0 0
      %2049 = vmatmul.mubr.bf16.gmra.mrb[0].mxu0 %v1572
      %v2050 = vpop.f32.mrb[0].mxu0
      %v2051 = vadd.f32 0.0, %v2050
      %v2052 = vpop.f32.mrb[0].mxu0
      %v2053 = vpop.f32.mrb[0].mxu0
      %v2054 = vadd.f32 0.0, %v2053
      %v2055 = vpop.f32.mrb[0].mxu0
      %2056 = vmatprep.mubr.bf16.mxu0 0
      %2057 = vmatmul.mubr.bf16.gmra.mrb[0].mxu0 %v1575
      %v2058 = vpop.f32.mrb[0].mxu0
      %v2059 = vadd.f32 0.0, %v2058
      %v2060 = vpop.f32.mrb[0].mxu0
      %v2061 = vpop.f32.mrb[0].mxu0
      %v2062 = vadd.f32 0.0, %v2061
      %v2063 = vpop.f32.mrb[0].mxu0
      %2064 = vmatprep.mubr.bf16.mxu0 0
      %2065 = vmatmul.mubr.bf16.gmra.mrb[0].mxu0 %v1578
      %v2066 = vpop.f32.mrb[0].mxu0
      %v2067 = vadd.f32 0.0, %v2066
      %v2068 = vpop.f32.mrb[0].mxu0
      %v2069 = vpop.f32.mrb[0].mxu0
      %v2070 = vadd.f32 0.0, %v2069
      %v2071 = vpop.f32.mrb[0].mxu0
      %2072 = vmatprep.mubr.bf16.mxu0 0
      %2073 = vmatmul.mubr.bf16.gmra.mrb[0].mxu0 %v1915
      %v2074 = vpop.f32.mrb[0].mxu0
      %v2075 = vadd.f32 0.0, %v2074
      %v2076 = vpop.f32.mrb[0].mxu0
      %v2077 = vpop.f32.mrb[0].mxu0
      %v2078 = vadd.f32 0.0, %v2077
      %v2079 = vpop.f32.mrb[0].mxu0
      %2080 = vdwg.mxu0
      %v2081 = vadd.f32 %v1785, %v1955
      %v2082 = vadd.f32 %v1788, %v1958
      %v2083 = vadd.f32 %v1793, %v1963
      %v2084 = vadd.f32 %v1796, %v1966
      %v2085 = vadd.f32 %v1801, %v1971
      %v2086 = vadd.f32 %v1804, %v1974
      %v2087 = vadd.f32 %v1809, %v1979
      %v2088 = vadd.f32 %v1812, %v1982
      %v2089 = vadd.f32 %v1817, %v1987
      %v2090 = vadd.f32 %v1820, %v1990
      %v2091 = vadd.f32 %v1825, %v1995
      %v2092 = vadd.f32 %v1828, %v1998
      %v2093 = vadd.f32 %v1833, %v2003
      %v2094 = vadd.f32 %v1836, %v2006
      %v2095 = vadd.f32 %v1841, %v2011
      %v2096 = vadd.f32 %v1844, %v2014
      %v2097 = vadd.f32 %v1849, %v2019
      %v2098 = vadd.f32 %v1852, %v2022
      %v2099 = vadd.f32 %v1857, %v2027
      %v2100 = vadd.f32 %v1860, %v2030
      %v2101 = vadd.f32 %v1865, %v2035
      %v2102 = vadd.f32 %v1868, %v2038
      %v2103 = vadd.f32 %v1873, %v2043
      %v2104 = vadd.f32 %v1876, %v2046
      %v2105 = vadd.f32 %v1881, %v2051
      %v2106 = vadd.f32 %v1884, %v2054
      %v2107 = vadd.f32 %v1889, %v2059
      %v2108 = vadd.f32 %v1892, %v2062
      %v2109 = vadd.f32 %v1897, %v2067
      %v2110 = vadd.f32 %v1900, %v2070
      %v2111 = vadd.f32 %v1905, %v2075
      %v2112 = vadd.f32 %v1908, %v2078
      %v2113 = vadd.f32 %v1479, %v2081
      %v2114 = vadd.f32 %v1480, %v2082
      %v2115 = vadd.f32 %v1481, %v2083
      %v2116 = vadd.f32 %v1482, %v2084
      %v2117 = vadd.f32 %v1483, %v2085
      %v2118 = vadd.f32 %v1484, %v2086
      %v2119 = vadd.f32 %v1485, %v2087
      %v2120 = vadd.f32 %v1486, %v2088
      %v2121 = vadd.f32 %v1487, %v2089
      %v2122 = vadd.f32 %v1488, %v2090
      %v2123 = vadd.f32 %v1489, %v2091
      %v2124 = vadd.f32 %v1490, %v2092
      %v2125 = vadd.f32 %v1491, %v2093
      %v2126 = vadd.f32 %v1492, %v2094
      %v2127 = vadd.f32 %v1493, %v2095
      %v2128 = vadd.f32 %v1494, %v2096
      %v2129 = vadd.f32 %v1495, %v2097
      %v2130 = vadd.f32 %v1496, %v2098
      %v2131 = vadd.f32 %v1497, %v2099
      %v2132 = vadd.f32 %v1498, %v2100
      %v2133 = vadd.f32 %v1499, %v2101
      %v2134 = vadd.f32 %v1500, %v2102
      %v2135 = vadd.f32 %v1501, %v2103
      %v2136 = vadd.f32 %v1502, %v2104
      %v2137 = vadd.f32 %v1503, %v2105
      %v2138 = vadd.f32 %v1504, %v2106
      %v2139 = vadd.f32 %v1505, %v2107
      %v2140 = vadd.f32 %v1506, %v2108
      %v2141 = vadd.f32 %v1507, %v2109
      %v2142 = vadd.f32 %v1508, %v2110
      %v2143 = vadd.f32 %v1509, %v2111
      %v2144 = vadd.f32 %v1510, %v2112
      %v2145 = vpack.c.bf16 %v513, %v513
      %s2146 = scalar_lea.vmem %s3, 8
      %v2147 = vld [vmem:[%s2146] sm:$0xf]
      %v2148 = vpack.c.bf16 %v515, %v515
      %s2149 = scalar_lea.vmem %s3, 20
      %v2150 = vld [vmem:[%s2149] sm:$0xf]
      %vm2151 = vsmask.f32 7424
      %v2152 = vshrl.u32 %v1512, 16
      %v2154 = vshll.u32 %v1512, 16
      %v2156 = vrot.slane %v2154, 1
      %v2157 = vor.u32 %v2152, %v2156
      %v2158 = vshll.u32 %v1513, 16
      %v2160 = vrot.slane %v2158, 1
      %v2161 = vsel %vm2151, %v2157, %v2160
      %v2162 = vshrl.u32 %v1513, 16
      %v2164 = vor.u32 %v2162, %v2160
      %v2165 = vshll.u32 %v1514, 16
      %v2167 = vrot.slane %v2165, 1
      %v2168 = vsel %vm2151, %v2164, %v2167
      %v2169 = vshrl.u32 %v1514, 16
      %v2171 = vor.u32 %v2169, %v2167
      %v2172 = vshll.u32 %v1515, 16
      %v2174 = vrot.slane %v2172, 1
      %v2175 = vsel %vm2151, %v2171, %v2174
      %v2176 = vshrl.u32 %v1515, 16
      %v2178 = vor.u32 %v2176, %v2174
      %v2179 = vshll.u32 %v1516, 16
      %v2181 = vrot.slane %v2179, 1
      %v2182 = vsel %vm2151, %v2178, %v2181
      %v2183 = vshrl.u32 %v1516, 16
      %v2185 = vor.u32 %v2183, %v2181
      %v2186 = vshll.u32 %v1517, 16
      %v2188 = vrot.slane %v2186, 1
      %v2189 = vsel %vm2151, %v2185, %v2188
      %v2190 = vshrl.u32 %v1517, 16
      %v2192 = vor.u32 %v2190, %v2188
      %v2193 = vshll.u32 %v1518, 16
      %v2195 = vrot.slane %v2193, 1
      %v2196 = vsel %vm2151, %v2192, %v2195
      %v2197 = vshrl.u32 %v1518, 16
      %v2199 = vor.u32 %v2197, %v2195
      %v2200 = vshll.u32 %v1519, 16
      %v2202 = vrot.slane %v2200, 1
      %v2203 = vsel %vm2151, %v2199, %v2202
      %v2204 = vshrl.u32 %v1519, 16
      %v2206 = vor.u32 %v2204, %v2202
      %v2207 = vshll.u32 %v1520, 16
      %v2209 = vrot.slane %v2207, 1
      %v2210 = vsel %vm2151, %v2206, %v2209
      %v2211 = vshrl.u32 %v1520, 16
      %v2213 = vor.u32 %v2211, %v2209
      %v2214 = vshll.u32 %v1521, 16
      %v2216 = vrot.slane %v2214, 1
      %v2217 = vsel %vm2151, %v2213, %v2216
      %v2218 = vshrl.u32 %v1521, 16
      %v2220 = vor.u32 %v2218, %v2216
      %v2221 = vshll.u32 %v1522, 16
      %v2223 = vrot.slane %v2221, 1
      %v2224 = vsel %vm2151, %v2220, %v2223
      %v2225 = vshrl.u32 %v1522, 16
      %v2227 = vor.u32 %v2225, %v2223
      %v2228 = vshll.u32 %v1523, 16
      %v2230 = vrot.slane %v2228, 1
      %v2231 = vsel %vm2151, %v2227, %v2230
      %v2232 = vshrl.u32 %v1523, 16
      %v2234 = vor.u32 %v2232, %v2230
      %v2235 = vshll.u32 %v1524, 16
      %v2237 = vrot.slane %v2235, 1
      %v2238 = vsel %vm2151, %v2234, %v2237
      %v2239 = vshrl.u32 %v1524, 16
      %v2241 = vor.u32 %v2239, %v2237
      %v2242 = vshll.u32 %v1525, 16
      %v2244 = vrot.slane %v2242, 1
      %v2245 = vsel %vm2151, %v2241, %v2244
      %v2246 = vshrl.u32 %v1525, 16
      %v2248 = vor.u32 %v2246, %v2244
      %v2249 = vshll.u32 %v1526, 16
      %v2251 = vrot.slane %v2249, 1
      %v2252 = vsel %vm2151, %v2248, %v2251
      %v2253 = vshrl.u32 %v1526, 16
      %v2255 = vor.u32 %v2253, %v2251
      %v2256 = vshll.u32 %v1529, 16
      %v2258 = vrot.slane %v2256, 1
      %v2259 = vsel %vm2151, %v2255, %v2258
      %v2260 = vshrl.u32 %v1529, 16
      %v2262 = vor.u32 %v2260, %v2258
      %v2264 = vshll.u32 %v2148, 16
      %v2266 = vrot.slane %v2264, 1
      %v2267 = vsel %vm2151, %v2262, %v2266
      %v2269 = vsel %vm693, %v2161, 0
      %v2272 = vsel %vm693, %v2168, 0
      %v2275 = vsel %vm693, %v2175, 0
      %v2278 = vsel %vm693, %v2182, 0
      %v2281 = vsel %vm693, %v2189, 0
      %v2284 = vsel %vm693, %v2196, 0
      %v2287 = vsel %vm693, %v2203, 0
      %v2290 = vsel %vm693, %v2210, 0
      %v2293 = vsel %vm693, %v2217, 0
      %v2296 = vsel %vm693, %v2224, 0
      %v2299 = vsel %vm693, %v2231, 0
      %v2302 = vsel %vm693, %v2238, 0
      %v2305 = vsel %vm693, %v2245, 0
      %v2308 = vsel %vm693, %v2252, 0
      %v2311 = vsel %vm693, %v2259, 0
      %v2314 = vsel %vm693, %v2267, 0
      %v2317 = vsel %vm742, %v2150, 0
      %2319 = vmatprep.subr.bf16.mxu0 0
      %2320 = vmatpush1.bf16.msra.mxu0 %v2317
      %2321 = vmatprep.subr.bf16.mxu0 0
      %2322 = vmatpush1.bf16.msra.mxu0 0
      %2323 = vmatprep.subr.bf16.mxu0 0
      %2324 = vmatpush1.bf16.msra.mxu0 0
      %2325 = vmatprep.subr.bf16.mxu0 0
      %2326 = vmatpush1.bf16.msra.mxu0 0
      %2327 = vmatprep.subr.bf16.mxu0 0
      %2328 = vmatpush1.bf16.msra.mxu0 0
      %2329 = vmatprep.subr.bf16.mxu0 0
      %2330 = vmatpush1.bf16.msra.mxu0 0
      %2331 = vmatprep.subr.bf16.mxu0 0
      %2332 = vmatpush1.bf16.msra.mxu0 0
      %2333 = vmatprep.subr.bf16.mxu0 0
      %2334 = vmatpush1.bf16.msra.mxu0 0
      %2335 = vmatprep.subr.bf16.mxu0 0
      %2336 = vmatpush1.bf16.msra.mxu0 0
      %2337 = vmatprep.subr.bf16.mxu0 0
      %2338 = vmatpush1.bf16.msra.mxu0 0
      %2339 = vmatprep.subr.bf16.mxu0 0
      %2340 = vmatpush1.bf16.msra.mxu0 0
      %2341 = vmatprep.subr.bf16.mxu0 0
      %2342 = vmatpush1.bf16.msra.mxu0 0
      %2343 = vmatprep.subr.bf16.mxu0 0
      %2344 = vmatpush1.bf16.msra.mxu0 0
      %2345 = vmatprep.subr.bf16.mxu0 0
      %2346 = vmatpush1.bf16.msra.mxu0 0
      %2347 = vmatprep.subr.bf16.mxu0 0
      %2348 = vmatpush1.bf16.msra.mxu0 0
      %2349 = vmatprep.subr.bf16.mxu0 0
      %2350 = vmatpush1.bf16.msra.mxu0 0
      %2351 = vmatprep.mubr.bf16.mxu0 0
      %2352 = vmatmul.mubr.bf16.gmra.mrb[0].mxu0 %v2269
      %v2353 = vpop.f32.mrb[0].mxu0
      %v2354 = vadd.f32 0.0, %v2353
      %v2355 = vpop.f32.mrb[0].mxu0
      %v2356 = vpop.f32.mrb[0].mxu0
      %v2357 = vadd.f32 0.0, %v2356
      %v2358 = vpop.f32.mrb[0].mxu0
      %2359 = vmatprep.mubr.bf16.mxu0 0
      %2360 = vmatmul.mubr.bf16.gmra.mrb[0].mxu0 %v2272
      %v2361 = vpop.f32.mrb[0].mxu0
      %v2362 = vadd.f32 0.0, %v2361
      %v2363 = vpop.f32.mrb[0].mxu0
      %v2364 = vpop.f32.mrb[0].mxu0
      %v2365 = vadd.f32 0.0, %v2364
      %v2366 = vpop.f32.mrb[0].mxu0
      %2367 = vmatprep.mubr.bf16.mxu0 0
      %2368 = vmatmul.mubr.bf16.gmra.mrb[0].mxu0 %v2275
      %v2369 = vpop.f32.mrb[0].mxu0
      %v2370 = vadd.f32 0.0, %v2369
      %v2371 = vpop.f32.mrb[0].mxu0
      %v2372 = vpop.f32.mrb[0].mxu0
      %v2373 = vadd.f32 0.0, %v2372
      %v2374 = vpop.f32.mrb[0].mxu0
      %2375 = vmatprep.mubr.bf16.mxu0 0
      %2376 = vmatmul.mubr.bf16.gmra.mrb[0].mxu0 %v2278
      %v2377 = vpop.f32.mrb[0].mxu0
      %v2378 = vadd.f32 0.0, %v2377
      %v2379 = vpop.f32.mrb[0].mxu0
      %v2380 = vpop.f32.mrb[0].mxu0
      %v2381 = vadd.f32 0.0, %v2380
      %v2382 = vpop.f32.mrb[0].mxu0
      %2383 = vmatprep.mubr.bf16.mxu0 0
      %2384 = vmatmul.mubr.bf16.gmra.mrb[0].mxu0 %v2281
      %v2385 = vpop.f32.mrb[0].mxu0
      %v2386 = vadd.f32 0.0, %v2385
      %v2387 = vpop.f32.mrb[0].mxu0
      %v2388 = vpop.f32.mrb[0].mxu0
      %v2389 = vadd.f32 0.0, %v2388
      %v2390 = vpop.f32.mrb[0].mxu0
      %2391 = vmatprep.mubr.bf16.mxu0 0
      %2392 = vmatmul.mubr.bf16.gmra.mrb[0].mxu0 %v2284
      %v2393 = vpop.f32.mrb[0].mxu0
      %v2394 = vadd.f32 0.0, %v2393
      %v2395 = vpop.f32.mrb[0].mxu0
      %v2396 = vpop.f32.mrb[0].mxu0
      %v2397 = vadd.f32 0.0, %v2396
      %v2398 = vpop.f32.mrb[0].mxu0
      %2399 = vmatprep.mubr.bf16.mxu0 0
      %2400 = vmatmul.mubr.bf16.gmra.mrb[0].mxu0 %v2287
      %v2401 = vpop.f32.mrb[0].mxu0
      %v2402 = vadd.f32 0.0, %v2401
      %v2403 = vpop.f32.mrb[0].mxu0
      %v2404 = vpop.f32.mrb[0].mxu0
      %v2405 = vadd.f32 0.0, %v2404
      %v2406 = vpop.f32.mrb[0].mxu0
      %2407 = vmatprep.mubr.bf16.mxu0 0
      %2408 = vmatmul.mubr.bf16.gmra.mrb[0].mxu0 %v2290
      %v2409 = vpop.f32.mrb[0].mxu0
      %v2410 = vadd.f32 0.0, %v2409
      %v2411 = vpop.f32.mrb[0].mxu0
      %v2412 = vpop.f32.mrb[0].mxu0
      %v2413 = vadd.f32 0.0, %v2412
      %v2414 = vpop.f32.mrb[0].mxu0
      %2415 = vmatprep.mubr.bf16.mxu0 0
      %2416 = vmatmul.mubr.bf16.gmra.mrb[0].mxu0 %v2293
      %v2417 = vpop.f32.mrb[0].mxu0
      %v2418 = vadd.f32 0.0, %v2417
      %v2419 = vpop.f32.mrb[0].mxu0
      %v2420 = vpop.f32.mrb[0].mxu0
      %v2421 = vadd.f32 0.0, %v2420
      %v2422 = vpop.f32.mrb[0].mxu0
      %2423 = vmatprep.mubr.bf16.mxu0 0
      %2424 = vmatmul.mubr.bf16.gmra.mrb[0].mxu0 %v2296
      %v2425 = vpop.f32.mrb[0].mxu0
      %v2426 = vadd.f32 0.0, %v2425
      %v2427 = vpop.f32.mrb[0].mxu0
      %v2428 = vpop.f32.mrb[0].mxu0
      %v2429 = vadd.f32 0.0, %v2428
      %v2430 = vpop.f32.mrb[0].mxu0
      %2431 = vmatprep.mubr.bf16.mxu0 0
      %2432 = vmatmul.mubr.bf16.gmra.mrb[0].mxu0 %v2299
      %v2433 = vpop.f32.mrb[0].mxu0
      %v2434 = vadd.f32 0.0, %v2433
      %v2435 = vpop.f32.mrb[0].mxu0
      %v2436 = vpop.f32.mrb[0].mxu0
      %v2437 = vadd.f32 0.0, %v2436
      %v2438 = vpop.f32.mrb[0].mxu0
      %2439 = vmatprep.mubr.bf16.mxu0 0
      %2440 = vmatmul.mubr.bf16.gmra.mrb[0].mxu0 %v2302
      %v2441 = vpop.f32.mrb[0].mxu0
      %v2442 = vadd.f32 0.0, %v2441
      %v2443 = vpop.f32.mrb[0].mxu0
      %v2444 = vpop.f32.mrb[0].mxu0
      %v2445 = vadd.f32 0.0, %v2444
      %v2446 = vpop.f32.mrb[0].mxu0
      %2447 = vmatprep.mubr.bf16.mxu0 0
      %2448 = vmatmul.mubr.bf16.gmra.mrb[0].mxu0 %v2305
      %v2449 = vpop.f32.mrb[0].mxu0
      %v2450 = vadd.f32 0.0, %v2449
      %v2451 = vpop.f32.mrb[0].mxu0
      %v2452 = vpop.f32.mrb[0].mxu0
      %v2453 = vadd.f32 0.0, %v2452
      %v2454 = vpop.f32.mrb[0].mxu0
      %2455 = vmatprep.mubr.bf16.mxu0 0
      %2456 = vmatmul.mubr.bf16.gmra.mrb[0].mxu0 %v2308
      %v2457 = vpop.f32.mrb[0].mxu0
      %v2458 = vadd.f32 0.0, %v2457
      %v2459 = vpop.f32.mrb[0].mxu0
      %v2460 = vpop.f32.mrb[0].mxu0
      %v2461 = vadd.f32 0.0, %v2460
      %v2462 = vpop.f32.mrb[0].mxu0
      %2463 = vmatprep.mubr.bf16.mxu0 0
      %2464 = vmatmul.mubr.bf16.gmra.mrb[0].mxu0 %v2311
      %v2465 = vpop.f32.mrb[0].mxu0
      %v2466 = vadd.f32 0.0, %v2465
      %v2467 = vpop.f32.mrb[0].mxu0
      %v2468 = vpop.f32.mrb[0].mxu0
      %v2469 = vadd.f32 0.0, %v2468
      %v2470 = vpop.f32.mrb[0].mxu0
      %2471 = vmatprep.mubr.bf16.mxu0 0
      %2472 = vmatmul.mubr.bf16.gmra.mrb[0].mxu0 %v2314
      %v2473 = vpop.f32.mrb[0].mxu0
      %v2474 = vadd.f32 0.0, %v2473
      %v2475 = vpop.f32.mrb[0].mxu0
      %v2476 = vpop.f32.mrb[0].mxu0
      %v2477 = vadd.f32 0.0, %v2476
      %v2478 = vpop.f32.mrb[0].mxu0
      %2479 = vdwg.mxu0
      %v2480 = vshrl.u32 %v1511, 16
      %v2482 = vshll.u32 %v1511, 16
      %v2484 = vrot.slane %v2482, 1
      %v2485 = vor.u32 %v2480, %v2484
      %v2486 = vsel %vm2151, %v2485, %v2156
      %v2488 = vshll.u32 %v2145, 16
      %v2490 = vrot.slane %v2488, 1
      %v2491 = vsel %vm2151, %v2255, %v2490
      %v2493 = vsel %vm693, %v2486, 0
      %v2496 = vsel %vm693, %v2491, 0
      %v2499 = vsel %vm742, %v2147, 0
      %2501 = vmatprep.subr.bf16.mxu0 0
      %2502 = vmatpush1.bf16.msra.mxu0 %v2499
      %2503 = vmatprep.subr.bf16.mxu0 0
      %2504 = vmatpush1.bf16.msra.mxu0 0
      %2505 = vmatprep.subr.bf16.mxu0 0
      %2506 = vmatpush1.bf16.msra.mxu0 0
      %2507 = vmatprep.subr.bf16.mxu0 0
      %2508 = vmatpush1.bf16.msra.mxu0 0
      %2509 = vmatprep.subr.bf16.mxu0 0
      %2510 = vmatpush1.bf16.msra.mxu0 0
      %2511 = vmatprep.subr.bf16.mxu0 0
      %2512 = vmatpush1.bf16.msra.mxu0 0
      %2513 = vmatprep.subr.bf16.mxu0 0
      %2514 = vmatpush1.bf16.msra.mxu0 0
      %2515 = vmatprep.subr.bf16.mxu0 0
      %2516 = vmatpush1.bf16.msra.mxu0 0
      %2517 = vmatprep.subr.bf16.mxu0 0
      %2518 = vmatpush1.bf16.msra.mxu0 0
      %2519 = vmatprep.subr.bf16.mxu0 0
      %2520 = vmatpush1.bf16.msra.mxu0 0
      %2521 = vmatprep.subr.bf16.mxu0 0
      %2522 = vmatpush1.bf16.msra.mxu0 0
      %2523 = vmatprep.subr.bf16.mxu0 0
      %2524 = vmatpush1.bf16.msra.mxu0 0
      %2525 = vmatprep.subr.bf16.mxu0 0
      %2526 = vmatpush1.bf16.msra.mxu0 0
      %2527 = vmatprep.subr.bf16.mxu0 0
      %2528 = vmatpush1.bf16.msra.mxu0 0
      %2529 = vmatprep.subr.bf16.mxu0 0
      %2530 = vmatpush1.bf16.msra.mxu0 0
      %2531 = vmatprep.subr.bf16.mxu0 0
      %2532 = vmatpush1.bf16.msra.mxu0 0
      %2533 = vmatprep.mubr.bf16.mxu0 0
      %2534 = vmatmul.mubr.bf16.gmra.mrb[0].mxu0 %v2493
      %v2535 = vpop.f32.mrb[0].mxu0
      %v2536 = vadd.f32 %v2354, %v2535
      %v2537 = vpop.f32.mrb[0].mxu0
      %v2538 = vpop.f32.mrb[0].mxu0
      %v2539 = vadd.f32 %v2357, %v2538
      %v2540 = vpop.f32.mrb[0].mxu0
      %2541 = vmatprep.mubr.bf16.mxu0 0
      %2542 = vmatmul.mubr.bf16.gmra.mrb[0].mxu0 %v2269
      %v2543 = vpop.f32.mrb[0].mxu0
      %v2544 = vadd.f32 %v2362, %v2543
      %v2545 = vpop.f32.mrb[0].mxu0
      %v2546 = vpop.f32.mrb[0].mxu0
      %v2547 = vadd.f32 %v2365, %v2546
      %v2548 = vpop.f32.mrb[0].mxu0
      %2549 = vmatprep.mubr.bf16.mxu0 0
      %2550 = vmatmul.mubr.bf16.gmra.mrb[0].mxu0 %v2272
      %v2551 = vpop.f32.mrb[0].mxu0
      %v2552 = vadd.f32 %v2370, %v2551
      %v2553 = vpop.f32.mrb[0].mxu0
      %v2554 = vpop.f32.mrb[0].mxu0
      %v2555 = vadd.f32 %v2373, %v2554
      %v2556 = vpop.f32.mrb[0].mxu0
      %2557 = vmatprep.mubr.bf16.mxu0 0
      %2558 = vmatmul.mubr.bf16.gmra.mrb[0].mxu0 %v2275
      %v2559 = vpop.f32.mrb[0].mxu0
      %v2560 = vadd.f32 %v2378, %v2559
      %v2561 = vpop.f32.mrb[0].mxu0
      %v2562 = vpop.f32.mrb[0].mxu0
      %v2563 = vadd.f32 %v2381, %v2562
      %v2564 = vpop.f32.mrb[0].mxu0
      %2565 = vmatprep.mubr.bf16.mxu0 0
      %2566 = vmatmul.mubr.bf16.gmra.mrb[0].mxu0 %v2278
      %v2567 = vpop.f32.mrb[0].mxu0
      %v2568 = vadd.f32 %v2386, %v2567
      %v2569 = vpop.f32.mrb[0].mxu0
      %v2570 = vpop.f32.mrb[0].mxu0
      %v2571 = vadd.f32 %v2389, %v2570
      %v2572 = vpop.f32.mrb[0].mxu0
      %2573 = vmatprep.mubr.bf16.mxu0 0
      %2574 = vmatmul.mubr.bf16.gmra.mrb[0].mxu0 %v2281
      %v2575 = vpop.f32.mrb[0].mxu0
      %v2576 = vadd.f32 %v2394, %v2575
      %v2577 = vpop.f32.mrb[0].mxu0
      %v2578 = vpop.f32.mrb[0].mxu0
      %v2579 = vadd.f32 %v2397, %v2578
      %v2580 = vpop.f32.mrb[0].mxu0
      %2581 = vmatprep.mubr.bf16.mxu0 0
      %2582 = vmatmul.mubr.bf16.gmra.mrb[0].mxu0 %v2284
      %v2583 = vpop.f32.mrb[0].mxu0
      %v2584 = vadd.f32 %v2402, %v2583
      %v2585 = vpop.f32.mrb[0].mxu0
      %v2586 = vpop.f32.mrb[0].mxu0
      %v2587 = vadd.f32 %v2405, %v2586
      %v2588 = vpop.f32.mrb[0].mxu0
      %2589 = vmatprep.mubr.bf16.mxu0 0
      %2590 = vmatmul.mubr.bf16.gmra.mrb[0].mxu0 %v2287
      %v2591 = vpop.f32.mrb[0].mxu0
      %v2592 = vadd.f32 %v2410, %v2591
      %v2593 = vpop.f32.mrb[0].mxu0
      %v2594 = vpop.f32.mrb[0].mxu0
      %v2595 = vadd.f32 %v2413, %v2594
      %v2596 = vpop.f32.mrb[0].mxu0
      %2597 = vmatprep.mubr.bf16.mxu0 0
      %2598 = vmatmul.mubr.bf16.gmra.mrb[0].mxu0 %v2290
      %v2599 = vpop.f32.mrb[0].mxu0
      %v2600 = vadd.f32 %v2418, %v2599
      %v2601 = vpop.f32.mrb[0].mxu0
      %v2602 = vpop.f32.mrb[0].mxu0
      %v2603 = vadd.f32 %v2421, %v2602
      %v2604 = vpop.f32.mrb[0].mxu0
      %2605 = vmatprep.mubr.bf16.mxu0 0
      %2606 = vmatmul.mubr.bf16.gmra.mrb[0].mxu0 %v2293
      %v2607 = vpop.f32.mrb[0].mxu0
      %v2608 = vadd.f32 %v2426, %v2607
      %v2609 = vpop.f32.mrb[0].mxu0
      %v2610 = vpop.f32.mrb[0].mxu0
      %v2611 = vadd.f32 %v2429, %v2610
      %v2612 = vpop.f32.mrb[0].mxu0
      %2613 = vmatprep.mubr.bf16.mxu0 0
      %2614 = vmatmul.mubr.bf16.gmra.mrb[0].mxu0 %v2296
      %v2615 = vpop.f32.mrb[0].mxu0
      %v2616 = vadd.f32 %v2434, %v2615
      %v2617 = vpop.f32.mrb[0].mxu0
      %v2618 = vpop.f32.mrb[0].mxu0
      %v2619 = vadd.f32 %v2437, %v2618
      %v2620 = vpop.f32.mrb[0].mxu0
      %2621 = vmatprep.mubr.bf16.mxu0 0
      %2622 = vmatmul.mubr.bf16.gmra.mrb[0].mxu0 %v2299
      %v2623 = vpop.f32.mrb[0].mxu0
      %v2624 = vadd.f32 %v2442, %v2623
      %v2625 = vpop.f32.mrb[0].mxu0
      %v2626 = vpop.f32.mrb[0].mxu0
      %v2627 = vadd.f32 %v2445, %v2626
      %v2628 = vpop.f32.mrb[0].mxu0
      %2629 = vmatprep.mubr.bf16.mxu0 0
      %2630 = vmatmul.mubr.bf16.gmra.mrb[0].mxu0 %v2302
      %v2631 = vpop.f32.mrb[0].mxu0
      %v2632 = vadd.f32 %v2450, %v2631
      %v2633 = vpop.f32.mrb[0].mxu0
      %v2634 = vpop.f32.mrb[0].mxu0
      %v2635 = vadd.f32 %v2453, %v2634
      %v2636 = vpop.f32.mrb[0].mxu0
      %2637 = vmatprep.mubr.bf16.mxu0 0
      %2638 = vmatmul.mubr.bf16.gmra.mrb[0].mxu0 %v2305
      %v2639 = vpop.f32.mrb[0].mxu0
      %v2640 = vadd.f32 %v2458, %v2639
      %v2641 = vpop.f32.mrb[0].mxu0
      %v2642 = vpop.f32.mrb[0].mxu0
      %v2643 = vadd.f32 %v2461, %v2642
      %v2644 = vpop.f32.mrb[0].mxu0
      %2645 = vmatprep.mubr.bf16.mxu0 0
      %2646 = vmatmul.mubr.bf16.gmra.mrb[0].mxu0 %v2308
      %v2647 = vpop.f32.mrb[0].mxu0
      %v2648 = vadd.f32 %v2466, %v2647
      %v2649 = vpop.f32.mrb[0].mxu0
      %v2650 = vpop.f32.mrb[0].mxu0
      %v2651 = vadd.f32 %v2469, %v2650
      %v2652 = vpop.f32.mrb[0].mxu0
      %2653 = vmatprep.mubr.bf16.mxu0 0
      %2654 = vmatmul.mubr.bf16.gmra.mrb[0].mxu0 %v2496
      %v2655 = vpop.f32.mrb[0].mxu0
      %v2656 = vadd.f32 %v2474, %v2655
      %v2657 = vpop.f32.mrb[0].mxu0
      %v2658 = vpop.f32.mrb[0].mxu0
      %v2659 = vadd.f32 %v2477, %v2658
      %v2660 = vpop.f32.mrb[0].mxu0
      %2661 = vdwg.mxu0
      %v2662 = vpack.c.bf16 %v517, %v517
      %s2663 = scalar_lea.vmem %s3, 32
      %v2664 = vld [vmem:[%s2663] sm:$0xf]
      %v2665 = vshll.u32 %v1911, 16
      %v2667 = vrot.slane %v2665, 1
      %v2668 = vsel %vm2151, %v2262, %v2667
      %v2669 = vshrl.u32 %v1911, 16
      %v2671 = vor.u32 %v2669, %v2667
      %v2673 = vshll.u32 %v2662, 16
      %v2675 = vrot.slane %v2673, 1
      %v2676 = vsel %vm2151, %v2671, %v2675
      %v2678 = vsel %vm693, %v2668, 0
      %v2681 = vsel %vm693, %v2676, 0
      %v2684 = vsel %vm742, %v2664, 0
      %2686 = vmatprep.subr.bf16.mxu0 0
      %2687 = vmatpush1.bf16.msra.mxu0 %v2684
      %2688 = vmatprep.subr.bf16.mxu0 0
      %2689 = vmatpush1.bf16.msra.mxu0 0
      %2690 = vmatprep.subr.bf16.mxu0 0
      %2691 = vmatpush1.bf16.msra.mxu0 0
      %2692 = vmatprep.subr.bf16.mxu0 0
      %2693 = vmatpush1.bf16.msra.mxu0 0
      %2694 = vmatprep.subr.bf16.mxu0 0
      %2695 = vmatpush1.bf16.msra.mxu0 0
      %2696 = vmatprep.subr.bf16.mxu0 0
      %2697 = vmatpush1.bf16.msra.mxu0 0
      %2698 = vmatprep.subr.bf16.mxu0 0
      %2699 = vmatpush1.bf16.msra.mxu0 0
      %2700 = vmatprep.subr.bf16.mxu0 0
      %2701 = vmatpush1.bf16.msra.mxu0 0
      %2702 = vmatprep.subr.bf16.mxu0 0
      %2703 = vmatpush1.bf16.msra.mxu0 0
      %2704 = vmatprep.subr.bf16.mxu0 0
      %2705 = vmatpush1.bf16.msra.mxu0 0
      %2706 = vmatprep.subr.bf16.mxu0 0
      %2707 = vmatpush1.bf16.msra.mxu0 0
      %2708 = vmatprep.subr.bf16.mxu0 0
      %2709 = vmatpush1.bf16.msra.mxu0 0
      %2710 = vmatprep.subr.bf16.mxu0 0
      %2711 = vmatpush1.bf16.msra.mxu0 0
      %2712 = vmatprep.subr.bf16.mxu0 0
      %2713 = vmatpush1.bf16.msra.mxu0 0
      %2714 = vmatprep.subr.bf16.mxu0 0
      %2715 = vmatpush1.bf16.msra.mxu0 0
      %2716 = vmatprep.subr.bf16.mxu0 0
      %2717 = vmatpush1.bf16.msra.mxu0 0
      %2718 = vmatprep.mubr.bf16.mxu0 0
      %2719 = vmatmul.mubr.bf16.gmra.mrb[0].mxu0 %v2272
      %v2720 = vpop.f32.mrb[0].mxu0
      %v2721 = vadd.f32 0.0, %v2720
      %v2722 = vpop.f32.mrb[0].mxu0
      %v2723 = vpop.f32.mrb[0].mxu0
      %v2724 = vadd.f32 0.0, %v2723
      %v2725 = vpop.f32.mrb[0].mxu0
      %2726 = vmatprep.mubr.bf16.mxu0 0
      %2727 = vmatmul.mubr.bf16.gmra.mrb[0].mxu0 %v2275
      %v2728 = vpop.f32.mrb[0].mxu0
      %v2729 = vadd.f32 0.0, %v2728
      %v2730 = vpop.f32.mrb[0].mxu0
      %v2731 = vpop.f32.mrb[0].mxu0
      %v2732 = vadd.f32 0.0, %v2731
      %v2733 = vpop.f32.mrb[0].mxu0
      %2734 = vmatprep.mubr.bf16.mxu0 0
      %2735 = vmatmul.mubr.bf16.gmra.mrb[0].mxu0 %v2278
      %v2736 = vpop.f32.mrb[0].mxu0
      %v2737 = vadd.f32 0.0, %v2736
      %v2738 = vpop.f32.mrb[0].mxu0
      %v2739 = vpop.f32.mrb[0].mxu0
      %v2740 = vadd.f32 0.0, %v2739
      %v2741 = vpop.f32.mrb[0].mxu0
      %2742 = vmatprep.mubr.bf16.mxu0 0
      %2743 = vmatmul.mubr.bf16.gmra.mrb[0].mxu0 %v2281
      %v2744 = vpop.f32.mrb[0].mxu0
      %v2745 = vadd.f32 0.0, %v2744
      %v2746 = vpop.f32.mrb[0].mxu0
      %v2747 = vpop.f32.mrb[0].mxu0
      %v2748 = vadd.f32 0.0, %v2747
      %v2749 = vpop.f32.mrb[0].mxu0
      %2750 = vmatprep.mubr.bf16.mxu0 0
      %2751 = vmatmul.mubr.bf16.gmra.mrb[0].mxu0 %v2284
      %v2752 = vpop.f32.mrb[0].mxu0
      %v2753 = vadd.f32 0.0, %v2752
      %v2754 = vpop.f32.mrb[0].mxu0
      %v2755 = vpop.f32.mrb[0].mxu0
      %v2756 = vadd.f32 0.0, %v2755
      %v2757 = vpop.f32.mrb[0].mxu0
      %2758 = vmatprep.mubr.bf16.mxu0 0
      %2759 = vmatmul.mubr.bf16.gmra.mrb[0].mxu0 %v2287
      %v2760 = vpop.f32.mrb[0].mxu0
      %v2761 = vadd.f32 0.0, %v2760
      %v2762 = vpop.f32.mrb[0].mxu0
      %v2763 = vpop.f32.mrb[0].mxu0
      %v2764 = vadd.f32 0.0, %v2763
      %v2765 = vpop.f32.mrb[0].mxu0
      %2766 = vmatprep.mubr.bf16.mxu0 0
      %2767 = vmatmul.mubr.bf16.gmra.mrb[0].mxu0 %v2290
      %v2768 = vpop.f32.mrb[0].mxu0
      %v2769 = vadd.f32 0.0, %v2768
      %v2770 = vpop.f32.mrb[0].mxu0
      %v2771 = vpop.f32.mrb[0].mxu0
      %v2772 = vadd.f32 0.0, %v2771
      %v2773 = vpop.f32.mrb[0].mxu0
      %2774 = vmatprep.mubr.bf16.mxu0 0
      %2775 = vmatmul.mubr.bf16.gmra.mrb[0].mxu0 %v2293
      %v2776 = vpop.f32.mrb[0].mxu0
      %v2777 = vadd.f32 0.0, %v2776
      %v2778 = vpop.f32.mrb[0].mxu0
      %v2779 = vpop.f32.mrb[0].mxu0
      %v2780 = vadd.f32 0.0, %v2779
      %v2781 = vpop.f32.mrb[0].mxu0
      %2782 = vmatprep.mubr.bf16.mxu0 0
      %2783 = vmatmul.mubr.bf16.gmra.mrb[0].mxu0 %v2296
      %v2784 = vpop.f32.mrb[0].mxu0
      %v2785 = vadd.f32 0.0, %v2784
      %v2786 = vpop.f32.mrb[0].mxu0
      %v2787 = vpop.f32.mrb[0].mxu0
      %v2788 = vadd.f32 0.0, %v2787
      %v2789 = vpop.f32.mrb[0].mxu0
      %2790 = vmatprep.mubr.bf16.mxu0 0
      %2791 = vmatmul.mubr.bf16.gmra.mrb[0].mxu0 %v2299
      %v2792 = vpop.f32.mrb[0].mxu0
      %v2793 = vadd.f32 0.0, %v2792
      %v2794 = vpop.f32.mrb[0].mxu0
      %v2795 = vpop.f32.mrb[0].mxu0
      %v2796 = vadd.f32 0.0, %v2795
      %v2797 = vpop.f32.mrb[0].mxu0
      %2798 = vmatprep.mubr.bf16.mxu0 0
      %2799 = vmatmul.mubr.bf16.gmra.mrb[0].mxu0 %v2302
      %v2800 = vpop.f32.mrb[0].mxu0
      %v2801 = vadd.f32 0.0, %v2800
      %v2802 = vpop.f32.mrb[0].mxu0
      %v2803 = vpop.f32.mrb[0].mxu0
      %v2804 = vadd.f32 0.0, %v2803
      %v2805 = vpop.f32.mrb[0].mxu0
      %2806 = vmatprep.mubr.bf16.mxu0 0
      %2807 = vmatmul.mubr.bf16.gmra.mrb[0].mxu0 %v2305
      %v2808 = vpop.f32.mrb[0].mxu0
      %v2809 = vadd.f32 0.0, %v2808
      %v2810 = vpop.f32.mrb[0].mxu0
      %v2811 = vpop.f32.mrb[0].mxu0
      %v2812 = vadd.f32 0.0, %v2811
      %v2813 = vpop.f32.mrb[0].mxu0
      %2814 = vmatprep.mubr.bf16.mxu0 0
      %2815 = vmatmul.mubr.bf16.gmra.mrb[0].mxu0 %v2308
      %v2816 = vpop.f32.mrb[0].mxu0
      %v2817 = vadd.f32 0.0, %v2816
      %v2818 = vpop.f32.mrb[0].mxu0
      %v2819 = vpop.f32.mrb[0].mxu0
      %v2820 = vadd.f32 0.0, %v2819
      %v2821 = vpop.f32.mrb[0].mxu0
      %2822 = vmatprep.mubr.bf16.mxu0 0
      %2823 = vmatmul.mubr.bf16.gmra.mrb[0].mxu0 %v2311
      %v2824 = vpop.f32.mrb[0].mxu0
      %v2825 = vadd.f32 0.0, %v2824
      %v2826 = vpop.f32.mrb[0].mxu0
      %v2827 = vpop.f32.mrb[0].mxu0
      %v2828 = vadd.f32 0.0, %v2827
      %v2829 = vpop.f32.mrb[0].mxu0
      %2830 = vmatprep.mubr.bf16.mxu0 0
      %2831 = vmatmul.mubr.bf16.gmra.mrb[0].mxu0 %v2678
      %v2832 = vpop.f32.mrb[0].mxu0
      %v2833 = vadd.f32 0.0, %v2832
      %v2834 = vpop.f32.mrb[0].mxu0
      %v2835 = vpop.f32.mrb[0].mxu0
      %v2836 = vadd.f32 0.0, %v2835
      %v2837 = vpop.f32.mrb[0].mxu0
      %2838 = vmatprep.mubr.bf16.mxu0 0
      %2839 = vmatmul.mubr.bf16.gmra.mrb[0].mxu0 %v2681
      %v2840 = vpop.f32.mrb[0].mxu0
      %v2841 = vadd.f32 0.0, %v2840
      %v2842 = vpop.f32.mrb[0].mxu0
      %v2843 = vpop.f32.mrb[0].mxu0
      %v2844 = vadd.f32 0.0, %v2843
      %v2845 = vpop.f32.mrb[0].mxu0
      %2846 = vdwg.mxu0
      %v2847 = vadd.f32 %v2536, %v2721
      %v2848 = vadd.f32 %v2539, %v2724
      %v2849 = vadd.f32 %v2544, %v2729
      %v2850 = vadd.f32 %v2547, %v2732
      %v2851 = vadd.f32 %v2552, %v2737
      %v2852 = vadd.f32 %v2555, %v2740
      %v2853 = vadd.f32 %v2560, %v2745
      %v2854 = vadd.f32 %v2563, %v2748
      %v2855 = vadd.f32 %v2568, %v2753
      %v2856 = vadd.f32 %v2571, %v2756
      %v2857 = vadd.f32 %v2576, %v2761
      %v2858 = vadd.f32 %v2579, %v2764
      %v2859 = vadd.f32 %v2584, %v2769
      %v2860 = vadd.f32 %v2587, %v2772
      %v2861 = vadd.f32 %v2592, %v2777
      %v2862 = vadd.f32 %v2595, %v2780
      %v2863 = vadd.f32 %v2600, %v2785
      %v2864 = vadd.f32 %v2603, %v2788
      %v2865 = vadd.f32 %v2608, %v2793
      %v2866 = vadd.f32 %v2611, %v2796
      %v2867 = vadd.f32 %v2616, %v2801
      %v2868 = vadd.f32 %v2619, %v2804
      %v2869 = vadd.f32 %v2624, %v2809
      %v2870 = vadd.f32 %v2627, %v2812
      %v2871 = vadd.f32 %v2632, %v2817
      %v2872 = vadd.f32 %v2635, %v2820
      %v2873 = vadd.f32 %v2640, %v2825
      %v2874 = vadd.f32 %v2643, %v2828
      %v2875 = vadd.f32 %v2648, %v2833
      %v2876 = vadd.f32 %v2651, %v2836
      %v2877 = vadd.f32 %v2656, %v2841
      %v2878 = vadd.f32 %v2659, %v2844
      %2880 = vset.pattern.permute.xlu0 0
      %2881 = vperm.xlu0 %2880, %v366
      %v2882 = vpop.permute.xlu0 %2881
      %2885 = vset.pattern.permute.xlu0 0
      %2886 = vperm.xlu0 %2885, %v367
      %v2887 = vpop.permute.xlu0 %2886
      %2890 = vset.pattern.permute.xlu0 0
      %2891 = vperm.xlu0 %2890, %v368
      %v2892 = vpop.permute.xlu0 %2891
      %2895 = vset.pattern.permute.xlu0 0
      %2896 = vperm.xlu0 %2895, %v369
      %v2897 = vpop.permute.xlu0 %2896
      %2900 = vset.pattern.permute.xlu0 0
      %2901 = vperm.xlu0 %2900, %v370
      %v2902 = vpop.permute.xlu0 %2901
      %2905 = vset.pattern.permute.xlu0 0
      %2906 = vperm.xlu0 %2905, %v371
      %v2907 = vpop.permute.xlu0 %2906
      %2910 = vset.pattern.permute.xlu0 0
      %2911 = vperm.xlu0 %2910, %v372
      %v2912 = vpop.permute.xlu0 %2911
      %2915 = vset.pattern.permute.xlu0 0
      %2916 = vperm.xlu0 %2915, %v373
      %v2917 = vpop.permute.xlu0 %2916
      %2920 = vset.pattern.permute.xlu0 0
      %2921 = vperm.xlu0 %2920, %v374
      %v2922 = vpop.permute.xlu0 %2921
      %2925 = vset.pattern.permute.xlu0 0
      %2926 = vperm.xlu0 %2925, %v375
      %v2927 = vpop.permute.xlu0 %2926
      %2930 = vset.pattern.permute.xlu0 0
      %2931 = vperm.xlu0 %2930, %v376
      %v2932 = vpop.permute.xlu0 %2931
      %2935 = vset.pattern.permute.xlu0 0
      %2936 = vperm.xlu0 %2935, %v377
      %v2937 = vpop.permute.xlu0 %2936
      %2940 = vset.pattern.permute.xlu0 0
      %2941 = vperm.xlu0 %2940, %v378
      %v2942 = vpop.permute.xlu0 %2941
      %2945 = vset.pattern.permute.xlu0 0
      %2946 = vperm.xlu0 %2945, %v379
      %v2947 = vpop.permute.xlu0 %2946
      %2950 = vset.pattern.permute.xlu0 0
      %2951 = vperm.xlu0 %2950, %v380
      %v2952 = vpop.permute.xlu0 %2951
      %2955 = vset.pattern.permute.xlu0 0
      %2956 = vperm.xlu0 %2955, %v381
      %v2957 = vpop.permute.xlu0 %2956
      %2960 = vset.pattern.permute.xlu0 0
      %2961 = vperm.xlu0 %2960, %v382
      %v2962 = vpop.permute.xlu0 %2961
      %2965 = vset.pattern.permute.xlu0 0
      %2966 = vperm.xlu0 %2965, %v383
      %v2967 = vpop.permute.xlu0 %2966
      %2970 = vset.pattern.permute.xlu0 0
      %2971 = vperm.xlu0 %2970, %v384
      %v2972 = vpop.permute.xlu0 %2971
      %2975 = vset.pattern.permute.xlu0 0
      %2976 = vperm.xlu0 %2975, %v385
      %v2977 = vpop.permute.xlu0 %2976
      %2980 = vset.pattern.permute.xlu0 0
      %2981 = vperm.xlu0 %2980, %v386
      %v2982 = vpop.permute.xlu0 %2981
      %2985 = vset.pattern.permute.xlu0 0
      %2986 = vperm.xlu0 %2985, %v387
      %v2987 = vpop.permute.xlu0 %2986
      %2990 = vset.pattern.permute.xlu0 0
      %2991 = vperm.xlu0 %2990, %v388
      %v2992 = vpop.permute.xlu0 %2991
      %2995 = vset.pattern.permute.xlu0 0
      %2996 = vperm.xlu0 %2995, %v389
      %v2997 = vpop.permute.xlu0 %2996
      %3000 = vset.pattern.permute.xlu0 0
      %3001 = vperm.xlu0 %3000, %v390
      %v3002 = vpop.permute.xlu0 %3001
      %3005 = vset.pattern.permute.xlu0 0
      %3006 = vperm.xlu0 %3005, %v391
      %v3007 = vpop.permute.xlu0 %3006
      %3010 = vset.pattern.permute.xlu0 0
      %3011 = vperm.xlu0 %3010, %v392
      %v3012 = vpop.permute.xlu0 %3011
      %3015 = vset.pattern.permute.xlu0 0
      %3016 = vperm.xlu0 %3015, %v393
      %v3017 = vpop.permute.xlu0 %3016
      %3020 = vset.pattern.permute.xlu0 0
      %3021 = vperm.xlu0 %3020, %v394
      %v3022 = vpop.permute.xlu0 %3021
      %3025 = vset.pattern.permute.xlu0 0
      %3026 = vperm.xlu0 %3025, %v395
      %v3027 = vpop.permute.xlu0 %3026
      %3030 = vset.pattern.permute.xlu0 0
      %3031 = vperm.xlu0 %3030, %v396
      %v3032 = vpop.permute.xlu0 %3031
      %3035 = vset.pattern.permute.xlu0 0
      %3036 = vperm.xlu0 %3035, %v397
      %v3037 = vpop.permute.xlu0 %3036
      %v3039 = vmul.f32 %v2847, %v2882
      %v3040 = vmul.f32 %v2848, %v2887
      %v3041 = vmul.f32 %v2849, %v2892
      %v3042 = vmul.f32 %v2850, %v2897
      %v3043 = vmul.f32 %v2851, %v2902
      %v3044 = vmul.f32 %v2852, %v2907
      %v3045 = vmul.f32 %v2853, %v2912
      %v3046 = vmul.f32 %v2854, %v2917
      %v3047 = vmul.f32 %v2855, %v2922
      %v3048 = vmul.f32 %v2856, %v2927
      %v3049 = vmul.f32 %v2857, %v2932
      %v3050 = vmul.f32 %v2858, %v2937
      %v3051 = vmul.f32 %v2859, %v2942
      %v3052 = vmul.f32 %v2860, %v2947
      %v3053 = vmul.f32 %v2861, %v2952
      %v3054 = vmul.f32 %v2862, %v2957
      %v3055 = vmul.f32 %v2863, %v2962
      %v3056 = vmul.f32 %v2864, %v2967
      %v3057 = vmul.f32 %v2865, %v2972
      %v3058 = vmul.f32 %v2866, %v2977
      %v3059 = vmul.f32 %v2867, %v2982
      %v3060 = vmul.f32 %v2868, %v2987
      %v3061 = vmul.f32 %v2869, %v2992
      %v3062 = vmul.f32 %v2870, %v2997
      %v3063 = vmul.f32 %v2871, %v3002
      %v3064 = vmul.f32 %v2872, %v3007
      %v3065 = vmul.f32 %v2873, %v3012
      %v3066 = vmul.f32 %v2874, %v3017
      %v3067 = vmul.f32 %v2875, %v3022
      %v3068 = vmul.f32 %v2876, %v3027
      %v3069 = vmul.f32 %v2877, %v3032
      %v3070 = vmul.f32 %v2878, %v3037
      %v3071 = vadd.f32 %v2113, %v3039
      %v3072 = vadd.f32 %v2114, %v3040
      %v3073 = vadd.f32 %v2115, %v3041
      %v3074 = vadd.f32 %v2116, %v3042
      %v3075 = vadd.f32 %v2117, %v3043
      %v3076 = vadd.f32 %v2118, %v3044
      %v3077 = vadd.f32 %v2119, %v3045
      %v3078 = vadd.f32 %v2120, %v3046
      %v3079 = vadd.f32 %v2121, %v3047
      %v3080 = vadd.f32 %v2122, %v3048
      %v3081 = vadd.f32 %v2123, %v3049
      %v3082 = vadd.f32 %v2124, %v3050
      %v3083 = vadd.f32 %v2125, %v3051
      %v3084 = vadd.f32 %v2126, %v3052
      %v3085 = vadd.f32 %v2127, %v3053
      %v3086 = vadd.f32 %v2128, %v3054
      %v3087 = vadd.f32 %v2129, %v3055
      %v3088 = vadd.f32 %v2130, %v3056
      %v3089 = vadd.f32 %v2131, %v3057
      %v3090 = vadd.f32 %v2132, %v3058
      %v3091 = vadd.f32 %v2133, %v3059
      %v3092 = vadd.f32 %v2134, %v3060
      %v3093 = vadd.f32 %v2135, %v3061
      %v3094 = vadd.f32 %v2136, %v3062
      %v3095 = vadd.f32 %v2137, %v3063
      %v3096 = vadd.f32 %v2138, %v3064
      %v3097 = vadd.f32 %v2139, %v3065
      %v3098 = vadd.f32 %v2140, %v3066
      %v3099 = vadd.f32 %v2141, %v3067
      %v3100 = vadd.f32 %v2142, %v3068
      %v3101 = vadd.f32 %v2143, %v3069
      %v3102 = vadd.f32 %v2144, %v3070
      %v3103 = vld [vmem:[%s4] sm:$0x1]
      %v3105 = vlaneseq
      %v3106 = vshrl.u32 %v3105, 7
      %v3107 = vsub.s32 0, %v3106
      %v3108 = vrot.slane %v3103, %v3107
      %v3110 = vadd.f32 %v3071, %v3108
      %v3111 = vadd.f32 %v3072, %v3108
      %v3112 = vadd.f32 %v3073, %v3108
      %v3113 = vadd.f32 %v3074, %v3108
      %v3114 = vadd.f32 %v3075, %v3108
      %v3115 = vadd.f32 %v3076, %v3108
      %v3116 = vadd.f32 %v3077, %v3108
      %v3117 = vadd.f32 %v3078, %v3108
      %v3118 = vadd.f32 %v3079, %v3108
      %v3119 = vadd.f32 %v3080, %v3108
      %v3120 = vadd.f32 %v3081, %v3108
      %v3121 = vadd.f32 %v3082, %v3108
      %v3122 = vadd.f32 %v3083, %v3108
      %v3123 = vadd.f32 %v3084, %v3108
      %v3124 = vadd.f32 %v3085, %v3108
      %v3125 = vadd.f32 %v3086, %v3108
      %v3126 = vadd.f32 %v3087, %v3108
      %v3127 = vadd.f32 %v3088, %v3108
      %v3128 = vadd.f32 %v3089, %v3108
      %v3129 = vadd.f32 %v3090, %v3108
      %v3130 = vadd.f32 %v3091, %v3108
      %v3131 = vadd.f32 %v3092, %v3108
      %v3132 = vadd.f32 %v3093, %v3108
      %v3133 = vadd.f32 %v3094, %v3108
      %v3134 = vadd.f32 %v3095, %v3108
      %v3135 = vadd.f32 %v3096, %v3108
      %v3136 = vadd.f32 %v3097, %v3108
      %v3137 = vadd.f32 %v3098, %v3108
      %v3138 = vadd.f32 %v3099, %v3108
      %v3139 = vadd.f32 %v3100, %v3108
      %v3140 = vadd.f32 %v3101, %v3108
      %v3141 = vadd.f32 %v3102, %v3108
      %v3142 = vmax.f32 %v3110, 0.0
      %v3143 = vmax.f32 %v3111, 0.0
      %v3144 = vmax.f32 %v3112, 0.0
      %v3145 = vmax.f32 %v3113, 0.0
      %v3146 = vmax.f32 %v3114, 0.0
      %v3147 = vmax.f32 %v3115, 0.0
      %v3148 = vmax.f32 %v3116, 0.0
      %v3149 = vmax.f32 %v3117, 0.0
      %v3150 = vmax.f32 %v3118, 0.0
      %v3151 = vmax.f32 %v3119, 0.0
      %v3152 = vmax.f32 %v3120, 0.0
      %v3153 = vmax.f32 %v3121, 0.0
      %v3154 = vmax.f32 %v3122, 0.0
      %v3155 = vmax.f32 %v3123, 0.0
      %v3156 = vmax.f32 %v3124, 0.0
      %v3157 = vmax.f32 %v3125, 0.0
      %v3158 = vmax.f32 %v3126, 0.0
      %v3159 = vmax.f32 %v3127, 0.0
      %v3160 = vmax.f32 %v3128, 0.0
      %v3161 = vmax.f32 %v3129, 0.0
      %v3162 = vmax.f32 %v3130, 0.0
      %v3163 = vmax.f32 %v3131, 0.0
      %v3164 = vmax.f32 %v3132, 0.0
      %v3165 = vmax.f32 %v3133, 0.0
      %v3166 = vmax.f32 %v3134, 0.0
      %v3167 = vmax.f32 %v3135, 0.0
      %v3168 = vmax.f32 %v3136, 0.0
      %v3169 = vmax.f32 %v3137, 0.0
      %v3170 = vmax.f32 %v3138, 0.0
      %v3171 = vmax.f32 %v3139, 0.0
      %v3172 = vmax.f32 %v3140, 0.0
      %v3173 = vmax.f32 %v3141, 0.0
      %vm3174 = vcmask 130048
      %3175 = vst.msk [vmem:[#allocation2 + $0x18] sm:$0xff] %vm3174, %v3142
      %3176 = vst.msk [vmem:[#allocation2 + $0x20] sm:$0xff] %vm3174, %v3143
      %3177 = vst.msk [vmem:[#allocation2 + $0x28] sm:$0xff] %vm3174, %v3144
      %3178 = vst.msk [vmem:[#allocation2 + $0x30] sm:$0xff] %vm3174, %v3145
      %3179 = vst.msk [vmem:[#allocation2 + $0x38] sm:$0xff] %vm3174, %v3146
      %3180 = vst.msk [vmem:[#allocation2 + $0x40] sm:$0xff] %vm3174, %v3147
      %3181 = vst.msk [vmem:[#allocation2 + $0x48] sm:$0xff] %vm3174, %v3148
      %3182 = vst.msk [vmem:[#allocation2 + $0x50] sm:$0xff] %vm3174, %v3149
      %3183 = vst.msk [vmem:[#allocation2 + $0x58] sm:$0xff] %vm3174, %v3150
      %3184 = vst.msk [vmem:[#allocation2 + $0x60] sm:$0xff] %vm3174, %v3151
      %3185 = vst.msk [vmem:[#allocation2 + $0x68] sm:$0xff] %vm3174, %v3152
      %3186 = vst.msk [vmem:[#allocation2 + $0x70] sm:$0xff] %vm3174, %v3153
      %3187 = vst.msk [vmem:[#allocation2 + $0x78] sm:$0xff] %vm3174, %v3154
      %3188 = vst.msk [vmem:[#allocation2 + $0x80] sm:$0xff] %vm3174, %v3155
      %3189 = vst.msk [vmem:[#allocation2 + $0x88] sm:$0xff] %vm3174, %v3156
      %3190 = vst.msk [vmem:[#allocation2 + $0x90] sm:$0xff] %vm3174, %v3157
      %3191 = vst.msk [vmem:[#allocation2 + $0x98] sm:$0xff] %vm3174, %v3158
      %3192 = vst.msk [vmem:[#allocation2 + $0xa0] sm:$0xff] %vm3174, %v3159
      %3193 = vst.msk [vmem:[#allocation2 + $0xa8] sm:$0xff] %vm3174, %v3160
      %3194 = vst.msk [vmem:[#allocation2 + $0xb0] sm:$0xff] %vm3174, %v3161
      %3195 = vst.msk [vmem:[#allocation2 + $0xb8] sm:$0xff] %vm3174, %v3162
      %3196 = vst.msk [vmem:[#allocation2 + $0xc0] sm:$0xff] %vm3174, %v3163
      %3197 = vst.msk [vmem:[#allocation2 + $0xc8] sm:$0xff] %vm3174, %v3164
      %3198 = vst.msk [vmem:[#allocation2 + $0xd0] sm:$0xff] %vm3174, %v3165
      %3199 = vst.msk [vmem:[#allocation2 + $0xd8] sm:$0xff] %vm3174, %v3166
      %3200 = vst.msk [vmem:[#allocation2 + $0xe0] sm:$0xff] %vm3174, %v3167
      %3201 = vst.msk [vmem:[#allocation2 + $0xe8] sm:$0xff] %vm3174, %v3168
      %3202 = vst.msk [vmem:[#allocation2 + $0xf0] sm:$0xff] %vm3174, %v3169
      %3203 = vst.msk [vmem:[#allocation2 + $0xf8] sm:$0xff] %vm3174, %v3170
      %3204 = vst.msk [vmem:[#allocation2 + $0x100] sm:$0xff] %vm3174, %v3171
      %3205 = vst.msk [vmem:[#allocation2 + $0x108] sm:$0xff] %vm3174, %v3172
      %3206 = vst.msk [vmem:[#allocation2 + $0x110] sm:$0xff] %vm3174, %v3173
      %v3207 = vld [vmem:[#allocation2] sm:$0xff]
      %v3208 = vld [vmem:[#allocation2 + $0x8] sm:$0xff]
      %v3209 = vld [vmem:[#allocation2 + $0x10] sm:$0xff]
      %v3210 = vld [vmem:[#allocation2 + $0x18] sm:$0xff]
      %v3211 = vld [vmem:[#allocation2 + $0x20] sm:$0xff]
      %v3212 = vld [vmem:[#allocation2 + $0x28] sm:$0xff]
      %v3213 = vld [vmem:[#allocation2 + $0x30] sm:$0xff]
      %v3214 = vld [vmem:[#allocation2 + $0x38] sm:$0xff]
      %v3215 = vld [vmem:[#allocation2 + $0x40] sm:$0xff]
      %v3216 = vld [vmem:[#allocation2 + $0x48] sm:$0xff]
      %v3217 = vld [vmem:[#allocation2 + $0x50] sm:$0xff]
      %v3218 = vld [vmem:[#allocation2 + $0x58] sm:$0xff]
      %v3219 = vld [vmem:[#allocation2 + $0x60] sm:$0xff]
      %v3220 = vld [vmem:[#allocation2 + $0x68] sm:$0xff]
      %v3221 = vld [vmem:[#allocation2 + $0x70] sm:$0xff]
      %v3222 = vld [vmem:[#allocation2 + $0x78] sm:$0xff]
      %v3223 = vld [vmem:[#allocation2 + $0x80] sm:$0xff]
      %v3224 = vld [vmem:[#allocation2 + $0x88] sm:$0xff]
      %v3225 = vld [vmem:[#allocation2 + $0x90] sm:$0xff]
      %v3226 = vld [vmem:[#allocation2 + $0x98] sm:$0xff]
      %v3227 = vld [vmem:[#allocation2 + $0xa0] sm:$0xff]
      %v3228 = vld [vmem:[#allocation2 + $0xa8] sm:$0xff]
      %v3229 = vld [vmem:[#allocation2 + $0xb0] sm:$0xff]
      %v3230 = vld [vmem:[#allocation2 + $0xb8] sm:$0xff]
      %v3231 = vld [vmem:[#allocation2 + $0xc0] sm:$0xff]
      %v3232 = vld [vmem:[#allocation2 + $0xc8] sm:$0xff]
      %v3233 = vld [vmem:[#allocation2 + $0xd0] sm:$0xff]
      %v3234 = vld [vmem:[#allocation2 + $0xd8] sm:$0xff]
      %v3235 = vld [vmem:[#allocation2 + $0xe0] sm:$0xff]
      %v3236 = vld [vmem:[#allocation2 + $0xe8] sm:$0xff]
      %v3237 = vld [vmem:[#allocation2 + $0xf0] sm:$0xff]
      %v3238 = vld [vmem:[#allocation2 + $0xf8] sm:$0xff]
      %v3239 = vld [vmem:[#allocation2 + $0x100] sm:$0xff]
      %v3240 = vld [vmem:[#allocation2 + $0x108] sm:$0xff]
      %v3241 = vld [vmem:[#allocation2 + $0x110] sm:$0xff]
      %v3242 = vld [vmem:[#allocation2 + $0x118] sm:$0xff]
      %v3243 = vld [vmem:[#allocation2 + $0x120] sm:$0xff]
      %v3244 = vld [vmem:[#allocation2 + $0x128] sm:$0x1]
      %v3245 = vpack.c.bf16 %v3208, %v3207
      %v3246 = vpack.c.bf16 %v3210, %v3209
      %v3247 = vpack.c.bf16 %v3212, %v3211
      %v3248 = vpack.c.bf16 %v3214, %v3213
      %v3249 = vpack.c.bf16 %v3216, %v3215
      %v3250 = vpack.c.bf16 %v3218, %v3217
      %v3251 = vpack.c.bf16 %v3220, %v3219
      %v3252 = vpack.c.bf16 %v3222, %v3221
      %v3253 = vpack.c.bf16 %v3224, %v3223
      %v3254 = vpack.c.bf16 %v3226, %v3225
      %v3255 = vpack.c.bf16 %v3228, %v3227
      %v3256 = vpack.c.bf16 %v3230, %v3229
      %v3257 = vpack.c.bf16 %v3232, %v3231
      %v3258 = vpack.c.bf16 %v3234, %v3233
      %v3259 = vpack.c.bf16 %v3236, %v3235
      %v3260 = vpack.c.bf16 %v3238, %v3237
      %v3261 = vpack.c.bf16 %v3239, %v3239
      %v3262 = vld [vmem:[%s5] sm:$0xf]
      %v3263 = vld [vmem:[%s5 + $0x4] sm:$0xf]
      %v3264 = vpack.c.bf16 %v3240, %v3239
      %v3265 = vpack.c.bf16 %v3241, %v3241
      %s3266 = scalar_lea.vmem %s5, 24
      %v3267 = vld [vmem:[%s3266] sm:$0xf]
      %v3268 = vld [vmem:[%s3266 + $0x4] sm:$0xf]
      %v3270 = vshrl.u32 %v3246, 16
      %v3272 = vrot.slane %v3270, 3
      %v3273 = vshll.u32 %v3246, 16
      %v3275 = vrot.slane %v3273, 4
      %v3276 = vor.u32 %v3272, %v3275
      %v3278 = vshrl.u32 %v3247, 16
      %v3280 = vrot.slane %v3278, 3
      %v3281 = vshll.u32 %v3247, 16
      %v3283 = vrot.slane %v3281, 4
      %v3284 = vor.u32 %v3280, %v3283
      %v3285 = vsel %vm540, %v3276, %v3284
      %v3287 = vshrl.u32 %v3248, 16
      %v3289 = vrot.slane %v3287, 3
      %v3290 = vshll.u32 %v3248, 16
      %v3292 = vrot.slane %v3290, 4
      %v3293 = vor.u32 %v3289, %v3292
      %v3294 = vsel %vm540, %v3284, %v3293
      %v3296 = vshrl.u32 %v3249, 16
      %v3298 = vrot.slane %v3296, 3
      %v3299 = vshll.u32 %v3249, 16
      %v3301 = vrot.slane %v3299, 4
      %v3302 = vor.u32 %v3298, %v3301
      %v3303 = vsel %vm540, %v3293, %v3302
      %v3305 = vshrl.u32 %v3250, 16
      %v3307 = vrot.slane %v3305, 3
      %v3308 = vshll.u32 %v3250, 16
      %v3310 = vrot.slane %v3308, 4
      %v3311 = vor.u32 %v3307, %v3310
      %v3312 = vsel %vm540, %v3302, %v3311
      %v3314 = vshrl.u32 %v3251, 16
      %v3316 = vrot.slane %v3314, 3
      %v3317 = vshll.u32 %v3251, 16
      %v3319 = vrot.slane %v3317, 4
      %v3320 = vor.u32 %v3316, %v3319
      %v3321 = vsel %vm540, %v3311, %v3320
      %v3323 = vshrl.u32 %v3252, 16
      %v3325 = vrot.slane %v3323, 3
      %v3326 = vshll.u32 %v3252, 16
      %v3328 = vrot.slane %v3326, 4
      %v3329 = vor.u32 %v3325, %v3328
      %v3330 = vsel %vm540, %v3320, %v3329
      %v3332 = vshrl.u32 %v3253, 16
      %v3334 = vrot.slane %v3332, 3
      %v3335 = vshll.u32 %v3253, 16
      %v3337 = vrot.slane %v3335, 4
      %v3338 = vor.u32 %v3334, %v3337
      %v3339 = vsel %vm540, %v3329, %v3338
      %v3341 = vshrl.u32 %v3254, 16
      %v3343 = vrot.slane %v3341, 3
      %v3344 = vshll.u32 %v3254, 16
      %v3346 = vrot.slane %v3344, 4
      %v3347 = vor.u32 %v3343, %v3346
      %v3348 = vsel %vm540, %v3338, %v3347
      %v3350 = vshrl.u32 %v3255, 16
      %v3352 = vrot.slane %v3350, 3
      %v3353 = vshll.u32 %v3255, 16
      %v3355 = vrot.slane %v3353, 4
      %v3356 = vor.u32 %v3352, %v3355
      %v3357 = vsel %vm540, %v3347, %v3356
      %v3359 = vshrl.u32 %v3256, 16
      %v3361 = vrot.slane %v3359, 3
      %v3362 = vshll.u32 %v3256, 16
      %v3364 = vrot.slane %v3362, 4
      %v3365 = vor.u32 %v3361, %v3364
      %v3366 = vsel %vm540, %v3356, %v3365
      %v3368 = vshrl.u32 %v3257, 16
      %v3370 = vrot.slane %v3368, 3
      %v3371 = vshll.u32 %v3257, 16
      %v3373 = vrot.slane %v3371, 4
      %v3374 = vor.u32 %v3370, %v3373
      %v3375 = vsel %vm540, %v3365, %v3374
      %v3377 = vshrl.u32 %v3258, 16
      %v3379 = vrot.slane %v3377, 3
      %v3380 = vshll.u32 %v3258, 16
      %v3382 = vrot.slane %v3380, 4
      %v3383 = vor.u32 %v3379, %v3382
      %v3384 = vsel %vm540, %v3374, %v3383
      %v3386 = vshrl.u32 %v3259, 16
      %v3388 = vrot.slane %v3386, 3
      %v3389 = vshll.u32 %v3259, 16
      %v3391 = vrot.slane %v3389, 4
      %v3392 = vor.u32 %v3388, %v3391
      %v3393 = vsel %vm540, %v3383, %v3392
      %v3395 = vshrl.u32 %v3260, 16
      %v3397 = vrot.slane %v3395, 3
      %v3398 = vshll.u32 %v3260, 16
      %v3400 = vrot.slane %v3398, 4
      %v3401 = vor.u32 %v3397, %v3400
      %v3402 = vsel %vm540, %v3392, %v3401
      %v3404 = vshrl.u32 %v3264, 16
      %v3406 = vrot.slane %v3404, 3
      %v3407 = vshll.u32 %v3264, 16
      %v3409 = vrot.slane %v3407, 4
      %v3410 = vor.u32 %v3406, %v3409
      %v3411 = vsel %vm540, %v3401, %v3410
      %v3413 = vshrl.u32 %v3265, 16
      %v3415 = vrot.slane %v3413, 3
      %v3416 = vshll.u32 %v3265, 16
      %v3418 = vrot.slane %v3416, 4
      %v3419 = vor.u32 %v3415, %v3418
      %v3420 = vsel %vm540, %v3410, %v3419
      %v3423 = vunpack.c.l.b16 %v3267
      %v3424 = vunpack.c.l.b16 %v3268
      %v3425 = vpack.c.b16 %v3424, %v3423
      %v3428 = vsel %vm3174, %v3285, 0
      %v3431 = vsel %vm3174, %v3294, 0
      %v3434 = vsel %vm3174, %v3303, 0
      %v3437 = vsel %vm3174, %v3312, 0
      %v3440 = vsel %vm3174, %v3321, 0
      %v3443 = vsel %vm3174, %v3330, 0
      %v3446 = vsel %vm3174, %v3339, 0
      %v3449 = vsel %vm3174, %v3348, 0
      %v3452 = vsel %vm3174, %v3357, 0
      %v3455 = vsel %vm3174, %v3366, 0
      %v3458 = vsel %vm3174, %v3375, 0
      %v3461 = vsel %vm3174, %v3384, 0
      %v3464 = vsel %vm3174, %v3393, 0
      %v3467 = vsel %vm3174, %v3402, 0
      %v3470 = vsel %vm3174, %v3411, 0
      %v3473 = vsel %vm3174, %v3420, 0
      %3475 = vmatprep.subr.bf16.mxu0 0
      %3476 = vmatpush1.bf16.msra.mxu0 %v3425
      %3477 = vmatprep.subr.bf16.mxu0 0
      %3478 = vmatpush1.bf16.msra.mxu0 0
      %3479 = vmatprep.subr.bf16.mxu0 0
      %3480 = vmatpush1.bf16.msra.mxu0 0
      %3481 = vmatprep.subr.bf16.mxu0 0
      %3482 = vmatpush1.bf16.msra.mxu0 0
      %3483 = vmatprep.subr.bf16.mxu0 0
      %3484 = vmatpush1.bf16.msra.mxu0 0
      %3485 = vmatprep.subr.bf16.mxu0 0
      %3486 = vmatpush1.bf16.msra.mxu0 0
      %3487 = vmatprep.subr.bf16.mxu0 0
      %3488 = vmatpush1.bf16.msra.mxu0 0
      %3489 = vmatprep.subr.bf16.mxu0 0
      %3490 = vmatpush1.bf16.msra.mxu0 0
      %3491 = vmatprep.subr.bf16.mxu0 0
      %3492 = vmatpush1.bf16.msra.mxu0 0
      %3493 = vmatprep.subr.bf16.mxu0 0
      %3494 = vmatpush1.bf16.msra.mxu0 0
      %3495 = vmatprep.subr.bf16.mxu0 0
      %3496 = vmatpush1.bf16.msra.mxu0 0
      %3497 = vmatprep.subr.bf16.mxu0 0
      %3498 = vmatpush1.bf16.msra.mxu0 0
      %3499 = vmatprep.subr.bf16.mxu0 0
      %3500 = vmatpush1.bf16.msra.mxu0 0
      %3501 = vmatprep.subr.bf16.mxu0 0
      %3502 = vmatpush1.bf16.msra.mxu0 0
      %3503 = vmatprep.subr.bf16.mxu0 0
      %3504 = vmatpush1.bf16.msra.mxu0 0
      %3505 = vmatprep.subr.bf16.mxu0 0
      %3506 = vmatpush1.bf16.msra.mxu0 0
      %3507 = vmatprep.mubr.bf16.mxu0 0
      %3508 = vmatmul.mubr.bf16.gmra.mrb[0].mxu0 %v3428
      %v3509 = vpop.f32.mrb[0].mxu0
      %v3510 = vadd.f32 0.0, %v3509
      %v3511 = vpop.f32.mrb[0].mxu0
      %v3512 = vpop.f32.mrb[0].mxu0
      %v3513 = vadd.f32 0.0, %v3512
      %v3514 = vpop.f32.mrb[0].mxu0
      %3515 = vmatprep.mubr.bf16.mxu0 0
      %3516 = vmatmul.mubr.bf16.gmra.mrb[0].mxu0 %v3431
      %v3517 = vpop.f32.mrb[0].mxu0
      %v3518 = vadd.f32 0.0, %v3517
      %v3519 = vpop.f32.mrb[0].mxu0
      %v3520 = vpop.f32.mrb[0].mxu0
      %v3521 = vadd.f32 0.0, %v3520
      %v3522 = vpop.f32.mrb[0].mxu0
      %3523 = vmatprep.mubr.bf16.mxu0 0
      %3524 = vmatmul.mubr.bf16.gmra.mrb[0].mxu0 %v3434
      %v3525 = vpop.f32.mrb[0].mxu0
      %v3526 = vadd.f32 0.0, %v3525
      %v3527 = vpop.f32.mrb[0].mxu0
      %v3528 = vpop.f32.mrb[0].mxu0
      %v3529 = vadd.f32 0.0, %v3528
      %v3530 = vpop.f32.mrb[0].mxu0
      %3531 = vmatprep.mubr.bf16.mxu0 0
      %3532 = vmatmul.mubr.bf16.gmra.mrb[0].mxu0 %v3437
      %v3533 = vpop.f32.mrb[0].mxu0
      %v3534 = vadd.f32 0.0, %v3533
      %v3535 = vpop.f32.mrb[0].mxu0
      %v3536 = vpop.f32.mrb[0].mxu0
      %v3537 = vadd.f32 0.0, %v3536
      %v3538 = vpop.f32.mrb[0].mxu0
      %3539 = vmatprep.mubr.bf16.mxu0 0
      %3540 = vmatmul.mubr.bf16.gmra.mrb[0].mxu0 %v3440
      %v3541 = vpop.f32.mrb[0].mxu0
      %v3542 = vadd.f32 0.0, %v3541
      %v3543 = vpop.f32.mrb[0].mxu0
      %v3544 = vpop.f32.mrb[0].mxu0
      %v3545 = vadd.f32 0.0, %v3544
      %v3546 = vpop.f32.mrb[0].mxu0
      %3547 = vmatprep.mubr.bf16.mxu0 0
      %3548 = vmatmul.mubr.bf16.gmra.mrb[0].mxu0 %v3443
      %v3549 = vpop.f32.mrb[0].mxu0
      %v3550 = vadd.f32 0.0, %v3549
      %v3551 = vpop.f32.mrb[0].mxu0
      %v3552 = vpop.f32.mrb[0].mxu0
      %v3553 = vadd.f32 0.0, %v3552
      %v3554 = vpop.f32.mrb[0].mxu0
      %3555 = vmatprep.mubr.bf16.mxu0 0
      %3556 = vmatmul.mubr.bf16.gmra.mrb[0].mxu0 %v3446
      %v3557 = vpop.f32.mrb[0].mxu0
      %v3558 = vadd.f32 0.0, %v3557
      %v3559 = vpop.f32.mrb[0].mxu0
      %v3560 = vpop.f32.mrb[0].mxu0
      %v3561 = vadd.f32 0.0, %v3560
      %v3562 = vpop.f32.mrb[0].mxu0
      %3563 = vmatprep.mubr.bf16.mxu0 0
      %3564 = vmatmul.mubr.bf16.gmra.mrb[0].mxu0 %v3449
      %v3565 = vpop.f32.mrb[0].mxu0
      %v3566 = vadd.f32 0.0, %v3565
      %v3567 = vpop.f32.mrb[0].mxu0
      %v3568 = vpop.f32.mrb[0].mxu0
      %v3569 = vadd.f32 0.0, %v3568
      %v3570 = vpop.f32.mrb[0].mxu0
      %3571 = vmatprep.mubr.bf16.mxu0 0
      %3572 = vmatmul.mubr.bf16.gmra.mrb[0].mxu0 %v3452
      %v3573 = vpop.f32.mrb[0].mxu0
      %v3574 = vadd.f32 0.0, %v3573
      %v3575 = vpop.f32.mrb[0].mxu0
      %v3576 = vpop.f32.mrb[0].mxu0
      %v3577 = vadd.f32 0.0, %v3576
      %v3578 = vpop.f32.mrb[0].mxu0
      %3579 = vmatprep.mubr.bf16.mxu0 0
      %3580 = vmatmul.mubr.bf16.gmra.mrb[0].mxu0 %v3455
      %v3581 = vpop.f32.mrb[0].mxu0
      %v3582 = vadd.f32 0.0, %v3581
      %v3583 = vpop.f32.mrb[0].mxu0
      %v3584 = vpop.f32.mrb[0].mxu0
      %v3585 = vadd.f32 0.0, %v3584
      %v3586 = vpop.f32.mrb[0].mxu0
      %3587 = vmatprep.mubr.bf16.mxu0 0
      %3588 = vmatmul.mubr.bf16.gmra.mrb[0].mxu0 %v3458
      %v3589 = vpop.f32.mrb[0].mxu0
      %v3590 = vadd.f32 0.0, %v3589
      %v3591 = vpop.f32.mrb[0].mxu0
      %v3592 = vpop.f32.mrb[0].mxu0
      %v3593 = vadd.f32 0.0, %v3592
      %v3594 = vpop.f32.mrb[0].mxu0
      %3595 = vmatprep.mubr.bf16.mxu0 0
      %3596 = vmatmul.mubr.bf16.gmra.mrb[0].mxu0 %v3461
      %v3597 = vpop.f32.mrb[0].mxu0
      %v3598 = vadd.f32 0.0, %v3597
      %v3599 = vpop.f32.mrb[0].mxu0
      %v3600 = vpop.f32.mrb[0].mxu0
      %v3601 = vadd.f32 0.0, %v3600
      %v3602 = vpop.f32.mrb[0].mxu0
      %3603 = vmatprep.mubr.bf16.mxu0 0
      %3604 = vmatmul.mubr.bf16.gmra.mrb[0].mxu0 %v3464
      %v3605 = vpop.f32.mrb[0].mxu0
      %v3606 = vadd.f32 0.0, %v3605
      %v3607 = vpop.f32.mrb[0].mxu0
      %v3608 = vpop.f32.mrb[0].mxu0
      %v3609 = vadd.f32 0.0, %v3608
      %v3610 = vpop.f32.mrb[0].mxu0
      %3611 = vmatprep.mubr.bf16.mxu0 0
      %3612 = vmatmul.mubr.bf16.gmra.mrb[0].mxu0 %v3467
      %v3613 = vpop.f32.mrb[0].mxu0
      %v3614 = vadd.f32 0.0, %v3613
      %v3615 = vpop.f32.mrb[0].mxu0
      %v3616 = vpop.f32.mrb[0].mxu0
      %v3617 = vadd.f32 0.0, %v3616
      %v3618 = vpop.f32.mrb[0].mxu0
      %3619 = vmatprep.mubr.bf16.mxu0 0
      %3620 = vmatmul.mubr.bf16.gmra.mrb[0].mxu0 %v3470
      %v3621 = vpop.f32.mrb[0].mxu0
      %v3622 = vadd.f32 0.0, %v3621
      %v3623 = vpop.f32.mrb[0].mxu0
      %v3624 = vpop.f32.mrb[0].mxu0
      %v3625 = vadd.f32 0.0, %v3624
      %v3626 = vpop.f32.mrb[0].mxu0
      %3627 = vmatprep.mubr.bf16.mxu0 0
      %3628 = vmatmul.mubr.bf16.gmra.mrb[0].mxu0 %v3473
      %v3629 = vpop.f32.mrb[0].mxu0
      %v3630 = vadd.f32 0.0, %v3629
      %v3631 = vpop.f32.mrb[0].mxu0
      %v3632 = vpop.f32.mrb[0].mxu0
      %v3633 = vadd.f32 0.0, %v3632
      %v3634 = vpop.f32.mrb[0].mxu0
      %3635 = vdwg.mxu0
      %v3637 = vshrl.u32 %v3245, 16
      %v3639 = vrot.slane %v3637, 3
      %v3640 = vshll.u32 %v3245, 16
      %v3642 = vrot.slane %v3640, 4
      %v3643 = vor.u32 %v3639, %v3642
      %v3644 = vsel %vm540, %v3643, %v3276
      %v3646 = vshrl.u32 %v3261, 16
      %v3648 = vrot.slane %v3646, 3
      %v3649 = vshll.u32 %v3261, 16
      %v3651 = vrot.slane %v3649, 4
      %v3652 = vor.u32 %v3648, %v3651
      %v3653 = vsel %vm540, %v3401, %v3652
      %v3656 = vunpack.c.l.b16 %v3262
      %v3657 = vunpack.c.l.b16 %v3263
      %v3658 = vpack.c.b16 %v3657, %v3656
      %v3661 = vsel %vm3174, %v3644, 0
      %v3664 = vsel %vm3174, %v3653, 0
      %3666 = vmatprep.subr.bf16.mxu0 0
      %3667 = vmatpush1.bf16.msra.mxu0 %v3658
      %3668 = vmatprep.subr.bf16.mxu0 0
      %3669 = vmatpush1.bf16.msra.mxu0 0
      %3670 = vmatprep.subr.bf16.mxu0 0
      %3671 = vmatpush1.bf16.msra.mxu0 0
      %3672 = vmatprep.subr.bf16.mxu0 0
      %3673 = vmatpush1.bf16.msra.mxu0 0
      %3674 = vmatprep.subr.bf16.mxu0 0
      %3675 = vmatpush1.bf16.msra.mxu0 0
      %3676 = vmatprep.subr.bf16.mxu0 0
      %3677 = vmatpush1.bf16.msra.mxu0 0
      %3678 = vmatprep.subr.bf16.mxu0 0
      %3679 = vmatpush1.bf16.msra.mxu0 0
      %3680 = vmatprep.subr.bf16.mxu0 0
      %3681 = vmatpush1.bf16.msra.mxu0 0
      %3682 = vmatprep.subr.bf16.mxu0 0
      %3683 = vmatpush1.bf16.msra.mxu0 0
      %3684 = vmatprep.subr.bf16.mxu0 0
      %3685 = vmatpush1.bf16.msra.mxu0 0
      %3686 = vmatprep.subr.bf16.mxu0 0
      %3687 = vmatpush1.bf16.msra.mxu0 0
      %3688 = vmatprep.subr.bf16.mxu0 0
      %3689 = vmatpush1.bf16.msra.mxu0 0
      %3690 = vmatprep.subr.bf16.mxu0 0
      %3691 = vmatpush1.bf16.msra.mxu0 0
      %3692 = vmatprep.subr.bf16.mxu0 0
      %3693 = vmatpush1.bf16.msra.mxu0 0
      %3694 = vmatprep.subr.bf16.mxu0 0
      %3695 = vmatpush1.bf16.msra.mxu0 0
      %3696 = vmatprep.subr.bf16.mxu0 0
      %3697 = vmatpush1.bf16.msra.mxu0 0
      %3698 = vmatprep.mubr.bf16.mxu0 0
      %3699 = vmatmul.mubr.bf16.gmra.mrb[0].mxu0 %v3661
      %v3700 = vpop.f32.mrb[0].mxu0
      %v3701 = vadd.f32 %v3510, %v3700
      %v3702 = vpop.f32.mrb[0].mxu0
      %v3703 = vpop.f32.mrb[0].mxu0
      %v3704 = vadd.f32 %v3513, %v3703
      %v3705 = vpop.f32.mrb[0].mxu0
      %3706 = vmatprep.mubr.bf16.mxu0 0
      %3707 = vmatmul.mubr.bf16.gmra.mrb[0].mxu0 %v3428
      %v3708 = vpop.f32.mrb[0].mxu0
      %v3709 = vadd.f32 %v3518, %v3708
      %v3710 = vpop.f32.mrb[0].mxu0
      %v3711 = vpop.f32.mrb[0].mxu0
      %v3712 = vadd.f32 %v3521, %v3711
      %v3713 = vpop.f32.mrb[0].mxu0
      %3714 = vmatprep.mubr.bf16.mxu0 0
      %3715 = vmatmul.mubr.bf16.gmra.mrb[0].mxu0 %v3431
      %v3716 = vpop.f32.mrb[0].mxu0
      %v3717 = vadd.f32 %v3526, %v3716
      %v3718 = vpop.f32.mrb[0].mxu0
      %v3719 = vpop.f32.mrb[0].mxu0
      %v3720 = vadd.f32 %v3529, %v3719
      %v3721 = vpop.f32.mrb[0].mxu0
      %3722 = vmatprep.mubr.bf16.mxu0 0
      %3723 = vmatmul.mubr.bf16.gmra.mrb[0].mxu0 %v3434
      %v3724 = vpop.f32.mrb[0].mxu0
      %v3725 = vadd.f32 %v3534, %v3724
      %v3726 = vpop.f32.mrb[0].mxu0
      %v3727 = vpop.f32.mrb[0].mxu0
      %v3728 = vadd.f32 %v3537, %v3727
      %v3729 = vpop.f32.mrb[0].mxu0
      %3730 = vmatprep.mubr.bf16.mxu0 0
      %3731 = vmatmul.mubr.bf16.gmra.mrb[0].mxu0 %v3437
      %v3732 = vpop.f32.mrb[0].mxu0
      %v3733 = vadd.f32 %v3542, %v3732
      %v3734 = vpop.f32.mrb[0].mxu0
      %v3735 = vpop.f32.mrb[0].mxu0
      %v3736 = vadd.f32 %v3545, %v3735
      %v3737 = vpop.f32.mrb[0].mxu0
      %3738 = vmatprep.mubr.bf16.mxu0 0
      %3739 = vmatmul.mubr.bf16.gmra.mrb[0].mxu0 %v3440
      %v3740 = vpop.f32.mrb[0].mxu0
      %v3741 = vadd.f32 %v3550, %v3740
      %v3742 = vpop.f32.mrb[0].mxu0
      %v3743 = vpop.f32.mrb[0].mxu0
      %v3744 = vadd.f32 %v3553, %v3743
      %v3745 = vpop.f32.mrb[0].mxu0
      %3746 = vmatprep.mubr.bf16.mxu0 0
      %3747 = vmatmul.mubr.bf16.gmra.mrb[0].mxu0 %v3443
      %v3748 = vpop.f32.mrb[0].mxu0
      %v3749 = vadd.f32 %v3558, %v3748
      %v3750 = vpop.f32.mrb[0].mxu0
      %v3751 = vpop.f32.mrb[0].mxu0
      %v3752 = vadd.f32 %v3561, %v3751
      %v3753 = vpop.f32.mrb[0].mxu0
      %3754 = vmatprep.mubr.bf16.mxu0 0
      %3755 = vmatmul.mubr.bf16.gmra.mrb[0].mxu0 %v3446
      %v3756 = vpop.f32.mrb[0].mxu0
      %v3757 = vadd.f32 %v3566, %v3756
      %v3758 = vpop.f32.mrb[0].mxu0
      %v3759 = vpop.f32.mrb[0].mxu0
      %v3760 = vadd.f32 %v3569, %v3759
      %v3761 = vpop.f32.mrb[0].mxu0
      %3762 = vmatprep.mubr.bf16.mxu0 0
      %3763 = vmatmul.mubr.bf16.gmra.mrb[0].mxu0 %v3449
      %v3764 = vpop.f32.mrb[0].mxu0
      %v3765 = vadd.f32 %v3574, %v3764
      %v3766 = vpop.f32.mrb[0].mxu0
      %v3767 = vpop.f32.mrb[0].mxu0
      %v3768 = vadd.f32 %v3577, %v3767
      %v3769 = vpop.f32.mrb[0].mxu0
      %3770 = vmatprep.mubr.bf16.mxu0 0
      %3771 = vmatmul.mubr.bf16.gmra.mrb[0].mxu0 %v3452
      %v3772 = vpop.f32.mrb[0].mxu0
      %v3773 = vadd.f32 %v3582, %v3772
      %v3774 = vpop.f32.mrb[0].mxu0
      %v3775 = vpop.f32.mrb[0].mxu0
      %v3776 = vadd.f32 %v3585, %v3775
      %v3777 = vpop.f32.mrb[0].mxu0
      %3778 = vmatprep.mubr.bf16.mxu0 0
      %3779 = vmatmul.mubr.bf16.gmra.mrb[0].mxu0 %v3455
      %v3780 = vpop.f32.mrb[0].mxu0
      %v3781 = vadd.f32 %v3590, %v3780
      %v3782 = vpop.f32.mrb[0].mxu0
      %v3783 = vpop.f32.mrb[0].mxu0
      %v3784 = vadd.f32 %v3593, %v3783
      %v3785 = vpop.f32.mrb[0].mxu0
      %3786 = vmatprep.mubr.bf16.mxu0 0
      %3787 = vmatmul.mubr.bf16.gmra.mrb[0].mxu0 %v3458
      %v3788 = vpop.f32.mrb[0].mxu0
      %v3789 = vadd.f32 %v3598, %v3788
      %v3790 = vpop.f32.mrb[0].mxu0
      %v3791 = vpop.f32.mrb[0].mxu0
      %v3792 = vadd.f32 %v3601, %v3791
      %v3793 = vpop.f32.mrb[0].mxu0
      %3794 = vmatprep.mubr.bf16.mxu0 0
      %3795 = vmatmul.mubr.bf16.gmra.mrb[0].mxu0 %v3461
      %v3796 = vpop.f32.mrb[0].mxu0
      %v3797 = vadd.f32 %v3606, %v3796
      %v3798 = vpop.f32.mrb[0].mxu0
      %v3799 = vpop.f32.mrb[0].mxu0
      %v3800 = vadd.f32 %v3609, %v3799
      %v3801 = vpop.f32.mrb[0].mxu0
      %3802 = vmatprep.mubr.bf16.mxu0 0
      %3803 = vmatmul.mubr.bf16.gmra.mrb[0].mxu0 %v3464
      %v3804 = vpop.f32.mrb[0].mxu0
      %v3805 = vadd.f32 %v3614, %v3804
      %v3806 = vpop.f32.mrb[0].mxu0
      %v3807 = vpop.f32.mrb[0].mxu0
      %v3808 = vadd.f32 %v3617, %v3807
      %v3809 = vpop.f32.mrb[0].mxu0
      %3810 = vmatprep.mubr.bf16.mxu0 0
      %3811 = vmatmul.mubr.bf16.gmra.mrb[0].mxu0 %v3467
      %v3812 = vpop.f32.mrb[0].mxu0
      %v3813 = vadd.f32 %v3622, %v3812
      %v3814 = vpop.f32.mrb[0].mxu0
      %v3815 = vpop.f32.mrb[0].mxu0
      %v3816 = vadd.f32 %v3625, %v3815
      %v3817 = vpop.f32.mrb[0].mxu0
      %3818 = vmatprep.mubr.bf16.mxu0 0
      %3819 = vmatmul.mubr.bf16.gmra.mrb[0].mxu0 %v3664
      %v3820 = vpop.f32.mrb[0].mxu0
      %v3821 = vadd.f32 %v3630, %v3820
      %v3822 = vpop.f32.mrb[0].mxu0
      %v3823 = vpop.f32.mrb[0].mxu0
      %v3824 = vadd.f32 %v3633, %v3823
      %v3825 = vpop.f32.mrb[0].mxu0
      %3826 = vdwg.mxu0
      %v3827 = vpack.c.bf16 %v3242, %v3241
      %v3828 = vpack.c.bf16 %v3243, %v3243
      %s3829 = scalar_lea.vmem %s5, 48
      %v3830 = vld [vmem:[%s3829] sm:$0xf]
      %v3831 = vld [vmem:[%s3829 + $0x4] sm:$0xf]
      %v3833 = vshrl.u32 %v3827, 16
      %v3835 = vrot.slane %v3833, 3
      %v3836 = vshll.u32 %v3827, 16
      %v3838 = vrot.slane %v3836, 4
      %v3839 = vor.u32 %v3835, %v3838
      %v3840 = vsel %vm540, %v3410, %v3839
      %v3842 = vshrl.u32 %v3828, 16
      %v3844 = vrot.slane %v3842, 3
      %v3845 = vshll.u32 %v3828, 16
      %v3847 = vrot.slane %v3845, 4
      %v3848 = vor.u32 %v3844, %v3847
      %v3849 = vsel %vm540, %v3839, %v3848
      %v3852 = vunpack.c.l.b16 %v3830
      %v3853 = vunpack.c.l.b16 %v3831
      %v3854 = vpack.c.b16 %v3853, %v3852
      %v3857 = vsel %vm3174, %v3840, 0
      %v3860 = vsel %vm3174, %v3849, 0
      %3862 = vmatprep.subr.bf16.mxu0 0
      %3863 = vmatpush1.bf16.msra.mxu0 %v3854
      %3864 = vmatprep.subr.bf16.mxu0 0
      %3865 = vmatpush1.bf16.msra.mxu0 0
      %3866 = vmatprep.subr.bf16.mxu0 0
      %3867 = vmatpush1.bf16.msra.mxu0 0
      %3868 = vmatprep.subr.bf16.mxu0 0
      %3869 = vmatpush1.bf16.msra.mxu0 0
      %3870 = vmatprep.subr.bf16.mxu0 0
      %3871 = vmatpush1.bf16.msra.mxu0 0
      %3872 = vmatprep.subr.bf16.mxu0 0
      %3873 = vmatpush1.bf16.msra.mxu0 0
      %3874 = vmatprep.subr.bf16.mxu0 0
      %3875 = vmatpush1.bf16.msra.mxu0 0
      %3876 = vmatprep.subr.bf16.mxu0 0
      %3877 = vmatpush1.bf16.msra.mxu0 0
      %3878 = vmatprep.subr.bf16.mxu0 0
      %3879 = vmatpush1.bf16.msra.mxu0 0
      %3880 = vmatprep.subr.bf16.mxu0 0
      %3881 = vmatpush1.bf16.msra.mxu0 0
      %3882 = vmatprep.subr.bf16.mxu0 0
      %3883 = vmatpush1.bf16.msra.mxu0 0
      %3884 = vmatprep.subr.bf16.mxu0 0
      %3885 = vmatpush1.bf16.msra.mxu0 0
      %3886 = vmatprep.subr.bf16.mxu0 0
      %3887 = vmatpush1.bf16.msra.mxu0 0
      %3888 = vmatprep.subr.bf16.mxu0 0
      %3889 = vmatpush1.bf16.msra.mxu0 0
      %3890 = vmatprep.subr.bf16.mxu0 0
      %3891 = vmatpush1.bf16.msra.mxu0 0
      %3892 = vmatprep.subr.bf16.mxu0 0
      %3893 = vmatpush1.bf16.msra.mxu0 0
      %3894 = vmatprep.mubr.bf16.mxu0 0
      %3895 = vmatmul.mubr.bf16.gmra.mrb[0].mxu0 %v3431
      %v3896 = vpop.f32.mrb[0].mxu0
      %v3897 = vadd.f32 0.0, %v3896
      %v3898 = vpop.f32.mrb[0].mxu0
      %v3899 = vpop.f32.mrb[0].mxu0
      %v3900 = vadd.f32 0.0, %v3899
      %v3901 = vpop.f32.mrb[0].mxu0
      %3902 = vmatprep.mubr.bf16.mxu0 0
      %3903 = vmatmul.mubr.bf16.gmra.mrb[0].mxu0 %v3434
      %v3904 = vpop.f32.mrb[0].mxu0
      %v3905 = vadd.f32 0.0, %v3904
      %v3906 = vpop.f32.mrb[0].mxu0
      %v3907 = vpop.f32.mrb[0].mxu0
      %v3908 = vadd.f32 0.0, %v3907
      %v3909 = vpop.f32.mrb[0].mxu0
      %3910 = vmatprep.mubr.bf16.mxu0 0
      %3911 = vmatmul.mubr.bf16.gmra.mrb[0].mxu0 %v3437
      %v3912 = vpop.f32.mrb[0].mxu0
      %v3913 = vadd.f32 0.0, %v3912
      %v3914 = vpop.f32.mrb[0].mxu0
      %v3915 = vpop.f32.mrb[0].mxu0
      %v3916 = vadd.f32 0.0, %v3915
      %v3917 = vpop.f32.mrb[0].mxu0
      %3918 = vmatprep.mubr.bf16.mxu0 0
      %3919 = vmatmul.mubr.bf16.gmra.mrb[0].mxu0 %v3440
      %v3920 = vpop.f32.mrb[0].mxu0
      %v3921 = vadd.f32 0.0, %v3920
      %v3922 = vpop.f32.mrb[0].mxu0
      %v3923 = vpop.f32.mrb[0].mxu0
      %v3924 = vadd.f32 0.0, %v3923
      %v3925 = vpop.f32.mrb[0].mxu0
      %3926 = vmatprep.mubr.bf16.mxu0 0
      %3927 = vmatmul.mubr.bf16.gmra.mrb[0].mxu0 %v3443
      %v3928 = vpop.f32.mrb[0].mxu0
      %v3929 = vadd.f32 0.0, %v3928
      %v3930 = vpop.f32.mrb[0].mxu0
      %v3931 = vpop.f32.mrb[0].mxu0
      %v3932 = vadd.f32 0.0, %v3931
      %v3933 = vpop.f32.mrb[0].mxu0
      %3934 = vmatprep.mubr.bf16.mxu0 0
      %3935 = vmatmul.mubr.bf16.gmra.mrb[0].mxu0 %v3446
      %v3936 = vpop.f32.mrb[0].mxu0
      %v3937 = vadd.f32 0.0, %v3936
      %v3938 = vpop.f32.mrb[0].mxu0
      %v3939 = vpop.f32.mrb[0].mxu0
      %v3940 = vadd.f32 0.0, %v3939
      %v3941 = vpop.f32.mrb[0].mxu0
      %3942 = vmatprep.mubr.bf16.mxu0 0
      %3943 = vmatmul.mubr.bf16.gmra.mrb[0].mxu0 %v3449
      %v3944 = vpop.f32.mrb[0].mxu0
      %v3945 = vadd.f32 0.0, %v3944
      %v3946 = vpop.f32.mrb[0].mxu0
      %v3947 = vpop.f32.mrb[0].mxu0
      %v3948 = vadd.f32 0.0, %v3947
      %v3949 = vpop.f32.mrb[0].mxu0
      %3950 = vmatprep.mubr.bf16.mxu0 0
      %3951 = vmatmul.mubr.bf16.gmra.mrb[0].mxu0 %v3452
      %v3952 = vpop.f32.mrb[0].mxu0
      %v3953 = vadd.f32 0.0, %v3952
      %v3954 = vpop.f32.mrb[0].mxu0
      %v3955 = vpop.f32.mrb[0].mxu0
      %v3956 = vadd.f32 0.0, %v3955
      %v3957 = vpop.f32.mrb[0].mxu0
      %3958 = vmatprep.mubr.bf16.mxu0 0
      %3959 = vmatmul.mubr.bf16.gmra.mrb[0].mxu0 %v3455
      %v3960 = vpop.f32.mrb[0].mxu0
      %v3961 = vadd.f32 0.0, %v3960
      %v3962 = vpop.f32.mrb[0].mxu0
      %v3963 = vpop.f32.mrb[0].mxu0
      %v3964 = vadd.f32 0.0, %v3963
      %v3965 = vpop.f32.mrb[0].mxu0
      %3966 = vmatprep.mubr.bf16.mxu0 0
      %3967 = vmatmul.mubr.bf16.gmra.mrb[0].mxu0 %v3458
      %v3968 = vpop.f32.mrb[0].mxu0
      %v3969 = vadd.f32 0.0, %v3968
      %v3970 = vpop.f32.mrb[0].mxu0
      %v3971 = vpop.f32.mrb[0].mxu0
      %v3972 = vadd.f32 0.0, %v3971
      %v3973 = vpop.f32.mrb[0].mxu0
      %3974 = vmatprep.mubr.bf16.mxu0 0
      %3975 = vmatmul.mubr.bf16.gmra.mrb[0].mxu0 %v3461
      %v3976 = vpop.f32.mrb[0].mxu0
      %v3977 = vadd.f32 0.0, %v3976
      %v3978 = vpop.f32.mrb[0].mxu0
      %v3979 = vpop.f32.mrb[0].mxu0
      %v3980 = vadd.f32 0.0, %v3979
      %v3981 = vpop.f32.mrb[0].mxu0
      %3982 = vmatprep.mubr.bf16.mxu0 0
      %3983 = vmatmul.mubr.bf16.gmra.mrb[0].mxu0 %v3464
      %v3984 = vpop.f32.mrb[0].mxu0
      %v3985 = vadd.f32 0.0, %v3984
      %v3986 = vpop.f32.mrb[0].mxu0
      %v3987 = vpop.f32.mrb[0].mxu0
      %v3988 = vadd.f32 0.0, %v3987
      %v3989 = vpop.f32.mrb[0].mxu0
      %3990 = vmatprep.mubr.bf16.mxu0 0
      %3991 = vmatmul.mubr.bf16.gmra.mrb[0].mxu0 %v3467
      %v3992 = vpop.f32.mrb[0].mxu0
      %v3993 = vadd.f32 0.0, %v3992
      %v3994 = vpop.f32.mrb[0].mxu0
      %v3995 = vpop.f32.mrb[0].mxu0
      %v3996 = vadd.f32 0.0, %v3995
      %v3997 = vpop.f32.mrb[0].mxu0
      %3998 = vmatprep.mubr.bf16.mxu0 0
      %3999 = vmatmul.mubr.bf16.gmra.mrb[0].mxu0 %v3470
      %v4000 = vpop.f32.mrb[0].mxu0
      %v4001 = vadd.f32 0.0, %v4000
      %v4002 = vpop.f32.mrb[0].mxu0
      %v4003 = vpop.f32.mrb[0].mxu0
      %v4004 = vadd.f32 0.0, %v4003
      %v4005 = vpop.f32.mrb[0].mxu0
      %4006 = vmatprep.mubr.bf16.mxu0 0
      %4007 = vmatmul.mubr.bf16.gmra.mrb[0].mxu0 %v3857
      %v4008 = vpop.f32.mrb[0].mxu0
      %v4009 = vadd.f32 0.0, %v4008
      %v4010 = vpop.f32.mrb[0].mxu0
      %v4011 = vpop.f32.mrb[0].mxu0
      %v4012 = vadd.f32 0.0, %v4011
      %v4013 = vpop.f32.mrb[0].mxu0
      %4014 = vmatprep.mubr.bf16.mxu0 0
      %4015 = vmatmul.mubr.bf16.gmra.mrb[0].mxu0 %v3860
      %v4016 = vpop.f32.mrb[0].mxu0
      %v4017 = vadd.f32 0.0, %v4016
      %v4018 = vpop.f32.mrb[0].mxu0
      %v4019 = vpop.f32.mrb[0].mxu0
      %v4020 = vadd.f32 0.0, %v4019
      %v4021 = vpop.f32.mrb[0].mxu0
      %4022 = vdwg.mxu0
      %v4023 = vadd.f32 %v3701, %v3897
      %v4024 = vadd.f32 %v3704, %v3900
      %v4025 = vadd.f32 %v3709, %v3905
      %v4026 = vadd.f32 %v3712, %v3908
      %v4027 = vadd.f32 %v3717, %v3913
      %v4028 = vadd.f32 %v3720, %v3916
      %v4029 = vadd.f32 %v3725, %v3921
      %v4030 = vadd.f32 %v3728, %v3924
      %v4031 = vadd.f32 %v3733, %v3929
      %v4032 = vadd.f32 %v3736, %v3932
      %v4033 = vadd.f32 %v3741, %v3937
      %v4034 = vadd.f32 %v3744, %v3940
      %v4035 = vadd.f32 %v3749, %v3945
      %v4036 = vadd.f32 %v3752, %v3948
      %v4037 = vadd.f32 %v3757, %v3953
      %v4038 = vadd.f32 %v3760, %v3956
      %v4039 = vadd.f32 %v3765, %v3961
      %v4040 = vadd.f32 %v3768, %v3964
      %v4041 = vadd.f32 %v3773, %v3969
      %v4042 = vadd.f32 %v3776, %v3972
      %v4043 = vadd.f32 %v3781, %v3977
      %v4044 = vadd.f32 %v3784, %v3980
      %v4045 = vadd.f32 %v3789, %v3985
      %v4046 = vadd.f32 %v3792, %v3988
      %v4047 = vadd.f32 %v3797, %v3993
      %v4048 = vadd.f32 %v3800, %v3996
      %v4049 = vadd.f32 %v3805, %v4001
      %v4050 = vadd.f32 %v3808, %v4004
      %v4051 = vadd.f32 %v3813, %v4009
      %v4052 = vadd.f32 %v3816, %v4012
      %v4053 = vadd.f32 %v3821, %v4017
      %v4054 = vadd.f32 %v3824, %v4020
      %v4055 = vmul.f32 %v4023, %v1322
      %v4056 = vmul.f32 %v4024, %v1327
      %v4057 = vmul.f32 %v4025, %v1332
      %v4058 = vmul.f32 %v4026, %v1337
      %v4059 = vmul.f32 %v4027, %v1342
      %v4060 = vmul.f32 %v4028, %v1347
      %v4061 = vmul.f32 %v4029, %v1352
      %v4062 = vmul.f32 %v4030, %v1357
      %v4063 = vmul.f32 %v4031, %v1362
      %v4064 = vmul.f32 %v4032, %v1367
      %v4065 = vmul.f32 %v4033, %v1372
      %v4066 = vmul.f32 %v4034, %v1377
      %v4067 = vmul.f32 %v4035, %v1382
      %v4068 = vmul.f32 %v4036, %v1387
      %v4069 = vmul.f32 %v4037, %v1392
      %v4070 = vmul.f32 %v4038, %v1397
      %v4071 = vmul.f32 %v4039, %v1402
      %v4072 = vmul.f32 %v4040, %v1407
      %v4073 = vmul.f32 %v4041, %v1412
      %v4074 = vmul.f32 %v4042, %v1417
      %v4075 = vmul.f32 %v4043, %v1422
      %v4076 = vmul.f32 %v4044, %v1427
      %v4077 = vmul.f32 %v4045, %v1432
      %v4078 = vmul.f32 %v4046, %v1437
      %v4079 = vmul.f32 %v4047, %v1442
      %v4080 = vmul.f32 %v4048, %v1447
      %v4081 = vmul.f32 %v4049, %v1452
      %v4082 = vmul.f32 %v4050, %v1457
      %v4083 = vmul.f32 %v4051, %v1462
      %v4084 = vmul.f32 %v4052, %v1467
      %v4085 = vmul.f32 %v4053, %v1472
      %v4086 = vmul.f32 %v4054, %v1477
      %v4087 = vpack.c.bf16 %v3209, %v3208
      %v4088 = vpack.c.bf16 %v3211, %v3210
      %v4089 = vpack.c.bf16 %v3213, %v3212
      %v4090 = vpack.c.bf16 %v3215, %v3214
      %v4091 = vpack.c.bf16 %v3217, %v3216
      %v4092 = vpack.c.bf16 %v3219, %v3218
      %v4093 = vpack.c.bf16 %v3221, %v3220
      %v4094 = vpack.c.bf16 %v3223, %v3222
      %v4095 = vpack.c.bf16 %v3225, %v3224
      %v4096 = vpack.c.bf16 %v3227, %v3226
      %v4097 = vpack.c.bf16 %v3229, %v3228
      %v4098 = vpack.c.bf16 %v3231, %v3230
      %v4099 = vpack.c.bf16 %v3233, %v3232
      %v4100 = vpack.c.bf16 %v3235, %v3234
      %v4101 = vpack.c.bf16 %v3237, %v3236
      %v4102 = vpack.c.bf16 %v3239, %v3238
      %s4103 = scalar_lea.vmem %s5, 8
      %v4104 = vld [vmem:[%s4103] sm:$0xf]
      %v4105 = vld [vmem:[%s4103 + $0x4] sm:$0xf]
      %v4106 = vpack.c.bf16 %v3241, %v3240
      %s4107 = scalar_lea.vmem %s5, 32
      %v4108 = vld [vmem:[%s4107] sm:$0xf]
      %v4109 = vld [vmem:[%s4107 + $0x4] sm:$0xf]
      %v4112 = vunpack.c.l.b16 %v4108
      %v4113 = vunpack.c.l.b16 %v4109
      %v4114 = vpack.c.b16 %v4113, %v4112
      %v4117 = vsel %vm3174, %v4088, 0
      %v4120 = vsel %vm3174, %v4089, 0
      %v4123 = vsel %vm3174, %v4090, 0
      %v4126 = vsel %vm3174, %v4091, 0
      %v4129 = vsel %vm3174, %v4092, 0
      %v4132 = vsel %vm3174, %v4093, 0
      %v4135 = vsel %vm3174, %v4094, 0
      %v4138 = vsel %vm3174, %v4095, 0
      %v4141 = vsel %vm3174, %v4096, 0
      %v4144 = vsel %vm3174, %v4097, 0
      %v4147 = vsel %vm3174, %v4098, 0
      %v4150 = vsel %vm3174, %v4099, 0
      %v4153 = vsel %vm3174, %v4100, 0
      %v4156 = vsel %vm3174, %v4101, 0
      %v4159 = vsel %vm3174, %v4102, 0
      %v4162 = vsel %vm3174, %v4106, 0
      %4164 = vmatprep.subr.bf16.mxu0 0
      %4165 = vmatpush1.bf16.msra.mxu0 %v4114
      %4166 = vmatprep.subr.bf16.mxu0 0
      %4167 = vmatpush1.bf16.msra.mxu0 0
      %4168 = vmatprep.subr.bf16.mxu0 0
      %4169 = vmatpush1.bf16.msra.mxu0 0
      %4170 = vmatprep.subr.bf16.mxu0 0
      %4171 = vmatpush1.bf16.msra.mxu0 0
      %4172 = vmatprep.subr.bf16.mxu0 0
      %4173 = vmatpush1.bf16.msra.mxu0 0
      %4174 = vmatprep.subr.bf16.mxu0 0
      %4175 = vmatpush1.bf16.msra.mxu0 0
      %4176 = vmatprep.subr.bf16.mxu0 0
      %4177 = vmatpush1.bf16.msra.mxu0 0
      %4178 = vmatprep.subr.bf16.mxu0 0
      %4179 = vmatpush1.bf16.msra.mxu0 0
      %4180 = vmatprep.subr.bf16.mxu0 0
      %4181 = vmatpush1.bf16.msra.mxu0 0
      %4182 = vmatprep.subr.bf16.mxu0 0
      %4183 = vmatpush1.bf16.msra.mxu0 0
      %4184 = vmatprep.subr.bf16.mxu0 0
      %4185 = vmatpush1.bf16.msra.mxu0 0
      %4186 = vmatprep.subr.bf16.mxu0 0
      %4187 = vmatpush1.bf16.msra.mxu0 0
      %4188 = vmatprep.subr.bf16.mxu0 0
      %4189 = vmatpush1.bf16.msra.mxu0 0
      %4190 = vmatprep.subr.bf16.mxu0 0
      %4191 = vmatpush1.bf16.msra.mxu0 0
      %4192 = vmatprep.subr.bf16.mxu0 0
      %4193 = vmatpush1.bf16.msra.mxu0 0
      %4194 = vmatprep.subr.bf16.mxu0 0
      %4195 = vmatpush1.bf16.msra.mxu0 0
      %4196 = vmatprep.mubr.bf16.mxu0 0
      %4197 = vmatmul.mubr.bf16.gmra.mrb[0].mxu0 %v4117
      %v4198 = vpop.f32.mrb[0].mxu0
      %v4199 = vadd.f32 0.0, %v4198
      %v4200 = vpop.f32.mrb[0].mxu0
      %v4201 = vpop.f32.mrb[0].mxu0
      %v4202 = vadd.f32 0.0, %v4201
      %v4203 = vpop.f32.mrb[0].mxu0
      %4204 = vmatprep.mubr.bf16.mxu0 0
      %4205 = vmatmul.mubr.bf16.gmra.mrb[0].mxu0 %v4120
      %v4206 = vpop.f32.mrb[0].mxu0
      %v4207 = vadd.f32 0.0, %v4206
      %v4208 = vpop.f32.mrb[0].mxu0
      %v4209 = vpop.f32.mrb[0].mxu0
      %v4210 = vadd.f32 0.0, %v4209
      %v4211 = vpop.f32.mrb[0].mxu0
      %4212 = vmatprep.mubr.bf16.mxu0 0
      %4213 = vmatmul.mubr.bf16.gmra.mrb[0].mxu0 %v4123
      %v4214 = vpop.f32.mrb[0].mxu0
      %v4215 = vadd.f32 0.0, %v4214
      %v4216 = vpop.f32.mrb[0].mxu0
      %v4217 = vpop.f32.mrb[0].mxu0
      %v4218 = vadd.f32 0.0, %v4217
      %v4219 = vpop.f32.mrb[0].mxu0
      %4220 = vmatprep.mubr.bf16.mxu0 0
      %4221 = vmatmul.mubr.bf16.gmra.mrb[0].mxu0 %v4126
      %v4222 = vpop.f32.mrb[0].mxu0
      %v4223 = vadd.f32 0.0, %v4222
      %v4224 = vpop.f32.mrb[0].mxu0
      %v4225 = vpop.f32.mrb[0].mxu0
      %v4226 = vadd.f32 0.0, %v4225
      %v4227 = vpop.f32.mrb[0].mxu0
      %4228 = vmatprep.mubr.bf16.mxu0 0
      %4229 = vmatmul.mubr.bf16.gmra.mrb[0].mxu0 %v4129
      %v4230 = vpop.f32.mrb[0].mxu0
      %v4231 = vadd.f32 0.0, %v4230
      %v4232 = vpop.f32.mrb[0].mxu0
      %v4233 = vpop.f32.mrb[0].mxu0
      %v4234 = vadd.f32 0.0, %v4233
      %v4235 = vpop.f32.mrb[0].mxu0
      %4236 = vmatprep.mubr.bf16.mxu0 0
      %4237 = vmatmul.mubr.bf16.gmra.mrb[0].mxu0 %v4132
      %v4238 = vpop.f32.mrb[0].mxu0
      %v4239 = vadd.f32 0.0, %v4238
      %v4240 = vpop.f32.mrb[0].mxu0
      %v4241 = vpop.f32.mrb[0].mxu0
      %v4242 = vadd.f32 0.0, %v4241
      %v4243 = vpop.f32.mrb[0].mxu0
      %4244 = vmatprep.mubr.bf16.mxu0 0
      %4245 = vmatmul.mubr.bf16.gmra.mrb[0].mxu0 %v4135
      %v4246 = vpop.f32.mrb[0].mxu0
      %v4247 = vadd.f32 0.0, %v4246
      %v4248 = vpop.f32.mrb[0].mxu0
      %v4249 = vpop.f32.mrb[0].mxu0
      %v4250 = vadd.f32 0.0, %v4249
      %v4251 = vpop.f32.mrb[0].mxu0
      %4252 = vmatprep.mubr.bf16.mxu0 0
      %4253 = vmatmul.mubr.bf16.gmra.mrb[0].mxu0 %v4138
      %v4254 = vpop.f32.mrb[0].mxu0
      %v4255 = vadd.f32 0.0, %v4254
      %v4256 = vpop.f32.mrb[0].mxu0
      %v4257 = vpop.f32.mrb[0].mxu0
      %v4258 = vadd.f32 0.0, %v4257
      %v4259 = vpop.f32.mrb[0].mxu0
      %4260 = vmatprep.mubr.bf16.mxu0 0
      %4261 = vmatmul.mubr.bf16.gmra.mrb[0].mxu0 %v4141
      %v4262 = vpop.f32.mrb[0].mxu0
      %v4263 = vadd.f32 0.0, %v4262
      %v4264 = vpop.f32.mrb[0].mxu0
      %v4265 = vpop.f32.mrb[0].mxu0
      %v4266 = vadd.f32 0.0, %v4265
      %v4267 = vpop.f32.mrb[0].mxu0
      %4268 = vmatprep.mubr.bf16.mxu0 0
      %4269 = vmatmul.mubr.bf16.gmra.mrb[0].mxu0 %v4144
      %v4270 = vpop.f32.mrb[0].mxu0
      %v4271 = vadd.f32 0.0, %v4270
      %v4272 = vpop.f32.mrb[0].mxu0
      %v4273 = vpop.f32.mrb[0].mxu0
      %v4274 = vadd.f32 0.0, %v4273
      %v4275 = vpop.f32.mrb[0].mxu0
      %4276 = vmatprep.mubr.bf16.mxu0 0
      %4277 = vmatmul.mubr.bf16.gmra.mrb[0].mxu0 %v4147
      %v4278 = vpop.f32.mrb[0].mxu0
      %v4279 = vadd.f32 0.0, %v4278
      %v4280 = vpop.f32.mrb[0].mxu0
      %v4281 = vpop.f32.mrb[0].mxu0
      %v4282 = vadd.f32 0.0, %v4281
      %v4283 = vpop.f32.mrb[0].mxu0
      %4284 = vmatprep.mubr.bf16.mxu0 0
      %4285 = vmatmul.mubr.bf16.gmra.mrb[0].mxu0 %v4150
      %v4286 = vpop.f32.mrb[0].mxu0
      %v4287 = vadd.f32 0.0, %v4286
      %v4288 = vpop.f32.mrb[0].mxu0
      %v4289 = vpop.f32.mrb[0].mxu0
      %v4290 = vadd.f32 0.0, %v4289
      %v4291 = vpop.f32.mrb[0].mxu0
      %4292 = vmatprep.mubr.bf16.mxu0 0
      %4293 = vmatmul.mubr.bf16.gmra.mrb[0].mxu0 %v4153
      %v4294 = vpop.f32.mrb[0].mxu0
      %v4295 = vadd.f32 0.0, %v4294
      %v4296 = vpop.f32.mrb[0].mxu0
      %v4297 = vpop.f32.mrb[0].mxu0
      %v4298 = vadd.f32 0.0, %v4297
      %v4299 = vpop.f32.mrb[0].mxu0
      %4300 = vmatprep.mubr.bf16.mxu0 0
      %4301 = vmatmul.mubr.bf16.gmra.mrb[0].mxu0 %v4156
      %v4302 = vpop.f32.mrb[0].mxu0
      %v4303 = vadd.f32 0.0, %v4302
      %v4304 = vpop.f32.mrb[0].mxu0
      %v4305 = vpop.f32.mrb[0].mxu0
      %v4306 = vadd.f32 0.0, %v4305
      %v4307 = vpop.f32.mrb[0].mxu0
      %4308 = vmatprep.mubr.bf16.mxu0 0
      %4309 = vmatmul.mubr.bf16.gmra.mrb[0].mxu0 %v4159
      %v4310 = vpop.f32.mrb[0].mxu0
      %v4311 = vadd.f32 0.0, %v4310
      %v4312 = vpop.f32.mrb[0].mxu0
      %v4313 = vpop.f32.mrb[0].mxu0
      %v4314 = vadd.f32 0.0, %v4313
      %v4315 = vpop.f32.mrb[0].mxu0
      %4316 = vmatprep.mubr.bf16.mxu0 0
      %4317 = vmatmul.mubr.bf16.gmra.mrb[0].mxu0 %v4162
      %v4318 = vpop.f32.mrb[0].mxu0
      %v4319 = vadd.f32 0.0, %v4318
      %v4320 = vpop.f32.mrb[0].mxu0
      %v4321 = vpop.f32.mrb[0].mxu0
      %v4322 = vadd.f32 0.0, %v4321
      %v4323 = vpop.f32.mrb[0].mxu0
      %4324 = vdwg.mxu0
      %v4327 = vunpack.c.l.b16 %v4104
      %v4328 = vunpack.c.l.b16 %v4105
      %v4329 = vpack.c.b16 %v4328, %v4327
      %v4332 = vsel %vm3174, %v4087, 0
      %4334 = vmatprep.subr.bf16.mxu0 0
      %4335 = vmatpush1.bf16.msra.mxu0 %v4329
      %4336 = vmatprep.subr.bf16.mxu0 0
      %4337 = vmatpush1.bf16.msra.mxu0 0
      %4338 = vmatprep.subr.bf16.mxu0 0
      %4339 = vmatpush1.bf16.msra.mxu0 0
      %4340 = vmatprep.subr.bf16.mxu0 0
      %4341 = vmatpush1.bf16.msra.mxu0 0
      %4342 = vmatprep.subr.bf16.mxu0 0
      %4343 = vmatpush1.bf16.msra.mxu0 0
      %4344 = vmatprep.subr.bf16.mxu0 0
      %4345 = vmatpush1.bf16.msra.mxu0 0
      %4346 = vmatprep.subr.bf16.mxu0 0
      %4347 = vmatpush1.bf16.msra.mxu0 0
      %4348 = vmatprep.subr.bf16.mxu0 0
      %4349 = vmatpush1.bf16.msra.mxu0 0
      %4350 = vmatprep.subr.bf16.mxu0 0
      %4351 = vmatpush1.bf16.msra.mxu0 0
      %4352 = vmatprep.subr.bf16.mxu0 0
      %4353 = vmatpush1.bf16.msra.mxu0 0
      %4354 = vmatprep.subr.bf16.mxu0 0
      %4355 = vmatpush1.bf16.msra.mxu0 0
      %4356 = vmatprep.subr.bf16.mxu0 0
      %4357 = vmatpush1.bf16.msra.mxu0 0
      %4358 = vmatprep.subr.bf16.mxu0 0
      %4359 = vmatpush1.bf16.msra.mxu0 0
      %4360 = vmatprep.subr.bf16.mxu0 0
      %4361 = vmatpush1.bf16.msra.mxu0 0
      %4362 = vmatprep.subr.bf16.mxu0 0
      %4363 = vmatpush1.bf16.msra.mxu0 0
      %4364 = vmatprep.subr.bf16.mxu0 0
      %4365 = vmatpush1.bf16.msra.mxu0 0
      %4366 = vmatprep.mubr.bf16.mxu0 0
      %4367 = vmatmul.mubr.bf16.gmra.mrb[0].mxu0 %v4332
      %v4368 = vpop.f32.mrb[0].mxu0
      %v4369 = vadd.f32 %v4199, %v4368
      %v4370 = vpop.f32.mrb[0].mxu0
      %v4371 = vpop.f32.mrb[0].mxu0
      %v4372 = vadd.f32 %v4202, %v4371
      %v4373 = vpop.f32.mrb[0].mxu0
      %4374 = vmatprep.mubr.bf16.mxu0 0
      %4375 = vmatmul.mubr.bf16.gmra.mrb[0].mxu0 %v4117
      %v4376 = vpop.f32.mrb[0].mxu0
      %v4377 = vadd.f32 %v4207, %v4376
      %v4378 = vpop.f32.mrb[0].mxu0
      %v4379 = vpop.f32.mrb[0].mxu0
      %v4380 = vadd.f32 %v4210, %v4379
      %v4381 = vpop.f32.mrb[0].mxu0
      %4382 = vmatprep.mubr.bf16.mxu0 0
      %4383 = vmatmul.mubr.bf16.gmra.mrb[0].mxu0 %v4120
      %v4384 = vpop.f32.mrb[0].mxu0
      %v4385 = vadd.f32 %v4215, %v4384
      %v4386 = vpop.f32.mrb[0].mxu0
      %v4387 = vpop.f32.mrb[0].mxu0
      %v4388 = vadd.f32 %v4218, %v4387
      %v4389 = vpop.f32.mrb[0].mxu0
      %4390 = vmatprep.mubr.bf16.mxu0 0
      %4391 = vmatmul.mubr.bf16.gmra.mrb[0].mxu0 %v4123
      %v4392 = vpop.f32.mrb[0].mxu0
      %v4393 = vadd.f32 %v4223, %v4392
      %v4394 = vpop.f32.mrb[0].mxu0
      %v4395 = vpop.f32.mrb[0].mxu0
      %v4396 = vadd.f32 %v4226, %v4395
      %v4397 = vpop.f32.mrb[0].mxu0
      %4398 = vmatprep.mubr.bf16.mxu0 0
      %4399 = vmatmul.mubr.bf16.gmra.mrb[0].mxu0 %v4126
      %v4400 = vpop.f32.mrb[0].mxu0
      %v4401 = vadd.f32 %v4231, %v4400
      %v4402 = vpop.f32.mrb[0].mxu0
      %v4403 = vpop.f32.mrb[0].mxu0
      %v4404 = vadd.f32 %v4234, %v4403
      %v4405 = vpop.f32.mrb[0].mxu0
      %4406 = vmatprep.mubr.bf16.mxu0 0
      %4407 = vmatmul.mubr.bf16.gmra.mrb[0].mxu0 %v4129
      %v4408 = vpop.f32.mrb[0].mxu0
      %v4409 = vadd.f32 %v4239, %v4408
      %v4410 = vpop.f32.mrb[0].mxu0
      %v4411 = vpop.f32.mrb[0].mxu0
      %v4412 = vadd.f32 %v4242, %v4411
      %v4413 = vpop.f32.mrb[0].mxu0
      %4414 = vmatprep.mubr.bf16.mxu0 0
      %4415 = vmatmul.mubr.bf16.gmra.mrb[0].mxu0 %v4132
      %v4416 = vpop.f32.mrb[0].mxu0
      %v4417 = vadd.f32 %v4247, %v4416
      %v4418 = vpop.f32.mrb[0].mxu0
      %v4419 = vpop.f32.mrb[0].mxu0
      %v4420 = vadd.f32 %v4250, %v4419
      %v4421 = vpop.f32.mrb[0].mxu0
      %4422 = vmatprep.mubr.bf16.mxu0 0
      %4423 = vmatmul.mubr.bf16.gmra.mrb[0].mxu0 %v4135
      %v4424 = vpop.f32.mrb[0].mxu0
      %v4425 = vadd.f32 %v4255, %v4424
      %v4426 = vpop.f32.mrb[0].mxu0
      %v4427 = vpop.f32.mrb[0].mxu0
      %v4428 = vadd.f32 %v4258, %v4427
      %v4429 = vpop.f32.mrb[0].mxu0
      %4430 = vmatprep.mubr.bf16.mxu0 0
      %4431 = vmatmul.mubr.bf16.gmra.mrb[0].mxu0 %v4138
      %v4432 = vpop.f32.mrb[0].mxu0
      %v4433 = vadd.f32 %v4263, %v4432
      %v4434 = vpop.f32.mrb[0].mxu0
      %v4435 = vpop.f32.mrb[0].mxu0
      %v4436 = vadd.f32 %v4266, %v4435
      %v4437 = vpop.f32.mrb[0].mxu0
      %4438 = vmatprep.mubr.bf16.mxu0 0
      %4439 = vmatmul.mubr.bf16.gmra.mrb[0].mxu0 %v4141
      %v4440 = vpop.f32.mrb[0].mxu0
      %v4441 = vadd.f32 %v4271, %v4440
      %v4442 = vpop.f32.mrb[0].mxu0
      %v4443 = vpop.f32.mrb[0].mxu0
      %v4444 = vadd.f32 %v4274, %v4443
      %v4445 = vpop.f32.mrb[0].mxu0
      %4446 = vmatprep.mubr.bf16.mxu0 0
      %4447 = vmatmul.mubr.bf16.gmra.mrb[0].mxu0 %v4144
      %v4448 = vpop.f32.mrb[0].mxu0
      %v4449 = vadd.f32 %v4279, %v4448
      %v4450 = vpop.f32.mrb[0].mxu0
      %v4451 = vpop.f32.mrb[0].mxu0
      %v4452 = vadd.f32 %v4282, %v4451
      %v4453 = vpop.f32.mrb[0].mxu0
      %4454 = vmatprep.mubr.bf16.mxu0 0
      %4455 = vmatmul.mubr.bf16.gmra.mrb[0].mxu0 %v4147
      %v4456 = vpop.f32.mrb[0].mxu0
      %v4457 = vadd.f32 %v4287, %v4456
      %v4458 = vpop.f32.mrb[0].mxu0
      %v4459 = vpop.f32.mrb[0].mxu0
      %v4460 = vadd.f32 %v4290, %v4459
      %v4461 = vpop.f32.mrb[0].mxu0
      %4462 = vmatprep.mubr.bf16.mxu0 0
      %4463 = vmatmul.mubr.bf16.gmra.mrb[0].mxu0 %v4150
      %v4464 = vpop.f32.mrb[0].mxu0
      %v4465 = vadd.f32 %v4295, %v4464
      %v4466 = vpop.f32.mrb[0].mxu0
      %v4467 = vpop.f32.mrb[0].mxu0
      %v4468 = vadd.f32 %v4298, %v4467
      %v4469 = vpop.f32.mrb[0].mxu0
      %4470 = vmatprep.mubr.bf16.mxu0 0
      %4471 = vmatmul.mubr.bf16.gmra.mrb[0].mxu0 %v4153
      %v4472 = vpop.f32.mrb[0].mxu0
      %v4473 = vadd.f32 %v4303, %v4472
      %v4474 = vpop.f32.mrb[0].mxu0
      %v4475 = vpop.f32.mrb[0].mxu0
      %v4476 = vadd.f32 %v4306, %v4475
      %v4477 = vpop.f32.mrb[0].mxu0
      %4478 = vmatprep.mubr.bf16.mxu0 0
      %4479 = vmatmul.mubr.bf16.gmra.mrb[0].mxu0 %v4156
      %v4480 = vpop.f32.mrb[0].mxu0
      %v4481 = vadd.f32 %v4311, %v4480
      %v4482 = vpop.f32.mrb[0].mxu0
      %v4483 = vpop.f32.mrb[0].mxu0
      %v4484 = vadd.f32 %v4314, %v4483
      %v4485 = vpop.f32.mrb[0].mxu0
      %4486 = vmatprep.mubr.bf16.mxu0 0
      %4487 = vmatmul.mubr.bf16.gmra.mrb[0].mxu0 %v4159
      %v4488 = vpop.f32.mrb[0].mxu0
      %v4489 = vadd.f32 %v4319, %v4488
      %v4490 = vpop.f32.mrb[0].mxu0
      %v4491 = vpop.f32.mrb[0].mxu0
      %v4492 = vadd.f32 %v4322, %v4491
      %v4493 = vpop.f32.mrb[0].mxu0
      %4494 = vdwg.mxu0
      %v4495 = vpack.c.bf16 %v3243, %v3242
      %s4496 = scalar_lea.vmem %s5, 56
      %v4497 = vld [vmem:[%s4496] sm:$0xf]
      %v4498 = vld [vmem:[%s4496 + $0x4] sm:$0xf]
      %v4501 = vunpack.c.l.b16 %v4497
      %v4502 = vunpack.c.l.b16 %v4498
      %v4503 = vpack.c.b16 %v4502, %v4501
      %v4506 = vsel %vm3174, %v4495, 0
      %4508 = vmatprep.subr.bf16.mxu0 0
      %4509 = vmatpush1.bf16.msra.mxu0 %v4503
      %4510 = vmatprep.subr.bf16.mxu0 0
      %4511 = vmatpush1.bf16.msra.mxu0 0
      %4512 = vmatprep.subr.bf16.mxu0 0
      %4513 = vmatpush1.bf16.msra.mxu0 0
      %4514 = vmatprep.subr.bf16.mxu0 0
      %4515 = vmatpush1.bf16.msra.mxu0 0
      %4516 = vmatprep.subr.bf16.mxu0 0
      %4517 = vmatpush1.bf16.msra.mxu0 0
      %4518 = vmatprep.subr.bf16.mxu0 0
      %4519 = vmatpush1.bf16.msra.mxu0 0
      %4520 = vmatprep.subr.bf16.mxu0 0
      %4521 = vmatpush1.bf16.msra.mxu0 0
      %4522 = vmatprep.subr.bf16.mxu0 0
      %4523 = vmatpush1.bf16.msra.mxu0 0
      %4524 = vmatprep.subr.bf16.mxu0 0
      %4525 = vmatpush1.bf16.msra.mxu0 0
      %4526 = vmatprep.subr.bf16.mxu0 0
      %4527 = vmatpush1.bf16.msra.mxu0 0
      %4528 = vmatprep.subr.bf16.mxu0 0
      %4529 = vmatpush1.bf16.msra.mxu0 0
      %4530 = vmatprep.subr.bf16.mxu0 0
      %4531 = vmatpush1.bf16.msra.mxu0 0
      %4532 = vmatprep.subr.bf16.mxu0 0
      %4533 = vmatpush1.bf16.msra.mxu0 0
      %4534 = vmatprep.subr.bf16.mxu0 0
      %4535 = vmatpush1.bf16.msra.mxu0 0
      %4536 = vmatprep.subr.bf16.mxu0 0
      %4537 = vmatpush1.bf16.msra.mxu0 0
      %4538 = vmatprep.subr.bf16.mxu0 0
      %4539 = vmatpush1.bf16.msra.mxu0 0
      %4540 = vmatprep.mubr.bf16.mxu0 0
      %4541 = vmatmul.mubr.bf16.gmra.mrb[0].mxu0 %v4120
      %v4542 = vpop.f32.mrb[0].mxu0
      %v4543 = vadd.f32 0.0, %v4542
      %v4544 = vpop.f32.mrb[0].mxu0
      %v4545 = vpop.f32.mrb[0].mxu0
      %v4546 = vadd.f32 0.0, %v4545
      %v4547 = vpop.f32.mrb[0].mxu0
      %4548 = vmatprep.mubr.bf16.mxu0 0
      %4549 = vmatmul.mubr.bf16.gmra.mrb[0].mxu0 %v4123
      %v4550 = vpop.f32.mrb[0].mxu0
      %v4551 = vadd.f32 0.0, %v4550
      %v4552 = vpop.f32.mrb[0].mxu0
      %v4553 = vpop.f32.mrb[0].mxu0
      %v4554 = vadd.f32 0.0, %v4553
      %v4555 = vpop.f32.mrb[0].mxu0
      %4556 = vmatprep.mubr.bf16.mxu0 0
      %4557 = vmatmul.mubr.bf16.gmra.mrb[0].mxu0 %v4126
      %v4558 = vpop.f32.mrb[0].mxu0
      %v4559 = vadd.f32 0.0, %v4558
      %v4560 = vpop.f32.mrb[0].mxu0
      %v4561 = vpop.f32.mrb[0].mxu0
      %v4562 = vadd.f32 0.0, %v4561
      %v4563 = vpop.f32.mrb[0].mxu0
      %4564 = vmatprep.mubr.bf16.mxu0 0
      %4565 = vmatmul.mubr.bf16.gmra.mrb[0].mxu0 %v4129
      %v4566 = vpop.f32.mrb[0].mxu0
      %v4567 = vadd.f32 0.0, %v4566
      %v4568 = vpop.f32.mrb[0].mxu0
      %v4569 = vpop.f32.mrb[0].mxu0
      %v4570 = vadd.f32 0.0, %v4569
      %v4571 = vpop.f32.mrb[0].mxu0
      %4572 = vmatprep.mubr.bf16.mxu0 0
      %4573 = vmatmul.mubr.bf16.gmra.mrb[0].mxu0 %v4132
      %v4574 = vpop.f32.mrb[0].mxu0
      %v4575 = vadd.f32 0.0, %v4574
      %v4576 = vpop.f32.mrb[0].mxu0
      %v4577 = vpop.f32.mrb[0].mxu0
      %v4578 = vadd.f32 0.0, %v4577
      %v4579 = vpop.f32.mrb[0].mxu0
      %4580 = vmatprep.mubr.bf16.mxu0 0
      %4581 = vmatmul.mubr.bf16.gmra.mrb[0].mxu0 %v4135
      %v4582 = vpop.f32.mrb[0].mxu0
      %v4583 = vadd.f32 0.0, %v4582
      %v4584 = vpop.f32.mrb[0].mxu0
      %v4585 = vpop.f32.mrb[0].mxu0
      %v4586 = vadd.f32 0.0, %v4585
      %v4587 = vpop.f32.mrb[0].mxu0
      %4588 = vmatprep.mubr.bf16.mxu0 0
      %4589 = vmatmul.mubr.bf16.gmra.mrb[0].mxu0 %v4138
      %v4590 = vpop.f32.mrb[0].mxu0
      %v4591 = vadd.f32 0.0, %v4590
      %v4592 = vpop.f32.mrb[0].mxu0
      %v4593 = vpop.f32.mrb[0].mxu0
      %v4594 = vadd.f32 0.0, %v4593
      %v4595 = vpop.f32.mrb[0].mxu0
      %4596 = vmatprep.mubr.bf16.mxu0 0
      %4597 = vmatmul.mubr.bf16.gmra.mrb[0].mxu0 %v4141
      %v4598 = vpop.f32.mrb[0].mxu0
      %v4599 = vadd.f32 0.0, %v4598
      %v4600 = vpop.f32.mrb[0].mxu0
      %v4601 = vpop.f32.mrb[0].mxu0
      %v4602 = vadd.f32 0.0, %v4601
      %v4603 = vpop.f32.mrb[0].mxu0
      %4604 = vmatprep.mubr.bf16.mxu0 0
      %4605 = vmatmul.mubr.bf16.gmra.mrb[0].mxu0 %v4144
      %v4606 = vpop.f32.mrb[0].mxu0
      %v4607 = vadd.f32 0.0, %v4606
      %v4608 = vpop.f32.mrb[0].mxu0
      %v4609 = vpop.f32.mrb[0].mxu0
      %v4610 = vadd.f32 0.0, %v4609
      %v4611 = vpop.f32.mrb[0].mxu0
      %4612 = vmatprep.mubr.bf16.mxu0 0
      %4613 = vmatmul.mubr.bf16.gmra.mrb[0].mxu0 %v4147
      %v4614 = vpop.f32.mrb[0].mxu0
      %v4615 = vadd.f32 0.0, %v4614
      %v4616 = vpop.f32.mrb[0].mxu0
      %v4617 = vpop.f32.mrb[0].mxu0
      %v4618 = vadd.f32 0.0, %v4617
      %v4619 = vpop.f32.mrb[0].mxu0
      %4620 = vmatprep.mubr.bf16.mxu0 0
      %4621 = vmatmul.mubr.bf16.gmra.mrb[0].mxu0 %v4150
      %v4622 = vpop.f32.mrb[0].mxu0
      %v4623 = vadd.f32 0.0, %v4622
      %v4624 = vpop.f32.mrb[0].mxu0
      %v4625 = vpop.f32.mrb[0].mxu0
      %v4626 = vadd.f32 0.0, %v4625
      %v4627 = vpop.f32.mrb[0].mxu0
      %4628 = vmatprep.mubr.bf16.mxu0 0
      %4629 = vmatmul.mubr.bf16.gmra.mrb[0].mxu0 %v4153
      %v4630 = vpop.f32.mrb[0].mxu0
      %v4631 = vadd.f32 0.0, %v4630
      %v4632 = vpop.f32.mrb[0].mxu0
      %v4633 = vpop.f32.mrb[0].mxu0
      %v4634 = vadd.f32 0.0, %v4633
      %v4635 = vpop.f32.mrb[0].mxu0
      %4636 = vmatprep.mubr.bf16.mxu0 0
      %4637 = vmatmul.mubr.bf16.gmra.mrb[0].mxu0 %v4156
      %v4638 = vpop.f32.mrb[0].mxu0
      %v4639 = vadd.f32 0.0, %v4638
      %v4640 = vpop.f32.mrb[0].mxu0
      %v4641 = vpop.f32.mrb[0].mxu0
      %v4642 = vadd.f32 0.0, %v4641
      %v4643 = vpop.f32.mrb[0].mxu0
      %4644 = vmatprep.mubr.bf16.mxu0 0
      %4645 = vmatmul.mubr.bf16.gmra.mrb[0].mxu0 %v4159
      %v4646 = vpop.f32.mrb[0].mxu0
      %v4647 = vadd.f32 0.0, %v4646
      %v4648 = vpop.f32.mrb[0].mxu0
      %v4649 = vpop.f32.mrb[0].mxu0
      %v4650 = vadd.f32 0.0, %v4649
      %v4651 = vpop.f32.mrb[0].mxu0
      %4652 = vmatprep.mubr.bf16.mxu0 0
      %4653 = vmatmul.mubr.bf16.gmra.mrb[0].mxu0 %v4162
      %v4654 = vpop.f32.mrb[0].mxu0
      %v4655 = vadd.f32 0.0, %v4654
      %v4656 = vpop.f32.mrb[0].mxu0
      %v4657 = vpop.f32.mrb[0].mxu0
      %v4658 = vadd.f32 0.0, %v4657
      %v4659 = vpop.f32.mrb[0].mxu0
      %4660 = vmatprep.mubr.bf16.mxu0 0
      %4661 = vmatmul.mubr.bf16.gmra.mrb[0].mxu0 %v4506
      %v4662 = vpop.f32.mrb[0].mxu0
      %v4663 = vadd.f32 0.0, %v4662
      %v4664 = vpop.f32.mrb[0].mxu0
      %v4665 = vpop.f32.mrb[0].mxu0
      %v4666 = vadd.f32 0.0, %v4665
      %v4667 = vpop.f32.mrb[0].mxu0
      %4668 = vdwg.mxu0
      %v4669 = vadd.f32 %v4369, %v4543
      %v4670 = vadd.f32 %v4372, %v4546
      %v4671 = vadd.f32 %v4377, %v4551
      %v4672 = vadd.f32 %v4380, %v4554
      %v4673 = vadd.f32 %v4385, %v4559
      %v4674 = vadd.f32 %v4388, %v4562
      %v4675 = vadd.f32 %v4393, %v4567
      %v4676 = vadd.f32 %v4396, %v4570
      %v4677 = vadd.f32 %v4401, %v4575
      %v4678 = vadd.f32 %v4404, %v4578
      %v4679 = vadd.f32 %v4409, %v4583
      %v4680 = vadd.f32 %v4412, %v4586
      %v4681 = vadd.f32 %v4417, %v4591
      %v4682 = vadd.f32 %v4420, %v4594
      %v4683 = vadd.f32 %v4425, %v4599
      %v4684 = vadd.f32 %v4428, %v4602
      %v4685 = vadd.f32 %v4433, %v4607
      %v4686 = vadd.f32 %v4436, %v4610
      %v4687 = vadd.f32 %v4441, %v4615
      %v4688 = vadd.f32 %v4444, %v4618
      %v4689 = vadd.f32 %v4449, %v4623
      %v4690 = vadd.f32 %v4452, %v4626
      %v4691 = vadd.f32 %v4457, %v4631
      %v4692 = vadd.f32 %v4460, %v4634
      %v4693 = vadd.f32 %v4465, %v4639
      %v4694 = vadd.f32 %v4468, %v4642
      %v4695 = vadd.f32 %v4473, %v4647
      %v4696 = vadd.f32 %v4476, %v4650
      %v4697 = vadd.f32 %v4481, %v4655
      %v4698 = vadd.f32 %v4484, %v4658
      %v4699 = vadd.f32 %v4489, %v4663
      %v4700 = vadd.f32 %v4492, %v4666
      %v4701 = vadd.f32 %v4055, %v4669
      %v4702 = vadd.f32 %v4056, %v4670
      %v4703 = vadd.f32 %v4057, %v4671
      %v4704 = vadd.f32 %v4058, %v4672
      %v4705 = vadd.f32 %v4059, %v4673
      %v4706 = vadd.f32 %v4060, %v4674
      %v4707 = vadd.f32 %v4061, %v4675
      %v4708 = vadd.f32 %v4062, %v4676
      %v4709 = vadd.f32 %v4063, %v4677
      %v4710 = vadd.f32 %v4064, %v4678
      %v4711 = vadd.f32 %v4065, %v4679
      %v4712 = vadd.f32 %v4066, %v4680
      %v4713 = vadd.f32 %v4067, %v4681
      %v4714 = vadd.f32 %v4068, %v4682
      %v4715 = vadd.f32 %v4069, %v4683
      %v4716 = vadd.f32 %v4070, %v4684
      %v4717 = vadd.f32 %v4071, %v4685
      %v4718 = vadd.f32 %v4072, %v4686
      %v4719 = vadd.f32 %v4073, %v4687
      %v4720 = vadd.f32 %v4074, %v4688
      %v4721 = vadd.f32 %v4075, %v4689
      %v4722 = vadd.f32 %v4076, %v4690
      %v4723 = vadd.f32 %v4077, %v4691
      %v4724 = vadd.f32 %v4078, %v4692
      %v4725 = vadd.f32 %v4079, %v4693
      %v4726 = vadd.f32 %v4080, %v4694
      %v4727 = vadd.f32 %v4081, %v4695
      %v4728 = vadd.f32 %v4082, %v4696
      %v4729 = vadd.f32 %v4083, %v4697
      %v4730 = vadd.f32 %v4084, %v4698
      %v4731 = vadd.f32 %v4085, %v4699
      %v4732 = vadd.f32 %v4086, %v4700
      %v4733 = vpack.c.bf16 %v3240, %v3240
      %s4734 = scalar_lea.vmem %s5, 16
      %v4735 = vld [vmem:[%s4734] sm:$0xf]
      %v4736 = vld [vmem:[%s4734 + $0x4] sm:$0xf]
      %v4737 = vpack.c.bf16 %v3242, %v3242
      %s4738 = scalar_lea.vmem %s5, 40
      %v4739 = vld [vmem:[%s4738] sm:$0xf]
      %v4740 = vld [vmem:[%s4738 + $0x4] sm:$0xf]
      %v4741 = vshrl.u32 %v4088, 16
      %v4743 = vshll.u32 %v4088, 16
      %v4745 = vrot.slane %v4743, 1
      %v4746 = vor.u32 %v4741, %v4745
      %v4747 = vshll.u32 %v4089, 16
      %v4749 = vrot.slane %v4747, 1
      %v4750 = vsel %vm2151, %v4746, %v4749
      %v4751 = vshrl.u32 %v4089, 16
      %v4753 = vor.u32 %v4751, %v4749
      %v4754 = vshll.u32 %v4090, 16
      %v4756 = vrot.slane %v4754, 1
      %v4757 = vsel %vm2151, %v4753, %v4756
      %v4758 = vshrl.u32 %v4090, 16
      %v4760 = vor.u32 %v4758, %v4756
      %v4761 = vshll.u32 %v4091, 16
      %v4763 = vrot.slane %v4761, 1
      %v4764 = vsel %vm2151, %v4760, %v4763
      %v4765 = vshrl.u32 %v4091, 16
      %v4767 = vor.u32 %v4765, %v4763
      %v4768 = vshll.u32 %v4092, 16
      %v4770 = vrot.slane %v4768, 1
      %v4771 = vsel %vm2151, %v4767, %v4770
      %v4772 = vshrl.u32 %v4092, 16
      %v4774 = vor.u32 %v4772, %v4770
      %v4775 = vshll.u32 %v4093, 16
      %v4777 = vrot.slane %v4775, 1
      %v4778 = vsel %vm2151, %v4774, %v4777
      %v4779 = vshrl.u32 %v4093, 16
      %v4781 = vor.u32 %v4779, %v4777
      %v4782 = vshll.u32 %v4094, 16
      %v4784 = vrot.slane %v4782, 1
      %v4785 = vsel %vm2151, %v4781, %v4784
      %v4786 = vshrl.u32 %v4094, 16
      %v4788 = vor.u32 %v4786, %v4784
      %v4789 = vshll.u32 %v4095, 16
      %v4791 = vrot.slane %v4789, 1
      %v4792 = vsel %vm2151, %v4788, %v4791
      %v4793 = vshrl.u32 %v4095, 16
      %v4795 = vor.u32 %v4793, %v4791
      %v4796 = vshll.u32 %v4096, 16
      %v4798 = vrot.slane %v4796, 1
      %v4799 = vsel %vm2151, %v4795, %v4798
      %v4800 = vshrl.u32 %v4096, 16
      %v4802 = vor.u32 %v4800, %v4798
      %v4803 = vshll.u32 %v4097, 16
      %v4805 = vrot.slane %v4803, 1
      %v4806 = vsel %vm2151, %v4802, %v4805
      %v4807 = vshrl.u32 %v4097, 16
      %v4809 = vor.u32 %v4807, %v4805
      %v4810 = vshll.u32 %v4098, 16
      %v4812 = vrot.slane %v4810, 1
      %v4813 = vsel %vm2151, %v4809, %v4812
      %v4814 = vshrl.u32 %v4098, 16
      %v4816 = vor.u32 %v4814, %v4812
      %v4817 = vshll.u32 %v4099, 16
      %v4819 = vrot.slane %v4817, 1
      %v4820 = vsel %vm2151, %v4816, %v4819
      %v4821 = vshrl.u32 %v4099, 16
      %v4823 = vor.u32 %v4821, %v4819
      %v4824 = vshll.u32 %v4100, 16
      %v4826 = vrot.slane %v4824, 1
      %v4827 = vsel %vm2151, %v4823, %v4826
      %v4828 = vshrl.u32 %v4100, 16
      %v4830 = vor.u32 %v4828, %v4826
      %v4831 = vshll.u32 %v4101, 16
      %v4833 = vrot.slane %v4831, 1
      %v4834 = vsel %vm2151, %v4830, %v4833
      %v4835 = vshrl.u32 %v4101, 16
      %v4837 = vor.u32 %v4835, %v4833
      %v4838 = vshll.u32 %v4102, 16
      %v4840 = vrot.slane %v4838, 1
      %v4841 = vsel %vm2151, %v4837, %v4840
      %v4842 = vshrl.u32 %v4102, 16
      %v4844 = vor.u32 %v4842, %v4840
      %v4845 = vshll.u32 %v4106, 16
      %v4847 = vrot.slane %v4845, 1
      %v4848 = vsel %vm2151, %v4844, %v4847
      %v4849 = vshrl.u32 %v4106, 16
      %v4851 = vor.u32 %v4849, %v4847
      %v4853 = vshll.u32 %v4737, 16
      %v4855 = vrot.slane %v4853, 1
      %v4856 = vsel %vm2151, %v4851, %v4855
      %v4859 = vunpack.c.l.b16 %v4739
      %v4860 = vunpack.c.l.b16 %v4740
      %v4861 = vpack.c.b16 %v4860, %v4859
      %v4864 = vsel %vm3174, %v4750, 0
      %v4867 = vsel %vm3174, %v4757, 0
      %v4870 = vsel %vm3174, %v4764, 0
      %v4873 = vsel %vm3174, %v4771, 0
      %v4876 = vsel %vm3174, %v4778, 0
      %v4879 = vsel %vm3174, %v4785, 0
      %v4882 = vsel %vm3174, %v4792, 0
      %v4885 = vsel %vm3174, %v4799, 0
      %v4888 = vsel %vm3174, %v4806, 0
      %v4891 = vsel %vm3174, %v4813, 0
      %v4894 = vsel %vm3174, %v4820, 0
      %v4897 = vsel %vm3174, %v4827, 0
      %v4900 = vsel %vm3174, %v4834, 0
      %v4903 = vsel %vm3174, %v4841, 0
      %v4906 = vsel %vm3174, %v4848, 0
      %v4909 = vsel %vm3174, %v4856, 0
      %4911 = vmatprep.subr.bf16.mxu0 0
      %4912 = vmatpush1.bf16.msra.mxu0 %v4861
      %4913 = vmatprep.subr.bf16.mxu0 0
      %4914 = vmatpush1.bf16.msra.mxu0 0
      %4915 = vmatprep.subr.bf16.mxu0 0
      %4916 = vmatpush1.bf16.msra.mxu0 0
      %4917 = vmatprep.subr.bf16.mxu0 0
      %4918 = vmatpush1.bf16.msra.mxu0 0
      %4919 = vmatprep.subr.bf16.mxu0 0
      %4920 = vmatpush1.bf16.msra.mxu0 0
      %4921 = vmatprep.subr.bf16.mxu0 0
      %4922 = vmatpush1.bf16.msra.mxu0 0
      %4923 = vmatprep.subr.bf16.mxu0 0
      %4924 = vmatpush1.bf16.msra.mxu0 0
      %4925 = vmatprep.subr.bf16.mxu0 0
      %4926 = vmatpush1.bf16.msra.mxu0 0
      %4927 = vmatprep.subr.bf16.mxu0 0
      %4928 = vmatpush1.bf16.msra.mxu0 0
      %4929 = vmatprep.subr.bf16.mxu0 0
      %4930 = vmatpush1.bf16.msra.mxu0 0
      %4931 = vmatprep.subr.bf16.mxu0 0
      %4932 = vmatpush1.bf16.msra.mxu0 0
      %4933 = vmatprep.subr.bf16.mxu0 0
      %4934 = vmatpush1.bf16.msra.mxu0 0
      %4935 = vmatprep.subr.bf16.mxu0 0
      %4936 = vmatpush1.bf16.msra.mxu0 0
      %4937 = vmatprep.subr.bf16.mxu0 0
      %4938 = vmatpush1.bf16.msra.mxu0 0
      %4939 = vmatprep.subr.bf16.mxu0 0
      %4940 = vmatpush1.bf16.msra.mxu0 0
      %4941 = vmatprep.subr.bf16.mxu0 0
      %4942 = vmatpush1.bf16.msra.mxu0 0
      %4943 = vmatprep.mubr.bf16.mxu0 0
      %4944 = vmatmul.mubr.bf16.gmra.mrb[0].mxu0 %v4864
      %v4945 = vpop.f32.mrb[0].mxu0
      %v4946 = vadd.f32 0.0, %v4945
      %v4947 = vpop.f32.mrb[0].mxu0
      %v4948 = vpop.f32.mrb[0].mxu0
      %v4949 = vadd.f32 0.0, %v4948
      %v4950 = vpop.f32.mrb[0].mxu0
      %4951 = vmatprep.mubr.bf16.mxu0 0
      %4952 = vmatmul.mubr.bf16.gmra.mrb[0].mxu0 %v4867
      %v4953 = vpop.f32.mrb[0].mxu0
      %v4954 = vadd.f32 0.0, %v4953
      %v4955 = vpop.f32.mrb[0].mxu0
      %v4956 = vpop.f32.mrb[0].mxu0
      %v4957 = vadd.f32 0.0, %v4956
      %v4958 = vpop.f32.mrb[0].mxu0
      %4959 = vmatprep.mubr.bf16.mxu0 0
      %4960 = vmatmul.mubr.bf16.gmra.mrb[0].mxu0 %v4870
      %v4961 = vpop.f32.mrb[0].mxu0
      %v4962 = vadd.f32 0.0, %v4961
      %v4963 = vpop.f32.mrb[0].mxu0
      %v4964 = vpop.f32.mrb[0].mxu0
      %v4965 = vadd.f32 0.0, %v4964
      %v4966 = vpop.f32.mrb[0].mxu0
      %4967 = vmatprep.mubr.bf16.mxu0 0
      %4968 = vmatmul.mubr.bf16.gmra.mrb[0].mxu0 %v4873
      %v4969 = vpop.f32.mrb[0].mxu0
      %v4970 = vadd.f32 0.0, %v4969
      %v4971 = vpop.f32.mrb[0].mxu0
      %v4972 = vpop.f32.mrb[0].mxu0
      %v4973 = vadd.f32 0.0, %v4972
      %v4974 = vpop.f32.mrb[0].mxu0
      %4975 = vmatprep.mubr.bf16.mxu0 0
      %4976 = vmatmul.mubr.bf16.gmra.mrb[0].mxu0 %v4876
      %v4977 = vpop.f32.mrb[0].mxu0
      %v4978 = vadd.f32 0.0, %v4977
      %v4979 = vpop.f32.mrb[0].mxu0
      %v4980 = vpop.f32.mrb[0].mxu0
      %v4981 = vadd.f32 0.0, %v4980
      %v4982 = vpop.f32.mrb[0].mxu0
      %4983 = vmatprep.mubr.bf16.mxu0 0
      %4984 = vmatmul.mubr.bf16.gmra.mrb[0].mxu0 %v4879
      %v4985 = vpop.f32.mrb[0].mxu0
      %v4986 = vadd.f32 0.0, %v4985
      %v4987 = vpop.f32.mrb[0].mxu0
      %v4988 = vpop.f32.mrb[0].mxu0
      %v4989 = vadd.f32 0.0, %v4988
      %v4990 = vpop.f32.mrb[0].mxu0
      %4991 = vmatprep.mubr.bf16.mxu0 0
      %4992 = vmatmul.mubr.bf16.gmra.mrb[0].mxu0 %v4882
      %v4993 = vpop.f32.mrb[0].mxu0
      %v4994 = vadd.f32 0.0, %v4993
      %v4995 = vpop.f32.mrb[0].mxu0
      %v4996 = vpop.f32.mrb[0].mxu0
      %v4997 = vadd.f32 0.0, %v4996
      %v4998 = vpop.f32.mrb[0].mxu0
      %4999 = vmatprep.mubr.bf16.mxu0 0
      %5000 = vmatmul.mubr.bf16.gmra.mrb[0].mxu0 %v4885
      %v5001 = vpop.f32.mrb[0].mxu0
      %v5002 = vadd.f32 0.0, %v5001
      %v5003 = vpop.f32.mrb[0].mxu0
      %v5004 = vpop.f32.mrb[0].mxu0
      %v5005 = vadd.f32 0.0, %v5004
      %v5006 = vpop.f32.mrb[0].mxu0
      %5007 = vmatprep.mubr.bf16.mxu0 0
      %5008 = vmatmul.mubr.bf16.gmra.mrb[0].mxu0 %v4888
      %v5009 = vpop.f32.mrb[0].mxu0
      %v5010 = vadd.f32 0.0, %v5009
      %v5011 = vpop.f32.mrb[0].mxu0
      %v5012 = vpop.f32.mrb[0].mxu0
      %v5013 = vadd.f32 0.0, %v5012
      %v5014 = vpop.f32.mrb[0].mxu0
      %5015 = vmatprep.mubr.bf16.mxu0 0
      %5016 = vmatmul.mubr.bf16.gmra.mrb[0].mxu0 %v4891
      %v5017 = vpop.f32.mrb[0].mxu0
      %v5018 = vadd.f32 0.0, %v5017
      %v5019 = vpop.f32.mrb[0].mxu0
      %v5020 = vpop.f32.mrb[0].mxu0
      %v5021 = vadd.f32 0.0, %v5020
      %v5022 = vpop.f32.mrb[0].mxu0
      %5023 = vmatprep.mubr.bf16.mxu0 0
      %5024 = vmatmul.mubr.bf16.gmra.mrb[0].mxu0 %v4894
      %v5025 = vpop.f32.mrb[0].mxu0
      %v5026 = vadd.f32 0.0, %v5025
      %v5027 = vpop.f32.mrb[0].mxu0
      %v5028 = vpop.f32.mrb[0].mxu0
      %v5029 = vadd.f32 0.0, %v5028
      %v5030 = vpop.f32.mrb[0].mxu0
      %5031 = vmatprep.mubr.bf16.mxu0 0
      %5032 = vmatmul.mubr.bf16.gmra.mrb[0].mxu0 %v4897
      %v5033 = vpop.f32.mrb[0].mxu0
      %v5034 = vadd.f32 0.0, %v5033
      %v5035 = vpop.f32.mrb[0].mxu0
      %v5036 = vpop.f32.mrb[0].mxu0
      %v5037 = vadd.f32 0.0, %v5036
      %v5038 = vpop.f32.mrb[0].mxu0
      %5039 = vmatprep.mubr.bf16.mxu0 0
      %5040 = vmatmul.mubr.bf16.gmra.mrb[0].mxu0 %v4900
      %v5041 = vpop.f32.mrb[0].mxu0
      %v5042 = vadd.f32 0.0, %v5041
      %v5043 = vpop.f32.mrb[0].mxu0
      %v5044 = vpop.f32.mrb[0].mxu0
      %v5045 = vadd.f32 0.0, %v5044
      %v5046 = vpop.f32.mrb[0].mxu0
      %5047 = vmatprep.mubr.bf16.mxu0 0
      %5048 = vmatmul.mubr.bf16.gmra.mrb[0].mxu0 %v4903
      %v5049 = vpop.f32.mrb[0].mxu0
      %v5050 = vadd.f32 0.0, %v5049
      %v5051 = vpop.f32.mrb[0].mxu0
      %v5052 = vpop.f32.mrb[0].mxu0
      %v5053 = vadd.f32 0.0, %v5052
      %v5054 = vpop.f32.mrb[0].mxu0
      %5055 = vmatprep.mubr.bf16.mxu0 0
      %5056 = vmatmul.mubr.bf16.gmra.mrb[0].mxu0 %v4906
      %v5057 = vpop.f32.mrb[0].mxu0
      %v5058 = vadd.f32 0.0, %v5057
      %v5059 = vpop.f32.mrb[0].mxu0
      %v5060 = vpop.f32.mrb[0].mxu0
      %v5061 = vadd.f32 0.0, %v5060
      %v5062 = vpop.f32.mrb[0].mxu0
      %5063 = vmatprep.mubr.bf16.mxu0 0
      %5064 = vmatmul.mubr.bf16.gmra.mrb[0].mxu0 %v4909
      %v5065 = vpop.f32.mrb[0].mxu0
      %v5066 = vadd.f32 0.0, %v5065
      %v5067 = vpop.f32.mrb[0].mxu0
      %v5068 = vpop.f32.mrb[0].mxu0
      %v5069 = vadd.f32 0.0, %v5068
      %v5070 = vpop.f32.mrb[0].mxu0
      %5071 = vdwg.mxu0
      %v5072 = vshrl.u32 %v4087, 16
      %v5074 = vshll.u32 %v4087, 16
      %v5076 = vrot.slane %v5074, 1
      %v5077 = vor.u32 %v5072, %v5076
      %v5078 = vsel %vm2151, %v5077, %v4745
      %v5080 = vshll.u32 %v4733, 16
      %v5082 = vrot.slane %v5080, 1
      %v5083 = vsel %vm2151, %v4844, %v5082
      %v5086 = vunpack.c.l.b16 %v4735
      %v5087 = vunpack.c.l.b16 %v4736
      %v5088 = vpack.c.b16 %v5087, %v5086
      %v5091 = vsel %vm3174, %v5078, 0
      %v5094 = vsel %vm3174, %v5083, 0
      %5096 = vmatprep.subr.bf16.mxu0 0
      %5097 = vmatpush1.bf16.msra.mxu0 %v5088
      %5098 = vmatprep.subr.bf16.mxu0 0
      %5099 = vmatpush1.bf16.msra.mxu0 0
      %5100 = vmatprep.subr.bf16.mxu0 0
      %5101 = vmatpush1.bf16.msra.mxu0 0
      %5102 = vmatprep.subr.bf16.mxu0 0
      %5103 = vmatpush1.bf16.msra.mxu0 0
      %5104 = vmatprep.subr.bf16.mxu0 0
      %5105 = vmatpush1.bf16.msra.mxu0 0
      %5106 = vmatprep.subr.bf16.mxu0 0
      %5107 = vmatpush1.bf16.msra.mxu0 0
      %5108 = vmatprep.subr.bf16.mxu0 0
      %5109 = vmatpush1.bf16.msra.mxu0 0
      %5110 = vmatprep.subr.bf16.mxu0 0
      %5111 = vmatpush1.bf16.msra.mxu0 0
      %5112 = vmatprep.subr.bf16.mxu0 0
      %5113 = vmatpush1.bf16.msra.mxu0 0
      %5114 = vmatprep.subr.bf16.mxu0 0
      %5115 = vmatpush1.bf16.msra.mxu0 0
      %5116 = vmatprep.subr.bf16.mxu0 0
      %5117 = vmatpush1.bf16.msra.mxu0 0
      %5118 = vmatprep.subr.bf16.mxu0 0
      %5119 = vmatpush1.bf16.msra.mxu0 0
      %5120 = vmatprep.subr.bf16.mxu0 0
      %5121 = vmatpush1.bf16.msra.mxu0 0
      %5122 = vmatprep.subr.bf16.mxu0 0
      %5123 = vmatpush1.bf16.msra.mxu0 0
      %5124 = vmatprep.subr.bf16.mxu0 0
      %5125 = vmatpush1.bf16.msra.mxu0 0
      %5126 = vmatprep.subr.bf16.mxu0 0
      %5127 = vmatpush1.bf16.msra.mxu0 0
      %5128 = vmatprep.mubr.bf16.mxu0 0
      %5129 = vmatmul.mubr.bf16.gmra.mrb[0].mxu0 %v5091
      %v5130 = vpop.f32.mrb[0].mxu0
      %v5131 = vadd.f32 %v4946, %v5130
      %v5132 = vpop.f32.mrb[0].mxu0
      %v5133 = vpop.f32.mrb[0].mxu0
      %v5134 = vadd.f32 %v4949, %v5133
      %v5135 = vpop.f32.mrb[0].mxu0
      %5136 = vmatprep.mubr.bf16.mxu0 0
      %5137 = vmatmul.mubr.bf16.gmra.mrb[0].mxu0 %v4864
      %v5138 = vpop.f32.mrb[0].mxu0
      %v5139 = vadd.f32 %v4954, %v5138
      %v5140 = vpop.f32.mrb[0].mxu0
      %v5141 = vpop.f32.mrb[0].mxu0
      %v5142 = vadd.f32 %v4957, %v5141
      %v5143 = vpop.f32.mrb[0].mxu0
      %5144 = vmatprep.mubr.bf16.mxu0 0
      %5145 = vmatmul.mubr.bf16.gmra.mrb[0].mxu0 %v4867
      %v5146 = vpop.f32.mrb[0].mxu0
      %v5147 = vadd.f32 %v4962, %v5146
      %v5148 = vpop.f32.mrb[0].mxu0
      %v5149 = vpop.f32.mrb[0].mxu0
      %v5150 = vadd.f32 %v4965, %v5149
      %v5151 = vpop.f32.mrb[0].mxu0
      %5152 = vmatprep.mubr.bf16.mxu0 0
      %5153 = vmatmul.mubr.bf16.gmra.mrb[0].mxu0 %v4870
      %v5154 = vpop.f32.mrb[0].mxu0
      %v5155 = vadd.f32 %v4970, %v5154
      %v5156 = vpop.f32.mrb[0].mxu0
      %v5157 = vpop.f32.mrb[0].mxu0
      %v5158 = vadd.f32 %v4973, %v5157
      %v5159 = vpop.f32.mrb[0].mxu0
      %5160 = vmatprep.mubr.bf16.mxu0 0
      %5161 = vmatmul.mubr.bf16.gmra.mrb[0].mxu0 %v4873
      %v5162 = vpop.f32.mrb[0].mxu0
      %v5163 = vadd.f32 %v4978, %v5162
      %v5164 = vpop.f32.mrb[0].mxu0
      %v5165 = vpop.f32.mrb[0].mxu0
      %v5166 = vadd.f32 %v4981, %v5165
      %v5167 = vpop.f32.mrb[0].mxu0
      %5168 = vmatprep.mubr.bf16.mxu0 0
      %5169 = vmatmul.mubr.bf16.gmra.mrb[0].mxu0 %v4876
      %v5170 = vpop.f32.mrb[0].mxu0
      %v5171 = vadd.f32 %v4986, %v5170
      %v5172 = vpop.f32.mrb[0].mxu0
      %v5173 = vpop.f32.mrb[0].mxu0
      %v5174 = vadd.f32 %v4989, %v5173
      %v5175 = vpop.f32.mrb[0].mxu0
      %5176 = vmatprep.mubr.bf16.mxu0 0
      %5177 = vmatmul.mubr.bf16.gmra.mrb[0].mxu0 %v4879
      %v5178 = vpop.f32.mrb[0].mxu0
      %v5179 = vadd.f32 %v4994, %v5178
      %v5180 = vpop.f32.mrb[0].mxu0
      %v5181 = vpop.f32.mrb[0].mxu0
      %v5182 = vadd.f32 %v4997, %v5181
      %v5183 = vpop.f32.mrb[0].mxu0
      %5184 = vmatprep.mubr.bf16.mxu0 0
      %5185 = vmatmul.mubr.bf16.gmra.mrb[0].mxu0 %v4882
      %v5186 = vpop.f32.mrb[0].mxu0
      %v5187 = vadd.f32 %v5002, %v5186
      %v5188 = vpop.f32.mrb[0].mxu0
      %v5189 = vpop.f32.mrb[0].mxu0
      %v5190 = vadd.f32 %v5005, %v5189
      %v5191 = vpop.f32.mrb[0].mxu0
      %5192 = vmatprep.mubr.bf16.mxu0 0
      %5193 = vmatmul.mubr.bf16.gmra.mrb[0].mxu0 %v4885
      %v5194 = vpop.f32.mrb[0].mxu0
      %v5195 = vadd.f32 %v5010, %v5194
      %v5196 = vpop.f32.mrb[0].mxu0
      %v5197 = vpop.f32.mrb[0].mxu0
      %v5198 = vadd.f32 %v5013, %v5197
      %v5199 = vpop.f32.mrb[0].mxu0
      %5200 = vmatprep.mubr.bf16.mxu0 0
      %5201 = vmatmul.mubr.bf16.gmra.mrb[0].mxu0 %v4888
      %v5202 = vpop.f32.mrb[0].mxu0
      %v5203 = vadd.f32 %v5018, %v5202
      %v5204 = vpop.f32.mrb[0].mxu0
      %v5205 = vpop.f32.mrb[0].mxu0
      %v5206 = vadd.f32 %v5021, %v5205
      %v5207 = vpop.f32.mrb[0].mxu0
      %5208 = vmatprep.mubr.bf16.mxu0 0
      %5209 = vmatmul.mubr.bf16.gmra.mrb[0].mxu0 %v4891
      %v5210 = vpop.f32.mrb[0].mxu0
      %v5211 = vadd.f32 %v5026, %v5210
      %v5212 = vpop.f32.mrb[0].mxu0
      %v5213 = vpop.f32.mrb[0].mxu0
      %v5214 = vadd.f32 %v5029, %v5213
      %v5215 = vpop.f32.mrb[0].mxu0
      %5216 = vmatprep.mubr.bf16.mxu0 0
      %5217 = vmatmul.mubr.bf16.gmra.mrb[0].mxu0 %v4894
      %v5218 = vpop.f32.mrb[0].mxu0
      %v5219 = vadd.f32 %v5034, %v5218
      %v5220 = vpop.f32.mrb[0].mxu0
      %v5221 = vpop.f32.mrb[0].mxu0
      %v5222 = vadd.f32 %v5037, %v5221
      %v5223 = vpop.f32.mrb[0].mxu0
      %5224 = vmatprep.mubr.bf16.mxu0 0
      %5225 = vmatmul.mubr.bf16.gmra.mrb[0].mxu0 %v4897
      %v5226 = vpop.f32.mrb[0].mxu0
      %v5227 = vadd.f32 %v5042, %v5226
      %v5228 = vpop.f32.mrb[0].mxu0
      %v5229 = vpop.f32.mrb[0].mxu0
      %v5230 = vadd.f32 %v5045, %v5229
      %v5231 = vpop.f32.mrb[0].mxu0
      %5232 = vmatprep.mubr.bf16.mxu0 0
      %5233 = vmatmul.mubr.bf16.gmra.mrb[0].mxu0 %v4900
      %v5234 = vpop.f32.mrb[0].mxu0
      %v5235 = vadd.f32 %v5050, %v5234
      %v5236 = vpop.f32.mrb[0].mxu0
      %v5237 = vpop.f32.mrb[0].mxu0
      %v5238 = vadd.f32 %v5053, %v5237
      %v5239 = vpop.f32.mrb[0].mxu0
      %5240 = vmatprep.mubr.bf16.mxu0 0
      %5241 = vmatmul.mubr.bf16.gmra.mrb[0].mxu0 %v4903
      %v5242 = vpop.f32.mrb[0].mxu0
      %v5243 = vadd.f32 %v5058, %v5242
      %v5244 = vpop.f32.mrb[0].mxu0
      %v5245 = vpop.f32.mrb[0].mxu0
      %v5246 = vadd.f32 %v5061, %v5245
      %v5247 = vpop.f32.mrb[0].mxu0
      %5248 = vmatprep.mubr.bf16.mxu0 0
      %5249 = vmatmul.mubr.bf16.gmra.mrb[0].mxu0 %v5094
      %v5250 = vpop.f32.mrb[0].mxu0
      %v5251 = vadd.f32 %v5066, %v5250
      %v5252 = vpop.f32.mrb[0].mxu0
      %v5253 = vpop.f32.mrb[0].mxu0
      %v5254 = vadd.f32 %v5069, %v5253
      %v5255 = vpop.f32.mrb[0].mxu0
      %5256 = vdwg.mxu0
      %v5257 = vpack.c.bf16 %v3244, %v3244
      %s5258 = scalar_lea.vmem %s5, 64
      %v5259 = vld [vmem:[%s5258] sm:$0xf]
      %v5260 = vld [vmem:[%s5258 + $0x4] sm:$0xf]
      %v5261 = vshll.u32 %v4495, 16
      %v5263 = vrot.slane %v5261, 1
      %v5264 = vsel %vm2151, %v4851, %v5263
      %v5265 = vshrl.u32 %v4495, 16
      %v5267 = vor.u32 %v5265, %v5263
      %v5269 = vshll.u32 %v5257, 16
      %v5271 = vrot.slane %v5269, 1
      %v5272 = vsel %vm2151, %v5267, %v5271
      %v5275 = vunpack.c.l.b16 %v5259
      %v5276 = vunpack.c.l.b16 %v5260
      %v5277 = vpack.c.b16 %v5276, %v5275
      %v5280 = vsel %vm3174, %v5264, 0
      %v5283 = vsel %vm3174, %v5272, 0
      %5285 = vmatprep.subr.bf16.mxu0 0
      %5286 = vmatpush1.bf16.msra.mxu0 %v5277
      %5287 = vmatprep.subr.bf16.mxu0 0
      %5288 = vmatpush1.bf16.msra.mxu0 0
      %5289 = vmatprep.subr.bf16.mxu0 0
      %5290 = vmatpush1.bf16.msra.mxu0 0
      %5291 = vmatprep.subr.bf16.mxu0 0
      %5292 = vmatpush1.bf16.msra.mxu0 0
      %5293 = vmatprep.subr.bf16.mxu0 0
      %5294 = vmatpush1.bf16.msra.mxu0 0
      %5295 = vmatprep.subr.bf16.mxu0 0
      %5296 = vmatpush1.bf16.msra.mxu0 0
      %5297 = vmatprep.subr.bf16.mxu0 0
      %5298 = vmatpush1.bf16.msra.mxu0 0
      %5299 = vmatprep.subr.bf16.mxu0 0
      %5300 = vmatpush1.bf16.msra.mxu0 0
      %5301 = vmatprep.subr.bf16.mxu0 0
      %5302 = vmatpush1.bf16.msra.mxu0 0
      %5303 = vmatprep.subr.bf16.mxu0 0
      %5304 = vmatpush1.bf16.msra.mxu0 0
      %5305 = vmatprep.subr.bf16.mxu0 0
      %5306 = vmatpush1.bf16.msra.mxu0 0
      %5307 = vmatprep.subr.bf16.mxu0 0
      %5308 = vmatpush1.bf16.msra.mxu0 0
      %5309 = vmatprep.subr.bf16.mxu0 0
      %5310 = vmatpush1.bf16.msra.mxu0 0
      %5311 = vmatprep.subr.bf16.mxu0 0
      %5312 = vmatpush1.bf16.msra.mxu0 0
      %5313 = vmatprep.subr.bf16.mxu0 0
      %5314 = vmatpush1.bf16.msra.mxu0 0
      %5315 = vmatprep.subr.bf16.mxu0 0
      %5316 = vmatpush1.bf16.msra.mxu0 0
      %5317 = vmatprep.mubr.bf16.mxu0 0
      %5318 = vmatmul.mubr.bf16.gmra.mrb[0].mxu0 %v4867
      %v5319 = vpop.f32.mrb[0].mxu0
      %v5320 = vadd.f32 0.0, %v5319
      %v5321 = vpop.f32.mrb[0].mxu0
      %v5322 = vpop.f32.mrb[0].mxu0
      %v5323 = vadd.f32 0.0, %v5322
      %v5324 = vpop.f32.mrb[0].mxu0
      %5325 = vmatprep.mubr.bf16.mxu0 0
      %5326 = vmatmul.mubr.bf16.gmra.mrb[0].mxu0 %v4870
      %v5327 = vpop.f32.mrb[0].mxu0
      %v5328 = vadd.f32 0.0, %v5327
      %v5329 = vpop.f32.mrb[0].mxu0
      %v5330 = vpop.f32.mrb[0].mxu0
      %v5331 = vadd.f32 0.0, %v5330
      %v5332 = vpop.f32.mrb[0].mxu0
      %5333 = vmatprep.mubr.bf16.mxu0 0
      %5334 = vmatmul.mubr.bf16.gmra.mrb[0].mxu0 %v4873
      %v5335 = vpop.f32.mrb[0].mxu0
      %v5336 = vadd.f32 0.0, %v5335
      %v5337 = vpop.f32.mrb[0].mxu0
      %v5338 = vpop.f32.mrb[0].mxu0
      %v5339 = vadd.f32 0.0, %v5338
      %v5340 = vpop.f32.mrb[0].mxu0
      %5341 = vmatprep.mubr.bf16.mxu0 0
      %5342 = vmatmul.mubr.bf16.gmra.mrb[0].mxu0 %v4876
      %v5343 = vpop.f32.mrb[0].mxu0
      %v5344 = vadd.f32 0.0, %v5343
      %v5345 = vpop.f32.mrb[0].mxu0
      %v5346 = vpop.f32.mrb[0].mxu0
      %v5347 = vadd.f32 0.0, %v5346
      %v5348 = vpop.f32.mrb[0].mxu0
      %5349 = vmatprep.mubr.bf16.mxu0 0
      %5350 = vmatmul.mubr.bf16.gmra.mrb[0].mxu0 %v4879
      %v5351 = vpop.f32.mrb[0].mxu0
      %v5352 = vadd.f32 0.0, %v5351
      %v5353 = vpop.f32.mrb[0].mxu0
      %v5354 = vpop.f32.mrb[0].mxu0
      %v5355 = vadd.f32 0.0, %v5354
      %v5356 = vpop.f32.mrb[0].mxu0
      %5357 = vmatprep.mubr.bf16.mxu0 0
      %5358 = vmatmul.mubr.bf16.gmra.mrb[0].mxu0 %v4882
      %v5359 = vpop.f32.mrb[0].mxu0
      %v5360 = vadd.f32 0.0, %v5359
      %v5361 = vpop.f32.mrb[0].mxu0
      %v5362 = vpop.f32.mrb[0].mxu0
      %v5363 = vadd.f32 0.0, %v5362
      %v5364 = vpop.f32.mrb[0].mxu0
      %5365 = vmatprep.mubr.bf16.mxu0 0
      %5366 = vmatmul.mubr.bf16.gmra.mrb[0].mxu0 %v4885
      %v5367 = vpop.f32.mrb[0].mxu0
      %v5368 = vadd.f32 0.0, %v5367
      %v5369 = vpop.f32.mrb[0].mxu0
      %v5370 = vpop.f32.mrb[0].mxu0
      %v5371 = vadd.f32 0.0, %v5370
      %v5372 = vpop.f32.mrb[0].mxu0
      %5373 = vmatprep.mubr.bf16.mxu0 0
      %5374 = vmatmul.mubr.bf16.gmra.mrb[0].mxu0 %v4888
      %v5375 = vpop.f32.mrb[0].mxu0
      %v5376 = vadd.f32 0.0, %v5375
      %v5377 = vpop.f32.mrb[0].mxu0
      %v5378 = vpop.f32.mrb[0].mxu0
      %v5379 = vadd.f32 0.0, %v5378
      %v5380 = vpop.f32.mrb[0].mxu0
      %5381 = vmatprep.mubr.bf16.mxu0 0
      %5382 = vmatmul.mubr.bf16.gmra.mrb[0].mxu0 %v4891
      %v5383 = vpop.f32.mrb[0].mxu0
      %v5384 = vadd.f32 0.0, %v5383
      %v5385 = vpop.f32.mrb[0].mxu0
      %v5386 = vpop.f32.mrb[0].mxu0
      %v5387 = vadd.f32 0.0, %v5386
      %v5388 = vpop.f32.mrb[0].mxu0
      %5389 = vmatprep.mubr.bf16.mxu0 0
      %5390 = vmatmul.mubr.bf16.gmra.mrb[0].mxu0 %v4894
      %v5391 = vpop.f32.mrb[0].mxu0
      %v5392 = vadd.f32 0.0, %v5391
      %v5393 = vpop.f32.mrb[0].mxu0
      %v5394 = vpop.f32.mrb[0].mxu0
      %v5395 = vadd.f32 0.0, %v5394
      %v5396 = vpop.f32.mrb[0].mxu0
      %5397 = vmatprep.mubr.bf16.mxu0 0
      %5398 = vmatmul.mubr.bf16.gmra.mrb[0].mxu0 %v4897
      %v5399 = vpop.f32.mrb[0].mxu0
      %v5400 = vadd.f32 0.0, %v5399
      %v5401 = vpop.f32.mrb[0].mxu0
      %v5402 = vpop.f32.mrb[0].mxu0
      %v5403 = vadd.f32 0.0, %v5402
      %v5404 = vpop.f32.mrb[0].mxu0
      %5405 = vmatprep.mubr.bf16.mxu0 0
      %5406 = vmatmul.mubr.bf16.gmra.mrb[0].mxu0 %v4900
      %v5407 = vpop.f32.mrb[0].mxu0
      %v5408 = vadd.f32 0.0, %v5407
      %v5409 = vpop.f32.mrb[0].mxu0
      %v5410 = vpop.f32.mrb[0].mxu0
      %v5411 = vadd.f32 0.0, %v5410
      %v5412 = vpop.f32.mrb[0].mxu0
      %5413 = vmatprep.mubr.bf16.mxu0 0
      %5414 = vmatmul.mubr.bf16.gmra.mrb[0].mxu0 %v4903
      %v5415 = vpop.f32.mrb[0].mxu0
      %v5416 = vadd.f32 0.0, %v5415
      %v5417 = vpop.f32.mrb[0].mxu0
      %v5418 = vpop.f32.mrb[0].mxu0
      %v5419 = vadd.f32 0.0, %v5418
      %v5420 = vpop.f32.mrb[0].mxu0
      %5421 = vmatprep.mubr.bf16.mxu0 0
      %5422 = vmatmul.mubr.bf16.gmra.mrb[0].mxu0 %v4906
      %v5423 = vpop.f32.mrb[0].mxu0
      %v5424 = vadd.f32 0.0, %v5423
      %v5425 = vpop.f32.mrb[0].mxu0
      %v5426 = vpop.f32.mrb[0].mxu0
      %v5427 = vadd.f32 0.0, %v5426
      %v5428 = vpop.f32.mrb[0].mxu0
      %5429 = vmatprep.mubr.bf16.mxu0 0
      %5430 = vmatmul.mubr.bf16.gmra.mrb[0].mxu0 %v5280
      %v5431 = vpop.f32.mrb[0].mxu0
      %v5432 = vadd.f32 0.0, %v5431
      %v5433 = vpop.f32.mrb[0].mxu0
      %v5434 = vpop.f32.mrb[0].mxu0
      %v5435 = vadd.f32 0.0, %v5434
      %v5436 = vpop.f32.mrb[0].mxu0
      %5437 = vmatprep.mubr.bf16.mxu0 0
      %5438 = vmatmul.mubr.bf16.gmra.mrb[0].mxu0 %v5283
      %v5439 = vpop.f32.mrb[0].mxu0
      %v5440 = vadd.f32 0.0, %v5439
      %v5441 = vpop.f32.mrb[0].mxu0
      %v5442 = vpop.f32.mrb[0].mxu0
      %v5443 = vadd.f32 0.0, %v5442
      %v5444 = vpop.f32.mrb[0].mxu0
      %5445 = vdwg.mxu0
      %v5446 = vadd.f32 %v5131, %v5320
      %v5447 = vadd.f32 %v5134, %v5323
      %v5448 = vadd.f32 %v5139, %v5328
      %v5449 = vadd.f32 %v5142, %v5331
      %v5450 = vadd.f32 %v5147, %v5336
      %v5451 = vadd.f32 %v5150, %v5339
      %v5452 = vadd.f32 %v5155, %v5344
      %v5453 = vadd.f32 %v5158, %v5347
      %v5454 = vadd.f32 %v5163, %v5352
      %v5455 = vadd.f32 %v5166, %v5355
      %v5456 = vadd.f32 %v5171, %v5360
      %v5457 = vadd.f32 %v5174, %v5363
      %v5458 = vadd.f32 %v5179, %v5368
      %v5459 = vadd.f32 %v5182, %v5371
      %v5460 = vadd.f32 %v5187, %v5376
      %v5461 = vadd.f32 %v5190, %v5379
      %v5462 = vadd.f32 %v5195, %v5384
      %v5463 = vadd.f32 %v5198, %v5387
      %v5464 = vadd.f32 %v5203, %v5392
      %v5465 = vadd.f32 %v5206, %v5395
      %v5466 = vadd.f32 %v5211, %v5400
      %v5467 = vadd.f32 %v5214, %v5403
      %v5468 = vadd.f32 %v5219, %v5408
      %v5469 = vadd.f32 %v5222, %v5411
      %v5470 = vadd.f32 %v5227, %v5416
      %v5471 = vadd.f32 %v5230, %v5419
      %v5472 = vadd.f32 %v5235, %v5424
      %v5473 = vadd.f32 %v5238, %v5427
      %v5474 = vadd.f32 %v5243, %v5432
      %v5475 = vadd.f32 %v5246, %v5435
      %v5476 = vadd.f32 %v5251, %v5440
      %v5477 = vadd.f32 %v5254, %v5443
      %v5478 = vmul.f32 %v5446, %v2882
      %v5479 = vmul.f32 %v5447, %v2887
      %v5480 = vmul.f32 %v5448, %v2892
      %v5481 = vmul.f32 %v5449, %v2897
      %v5482 = vmul.f32 %v5450, %v2902
      %v5483 = vmul.f32 %v5451, %v2907
      %v5484 = vmul.f32 %v5452, %v2912
      %v5485 = vmul.f32 %v5453, %v2917
      %v5486 = vmul.f32 %v5454, %v2922
      %v5487 = vmul.f32 %v5455, %v2927
      %v5488 = vmul.f32 %v5456, %v2932
      %v5489 = vmul.f32 %v5457, %v2937
      %v5490 = vmul.f32 %v5458, %v2942
      %v5491 = vmul.f32 %v5459, %v2947
      %v5492 = vmul.f32 %v5460, %v2952
      %v5493 = vmul.f32 %v5461, %v2957
      %v5494 = vmul.f32 %v5462, %v2962
      %v5495 = vmul.f32 %v5463, %v2967
      %v5496 = vmul.f32 %v5464, %v2972
      %v5497 = vmul.f32 %v5465, %v2977
      %v5498 = vmul.f32 %v5466, %v2982
      %v5499 = vmul.f32 %v5467, %v2987
      %v5500 = vmul.f32 %v5468, %v2992
      %v5501 = vmul.f32 %v5469, %v2997
      %v5502 = vmul.f32 %v5470, %v3002
      %v5503 = vmul.f32 %v5471, %v3007
      %v5504 = vmul.f32 %v5472, %v3012
      %v5505 = vmul.f32 %v5473, %v3017
      %v5506 = vmul.f32 %v5474, %v3022
      %v5507 = vmul.f32 %v5475, %v3027
      %v5508 = vmul.f32 %v5476, %v3032
      %v5509 = vmul.f32 %v5477, %v3037
      %v5510 = vadd.f32 %v4701, %v5478
      %v5511 = vadd.f32 %v4702, %v5479
      %v5512 = vadd.f32 %v4703, %v5480
      %v5513 = vadd.f32 %v4704, %v5481
      %v5514 = vadd.f32 %v4705, %v5482
      %v5515 = vadd.f32 %v4706, %v5483
      %v5516 = vadd.f32 %v4707, %v5484
      %v5517 = vadd.f32 %v4708, %v5485
      %v5518 = vadd.f32 %v4709, %v5486
      %v5519 = vadd.f32 %v4710, %v5487
      %v5520 = vadd.f32 %v4711, %v5488
      %v5521 = vadd.f32 %v4712, %v5489
      %v5522 = vadd.f32 %v4713, %v5490
      %v5523 = vadd.f32 %v4714, %v5491
      %v5524 = vadd.f32 %v4715, %v5492
      %v5525 = vadd.f32 %v4716, %v5493
      %v5526 = vadd.f32 %v4717, %v5494
      %v5527 = vadd.f32 %v4718, %v5495
      %v5528 = vadd.f32 %v4719, %v5496
      %v5529 = vadd.f32 %v4720, %v5497
      %v5530 = vadd.f32 %v4721, %v5498
      %v5531 = vadd.f32 %v4722, %v5499
      %v5532 = vadd.f32 %v4723, %v5500
      %v5533 = vadd.f32 %v4724, %v5501
      %v5534 = vadd.f32 %v4725, %v5502
      %v5535 = vadd.f32 %v4726, %v5503
      %v5536 = vadd.f32 %v4727, %v5504
      %v5537 = vadd.f32 %v4728, %v5505
      %v5538 = vadd.f32 %v4729, %v5506
      %v5539 = vadd.f32 %v4730, %v5507
      %v5540 = vadd.f32 %v4731, %v5508
      %v5541 = vadd.f32 %v4732, %v5509
      %v5542 = vld [vmem:[%s6] sm:$0x1]
      %v5544 = vlaneseq
      %v5545 = vshrl.u32 %v5544, 7
      %v5546 = vsub.s32 0, %v5545
      %v5547 = vrot.slane %v5542, %v5546
      %v5549 = vadd.f32 %v5510, %v5547
      %v5550 = vadd.f32 %v5511, %v5547
      %v5551 = vadd.f32 %v5512, %v5547
      %v5552 = vadd.f32 %v5513, %v5547
      %v5553 = vadd.f32 %v5514, %v5547
      %v5554 = vadd.f32 %v5515, %v5547
      %v5555 = vadd.f32 %v5516, %v5547
      %v5556 = vadd.f32 %v5517, %v5547
      %v5557 = vadd.f32 %v5518, %v5547
      %v5558 = vadd.f32 %v5519, %v5547
      %v5559 = vadd.f32 %v5520, %v5547
      %v5560 = vadd.f32 %v5521, %v5547
      %v5561 = vadd.f32 %v5522, %v5547
      %v5562 = vadd.f32 %v5523, %v5547
      %v5563 = vadd.f32 %v5524, %v5547
      %v5564 = vadd.f32 %v5525, %v5547
      %v5565 = vadd.f32 %v5526, %v5547
      %v5566 = vadd.f32 %v5527, %v5547
      %v5567 = vadd.f32 %v5528, %v5547
      %v5568 = vadd.f32 %v5529, %v5547
      %v5569 = vadd.f32 %v5530, %v5547
      %v5570 = vadd.f32 %v5531, %v5547
      %v5571 = vadd.f32 %v5532, %v5547
      %v5572 = vadd.f32 %v5533, %v5547
      %v5573 = vadd.f32 %v5534, %v5547
      %v5574 = vadd.f32 %v5535, %v5547
      %v5575 = vadd.f32 %v5536, %v5547
      %v5576 = vadd.f32 %v5537, %v5547
      %v5577 = vadd.f32 %v5538, %v5547
      %v5578 = vadd.f32 %v5539, %v5547
      %v5579 = vadd.f32 %v5540, %v5547
      %v5580 = vadd.f32 %v5541, %v5547
      %v5581 = vmax.f32 %v5549, 0.0
      %v5582 = vmax.f32 %v5550, 0.0
      %v5583 = vmax.f32 %v5551, 0.0
      %v5584 = vmax.f32 %v5552, 0.0
      %v5585 = vmax.f32 %v5553, 0.0
      %v5586 = vmax.f32 %v5554, 0.0
      %v5587 = vmax.f32 %v5555, 0.0
      %v5588 = vmax.f32 %v5556, 0.0
      %v5589 = vmax.f32 %v5557, 0.0
      %v5590 = vmax.f32 %v5558, 0.0
      %v5591 = vmax.f32 %v5559, 0.0
      %v5592 = vmax.f32 %v5560, 0.0
      %v5593 = vmax.f32 %v5561, 0.0
      %v5594 = vmax.f32 %v5562, 0.0
      %v5595 = vmax.f32 %v5563, 0.0
      %v5596 = vmax.f32 %v5564, 0.0
      %v5597 = vmax.f32 %v5565, 0.0
      %v5598 = vmax.f32 %v5566, 0.0
      %v5599 = vmax.f32 %v5567, 0.0
      %v5600 = vmax.f32 %v5568, 0.0
      %v5601 = vmax.f32 %v5569, 0.0
      %v5602 = vmax.f32 %v5570, 0.0
      %v5603 = vmax.f32 %v5571, 0.0
      %v5604 = vmax.f32 %v5572, 0.0
      %v5605 = vmax.f32 %v5573, 0.0
      %v5606 = vmax.f32 %v5574, 0.0
      %v5607 = vmax.f32 %v5575, 0.0
      %v5608 = vmax.f32 %v5576, 0.0
      %v5609 = vmax.f32 %v5577, 0.0
      %v5610 = vmax.f32 %v5578, 0.0
      %v5611 = vmax.f32 %v5579, 0.0
      %v5612 = vmax.f32 %v5580, 0.0
      %v5613 = vpack.c.bf16 %v5582, %v5581
      %v5614 = vpack.c.bf16 %v5584, %v5583
      %v5615 = vpack.c.bf16 %v5586, %v5585
      %v5616 = vpack.c.bf16 %v5588, %v5587
      %v5617 = vpack.c.bf16 %v5590, %v5589
      %v5618 = vpack.c.bf16 %v5592, %v5591
      %v5619 = vpack.c.bf16 %v5594, %v5593
      %v5620 = vpack.c.bf16 %v5596, %v5595
      %v5621 = vpack.c.bf16 %v5598, %v5597
      %v5622 = vpack.c.bf16 %v5600, %v5599
      %v5623 = vpack.c.bf16 %v5602, %v5601
      %v5624 = vpack.c.bf16 %v5604, %v5603
      %v5625 = vpack.c.bf16 %v5606, %v5605
      %v5626 = vpack.c.bf16 %v5608, %v5607
      %v5627 = vpack.c.bf16 %v5610, %v5609
      %v5628 = vpack.c.bf16 %v5612, %v5611
      %v5629 = vld [vmem:[%s7] sm:$0xf]
      %v5630 = vld [vmem:[%s7 + $0x4] sm:$0xf]
      %v5631 = vld [vmem:[%s8] sm:$0x1]
      %v5633 = vlaneseq
      %v5634 = vshrl.u32 %v5633, 7
      %v5635 = vsub.s32 0, %v5634
      %v5636 = vrot.slane %v5631, %v5635
      %v5640 = vunpack.c.l.b16 %v5629
      %v5641 = vunpack.c.l.b16 %v5630
      %v5642 = vpack.c.b16 %v5641, %v5640
      %v5645 = vsel %vm3174, %v5613, 0
      %v5648 = vsel %vm3174, %v5614, 0
      %v5651 = vsel %vm3174, %v5615, 0
      %v5654 = vsel %vm3174, %v5616, 0
      %v5657 = vsel %vm3174, %v5617, 0
      %v5660 = vsel %vm3174, %v5618, 0
      %v5663 = vsel %vm3174, %v5619, 0
      %v5666 = vsel %vm3174, %v5620, 0
      %v5669 = vsel %vm3174, %v5621, 0
      %v5672 = vsel %vm3174, %v5622, 0
      %v5675 = vsel %vm3174, %v5623, 0
      %v5678 = vsel %vm3174, %v5624, 0
      %v5681 = vsel %vm3174, %v5625, 0
      %v5684 = vsel %vm3174, %v5626, 0
      %v5687 = vsel %vm3174, %v5627, 0
      %v5690 = vsel %vm3174, %v5628, 0
      %5692 = vmatprep.subr.bf16.mxu0 0
      %5693 = vmatpush1.bf16.msra.mxu0 %v5642
      %5694 = vmatprep.subr.bf16.mxu0 0
      %5695 = vmatpush1.bf16.msra.mxu0 0
      %5696 = vmatprep.subr.bf16.mxu0 0
      %5697 = vmatpush1.bf16.msra.mxu0 0
      %5698 = vmatprep.subr.bf16.mxu0 0
      %5699 = vmatpush1.bf16.msra.mxu0 0
      %5700 = vmatprep.subr.bf16.mxu0 0
      %5701 = vmatpush1.bf16.msra.mxu0 0
      %5702 = vmatprep.subr.bf16.mxu0 0
      %5703 = vmatpush1.bf16.msra.mxu0 0
      %5704 = vmatprep.subr.bf16.mxu0 0
      %5705 = vmatpush1.bf16.msra.mxu0 0
      %5706 = vmatprep.subr.bf16.mxu0 0
      %5707 = vmatpush1.bf16.msra.mxu0 0
      %5708 = vmatprep.subr.bf16.mxu0 0
      %5709 = vmatpush1.bf16.msra.mxu0 0
      %5710 = vmatprep.subr.bf16.mxu0 0
      %5711 = vmatpush1.bf16.msra.mxu0 0
      %5712 = vmatprep.subr.bf16.mxu0 0
      %5713 = vmatpush1.bf16.msra.mxu0 0
      %5714 = vmatprep.subr.bf16.mxu0 0
      %5715 = vmatpush1.bf16.msra.mxu0 0
      %5716 = vmatprep.subr.bf16.mxu0 0
      %5717 = vmatpush1.bf16.msra.mxu0 0
      %5718 = vmatprep.subr.bf16.mxu0 0
      %5719 = vmatpush1.bf16.msra.mxu0 0
      %5720 = vmatprep.subr.bf16.mxu0 0
      %5721 = vmatpush1.bf16.msra.mxu0 0
      %5722 = vmatprep.subr.bf16.mxu0 0
      %5723 = vmatpush1.bf16.msra.mxu0 0
      %5724 = vmatprep.mubr.bf16.mxu0 0
      %5725 = vmatmul.mubr.bf16.gmra.mrb[0].mxu0 %v5645
      %v5726 = vpop.f32.mrb[0].mxu0
      %v5727 = vadd.f32 %v5636, %v5726
      %v5728 = vpop.f32.mrb[0].mxu0
      %v5729 = vpop.f32.mrb[0].mxu0
      %v5730 = vadd.f32 %v5636, %v5729
      %v5731 = vpop.f32.mrb[0].mxu0
      %5732 = vmatprep.mubr.bf16.mxu0 0
      %5733 = vmatmul.mubr.bf16.gmra.mrb[0].mxu0 %v5648
      %v5734 = vpop.f32.mrb[0].mxu0
      %v5735 = vadd.f32 %v5636, %v5734
      %v5736 = vpop.f32.mrb[0].mxu0
      %v5737 = vpop.f32.mrb[0].mxu0
      %v5738 = vadd.f32 %v5636, %v5737
      %v5739 = vpop.f32.mrb[0].mxu0
      %5740 = vmatprep.mubr.bf16.mxu0 0
      %5741 = vmatmul.mubr.bf16.gmra.mrb[0].mxu0 %v5651
      %v5742 = vpop.f32.mrb[0].mxu0
      %v5743 = vadd.f32 %v5636, %v5742
      %v5744 = vpop.f32.mrb[0].mxu0
      %v5745 = vpop.f32.mrb[0].mxu0
      %v5746 = vadd.f32 %v5636, %v5745
      %v5747 = vpop.f32.mrb[0].mxu0
      %5748 = vmatprep.mubr.bf16.mxu0 0
      %5749 = vmatmul.mubr.bf16.gmra.mrb[0].mxu0 %v5654
      %v5750 = vpop.f32.mrb[0].mxu0
      %v5751 = vadd.f32 %v5636, %v5750
      %v5752 = vpop.f32.mrb[0].mxu0
      %v5753 = vpop.f32.mrb[0].mxu0
      %v5754 = vadd.f32 %v5636, %v5753
      %v5755 = vpop.f32.mrb[0].mxu0
      %5756 = vmatprep.mubr.bf16.mxu0 0
      %5757 = vmatmul.mubr.bf16.gmra.mrb[0].mxu0 %v5657
      %v5758 = vpop.f32.mrb[0].mxu0
      %v5759 = vadd.f32 %v5636, %v5758
      %v5760 = vpop.f32.mrb[0].mxu0
      %v5761 = vpop.f32.mrb[0].mxu0
      %v5762 = vadd.f32 %v5636, %v5761
      %v5763 = vpop.f32.mrb[0].mxu0
      %5764 = vmatprep.mubr.bf16.mxu0 0
      %5765 = vmatmul.mubr.bf16.gmra.mrb[0].mxu0 %v5660
      %v5766 = vpop.f32.mrb[0].mxu0
      %v5767 = vadd.f32 %v5636, %v5766
      %v5768 = vpop.f32.mrb[0].mxu0
      %v5769 = vpop.f32.mrb[0].mxu0
      %v5770 = vadd.f32 %v5636, %v5769
      %v5771 = vpop.f32.mrb[0].mxu0
      %5772 = vmatprep.mubr.bf16.mxu0 0
      %5773 = vmatmul.mubr.bf16.gmra.mrb[0].mxu0 %v5663
      %v5774 = vpop.f32.mrb[0].mxu0
      %v5775 = vadd.f32 %v5636, %v5774
      %v5776 = vpop.f32.mrb[0].mxu0
      %v5777 = vpop.f32.mrb[0].mxu0
      %v5778 = vadd.f32 %v5636, %v5777
      %v5779 = vpop.f32.mrb[0].mxu0
      %5780 = vmatprep.mubr.bf16.mxu0 0
      %5781 = vmatmul.mubr.bf16.gmra.mrb[0].mxu0 %v5666
      %v5782 = vpop.f32.mrb[0].mxu0
      %v5783 = vadd.f32 %v5636, %v5782
      %v5784 = vpop.f32.mrb[0].mxu0
      %v5785 = vpop.f32.mrb[0].mxu0
      %v5786 = vadd.f32 %v5636, %v5785
      %v5787 = vpop.f32.mrb[0].mxu0
      %5788 = vmatprep.mubr.bf16.mxu0 0
      %5789 = vmatmul.mubr.bf16.gmra.mrb[0].mxu0 %v5669
      %v5790 = vpop.f32.mrb[0].mxu0
      %v5791 = vadd.f32 %v5636, %v5790
      %v5792 = vpop.f32.mrb[0].mxu0
      %v5793 = vpop.f32.mrb[0].mxu0
      %v5794 = vadd.f32 %v5636, %v5793
      %v5795 = vpop.f32.mrb[0].mxu0
      %5796 = vmatprep.mubr.bf16.mxu0 0
      %5797 = vmatmul.mubr.bf16.gmra.mrb[0].mxu0 %v5672
      %v5798 = vpop.f32.mrb[0].mxu0
      %v5799 = vadd.f32 %v5636, %v5798
      %v5800 = vpop.f32.mrb[0].mxu0
      %v5801 = vpop.f32.mrb[0].mxu0
      %v5802 = vadd.f32 %v5636, %v5801
      %v5803 = vpop.f32.mrb[0].mxu0
      %5804 = vmatprep.mubr.bf16.mxu0 0
      %5805 = vmatmul.mubr.bf16.gmra.mrb[0].mxu0 %v5675
      %v5806 = vpop.f32.mrb[0].mxu0
      %v5807 = vadd.f32 %v5636, %v5806
      %v5808 = vpop.f32.mrb[0].mxu0
      %v5809 = vpop.f32.mrb[0].mxu0
      %v5810 = vadd.f32 %v5636, %v5809
      %v5811 = vpop.f32.mrb[0].mxu0
      %5812 = vmatprep.mubr.bf16.mxu0 0
      %5813 = vmatmul.mubr.bf16.gmra.mrb[0].mxu0 %v5678
      %v5814 = vpop.f32.mrb[0].mxu0
      %v5815 = vadd.f32 %v5636, %v5814
      %v5816 = vpop.f32.mrb[0].mxu0
      %v5817 = vpop.f32.mrb[0].mxu0
      %v5818 = vadd.f32 %v5636, %v5817
      %v5819 = vpop.f32.mrb[0].mxu0
      %5820 = vmatprep.mubr.bf16.mxu0 0
      %5821 = vmatmul.mubr.bf16.gmra.mrb[0].mxu0 %v5681
      %v5822 = vpop.f32.mrb[0].mxu0
      %v5823 = vadd.f32 %v5636, %v5822
      %v5824 = vpop.f32.mrb[0].mxu0
      %v5825 = vpop.f32.mrb[0].mxu0
      %v5826 = vadd.f32 %v5636, %v5825
      %v5827 = vpop.f32.mrb[0].mxu0
      %5828 = vmatprep.mubr.bf16.mxu0 0
      %5829 = vmatmul.mubr.bf16.gmra.mrb[0].mxu0 %v5684
      %v5830 = vpop.f32.mrb[0].mxu0
      %v5831 = vadd.f32 %v5636, %v5830
      %v5832 = vpop.f32.mrb[0].mxu0
      %v5833 = vpop.f32.mrb[0].mxu0
      %v5834 = vadd.f32 %v5636, %v5833
      %v5835 = vpop.f32.mrb[0].mxu0
      %5836 = vmatprep.mubr.bf16.mxu0 0
      %5837 = vmatmul.mubr.bf16.gmra.mrb[0].mxu0 %v5687
      %v5838 = vpop.f32.mrb[0].mxu0
      %v5839 = vadd.f32 %v5636, %v5838
      %v5840 = vpop.f32.mrb[0].mxu0
      %v5841 = vpop.f32.mrb[0].mxu0
      %v5842 = vadd.f32 %v5636, %v5841
      %v5843 = vpop.f32.mrb[0].mxu0
      %5844 = vmatprep.mubr.bf16.mxu0 0
      %5845 = vmatmul.mubr.bf16.gmra.mrb[0].mxu0 %v5690
      %v5846 = vpop.f32.mrb[0].mxu0
      %v5847 = vadd.f32 %v5636, %v5846
      %v5848 = vpop.f32.mrb[0].mxu0
      %v5849 = vpop.f32.mrb[0].mxu0
      %v5850 = vadd.f32 %v5636, %v5849
      %v5851 = vpop.f32.mrb[0].mxu0
      %5852 = vdwg.mxu0
      %v5853 = vlaneseq
      %v5854 = vand.u32 %v5853, 127
      %vm5855 = vcmp.lt.s32.totalorder %v5854, 12
      %v5856 = vxor.u32 %v5727, 2147483648
      %v5857 = vxor.u32 %v5730, 2147483648
      %v5858 = vxor.u32 %v5735, 2147483648
      %v5859 = vxor.u32 %v5738, 2147483648
      %v5860 = vxor.u32 %v5743, 2147483648
      %v5861 = vxor.u32 %v5746, 2147483648
      %v5862 = vxor.u32 %v5751, 2147483648
      %v5863 = vxor.u32 %v5754, 2147483648
      %v5864 = vxor.u32 %v5759, 2147483648
      %v5865 = vxor.u32 %v5762, 2147483648
      %v5866 = vxor.u32 %v5767, 2147483648
      %v5867 = vxor.u32 %v5770, 2147483648
      %v5868 = vxor.u32 %v5775, 2147483648
      %v5869 = vxor.u32 %v5778, 2147483648
      %v5870 = vxor.u32 %v5783, 2147483648
      %v5871 = vxor.u32 %v5786, 2147483648
      %v5872 = vxor.u32 %v5791, 2147483648
      %v5873 = vxor.u32 %v5794, 2147483648
      %v5874 = vxor.u32 %v5799, 2147483648
      %v5875 = vxor.u32 %v5802, 2147483648
      %v5876 = vxor.u32 %v5807, 2147483648
      %v5877 = vxor.u32 %v5810, 2147483648
      %v5878 = vxor.u32 %v5815, 2147483648
      %v5879 = vxor.u32 %v5818, 2147483648
      %v5880 = vxor.u32 %v5823, 2147483648
      %v5881 = vxor.u32 %v5826, 2147483648
      %v5882 = vxor.u32 %v5831, 2147483648
      %v5883 = vxor.u32 %v5834, 2147483648
      %v5884 = vxor.u32 %v5839, 2147483648
      %v5885 = vxor.u32 %v5842, 2147483648
      %v5886 = vxor.u32 %v5847, 2147483648
      %v5887 = vxor.u32 %v5850, 2147483648
      %v5888 = vmul.f32 %v5856, 1.442695
      %v5889 = vpow.pop %v5888
      %v5890 = vmul.f32 %v5857, 1.442695
      %v5891 = vpow.pop %v5890
      %v5892 = vmul.f32 %v5858, 1.442695
      %v5893 = vpow.pop %v5892
      %v5894 = vmul.f32 %v5859, 1.442695
      %v5895 = vpow.pop %v5894
      %v5896 = vmul.f32 %v5860, 1.442695
      %v5897 = vpow.pop %v5896
      %v5898 = vmul.f32 %v5861, 1.442695
      %v5899 = vpow.pop %v5898
      %v5900 = vmul.f32 %v5862, 1.442695
      %v5901 = vpow.pop %v5900
      %v5902 = vmul.f32 %v5863, 1.442695
      %v5903 = vpow.pop %v5902
      %v5904 = vmul.f32 %v5864, 1.442695
      %v5905 = vpow.pop %v5904
      %v5906 = vmul.f32 %v5865, 1.442695
      %v5907 = vpow.pop %v5906
      %v5908 = vmul.f32 %v5866, 1.442695
      %v5909 = vpow.pop %v5908
      %v5910 = vmul.f32 %v5867, 1.442695
      %v5911 = vpow.pop %v5910
      %v5912 = vmul.f32 %v5868, 1.442695
      %v5913 = vpow.pop %v5912
      %v5914 = vmul.f32 %v5869, 1.442695
      %v5915 = vpow.pop %v5914
      %v5916 = vmul.f32 %v5870, 1.442695
      %v5917 = vpow.pop %v5916
      %v5918 = vmul.f32 %v5871, 1.442695
      %v5919 = vpow.pop %v5918
      %v5920 = vmul.f32 %v5872, 1.442695
      %v5921 = vpow.pop %v5920
      %v5922 = vmul.f32 %v5873, 1.442695
      %v5923 = vpow.pop %v5922
      %v5924 = vmul.f32 %v5874, 1.442695
      %v5925 = vpow.pop %v5924
      %v5926 = vmul.f32 %v5875, 1.442695
      %v5927 = vpow.pop %v5926
      %v5928 = vmul.f32 %v5876, 1.442695
      %v5929 = vpow.pop %v5928
      %v5930 = vmul.f32 %v5877, 1.442695
      %v5931 = vpow.pop %v5930
      %v5932 = vmul.f32 %v5878, 1.442695
      %v5933 = vpow.pop %v5932
      %v5934 = vmul.f32 %v5879, 1.442695
      %v5935 = vpow.pop %v5934
      %v5936 = vmul.f32 %v5880, 1.442695
      %v5937 = vpow.pop %v5936
      %v5938 = vmul.f32 %v5881, 1.442695
      %v5939 = vpow.pop %v5938
      %v5940 = vmul.f32 %v5882, 1.442695
      %v5941 = vpow.pop %v5940
      %v5942 = vmul.f32 %v5883, 1.442695
      %v5943 = vpow.pop %v5942
      %v5944 = vmul.f32 %v5884, 1.442695
      %v5945 = vpow.pop %v5944
      %v5946 = vmul.f32 %v5885, 1.442695
      %v5947 = vpow.pop %v5946
      %v5948 = vmul.f32 %v5886, 1.442695
      %v5949 = vpow.pop %v5948
      %v5950 = vmul.f32 %v5887, 1.442695
      %v5951 = vpow.pop %v5950
      %v5952 = vadd.f32 %v5889, 1.0
      %v5953 = vadd.f32 %v5891, 1.0
      %v5954 = vadd.f32 %v5893, 1.0
      %v5955 = vadd.f32 %v5895, 1.0
      %v5956 = vadd.f32 %v5897, 1.0
      %v5957 = vadd.f32 %v5899, 1.0
      %v5958 = vadd.f32 %v5901, 1.0
      %v5959 = vadd.f32 %v5903, 1.0
      %v5960 = vadd.f32 %v5905, 1.0
      %v5961 = vadd.f32 %v5907, 1.0
      %v5962 = vadd.f32 %v5909, 1.0
      %v5963 = vadd.f32 %v5911, 1.0
      %v5964 = vadd.f32 %v5913, 1.0
      %v5965 = vadd.f32 %v5915, 1.0
      %v5966 = vadd.f32 %v5917, 1.0
      %v5967 = vadd.f32 %v5919, 1.0
      %v5968 = vadd.f32 %v5921, 1.0
      %v5969 = vadd.f32 %v5923, 1.0
      %v5970 = vadd.f32 %v5925, 1.0
      %v5971 = vadd.f32 %v5927, 1.0
      %v5972 = vadd.f32 %v5929, 1.0
      %v5973 = vadd.f32 %v5931, 1.0
      %v5974 = vadd.f32 %v5933, 1.0
      %v5975 = vadd.f32 %v5935, 1.0
      %v5976 = vadd.f32 %v5937, 1.0
      %v5977 = vadd.f32 %v5939, 1.0
      %v5978 = vadd.f32 %v5941, 1.0
      %v5979 = vadd.f32 %v5943, 1.0
      %v5980 = vadd.f32 %v5945, 1.0
      %v5981 = vadd.f32 %v5947, 1.0
      %v5982 = vadd.f32 %v5949, 1.0
      %v5983 = vadd.f32 %v5951, 1.0
      %v5984 = vrcp.pop %v5952
      %v5985 = vmul.f32 1.0, %v5984
      %v5986 = vrcp.pop %v5953
      %v5987 = vmul.f32 1.0, %v5986
      %v5988 = vrcp.pop %v5954
      %v5989 = vmul.f32 1.0, %v5988
      %v5990 = vrcp.pop %v5955
      %v5991 = vmul.f32 1.0, %v5990
      %v5992 = vrcp.pop %v5956
      %v5993 = vmul.f32 1.0, %v5992
      %v5994 = vrcp.pop %v5957
      %v5995 = vmul.f32 1.0, %v5994
      %v5996 = vrcp.pop %v5958
      %v5997 = vmul.f32 1.0, %v5996
      %v5998 = vrcp.pop %v5959
      %v5999 = vmul.f32 1.0, %v5998
      %v6000 = vrcp.pop %v5960
      %v6001 = vmul.f32 1.0, %v6000
      %v6002 = vrcp.pop %v5961
      %v6003 = vmul.f32 1.0, %v6002
      %v6004 = vrcp.pop %v5962
      %v6005 = vmul.f32 1.0, %v6004
      %v6006 = vrcp.pop %v5963
      %v6007 = vmul.f32 1.0, %v6006
      %v6008 = vrcp.pop %v5964
      %v6009 = vmul.f32 1.0, %v6008
      %v6010 = vrcp.pop %v5965
      %v6011 = vmul.f32 1.0, %v6010
      %v6012 = vrcp.pop %v5966
      %v6013 = vmul.f32 1.0, %v6012
      %v6014 = vrcp.pop %v5967
      %v6015 = vmul.f32 1.0, %v6014
      %v6016 = vrcp.pop %v5968
      %v6017 = vmul.f32 1.0, %v6016
      %v6018 = vrcp.pop %v5969
      %v6019 = vmul.f32 1.0, %v6018
      %v6020 = vrcp.pop %v5970
      %v6021 = vmul.f32 1.0, %v6020
      %v6022 = vrcp.pop %v5971
      %v6023 = vmul.f32 1.0, %v6022
      %v6024 = vrcp.pop %v5972
      %v6025 = vmul.f32 1.0, %v6024
      %v6026 = vrcp.pop %v5973
      %v6027 = vmul.f32 1.0, %v6026
      %v6028 = vrcp.pop %v5974
      %v6029 = vmul.f32 1.0, %v6028
      %v6030 = vrcp.pop %v5975
      %v6031 = vmul.f32 1.0, %v6030
      %v6032 = vrcp.pop %v5976
      %v6033 = vmul.f32 1.0, %v6032
      %v6034 = vrcp.pop %v5977
      %v6035 = vmul.f32 1.0, %v6034
      %v6036 = vrcp.pop %v5978
      %v6037 = vmul.f32 1.0, %v6036
      %v6038 = vrcp.pop %v5979
      %v6039 = vmul.f32 1.0, %v6038
      %v6040 = vrcp.pop %v5980
      %v6041 = vmul.f32 1.0, %v6040
      %v6042 = vrcp.pop %v5981
      %v6043 = vmul.f32 1.0, %v6042
      %v6044 = vrcp.pop %v5982
      %v6045 = vmul.f32 1.0, %v6044
      %v6046 = vrcp.pop %v5983
      %v6047 = vmul.f32 1.0, %v6046
      %v6048 = vsel %vm5855, %v5727, %v5985
      %v6049 = vsel %vm5855, %v5730, %v5987
      %v6050 = vsel %vm5855, %v5735, %v5989
      %v6051 = vsel %vm5855, %v5738, %v5991
      %v6052 = vsel %vm5855, %v5743, %v5993
      %v6053 = vsel %vm5855, %v5746, %v5995
      %v6054 = vsel %vm5855, %v5751, %v5997
      %v6055 = vsel %vm5855, %v5754, %v5999
      %v6056 = vsel %vm5855, %v5759, %v6001
      %v6057 = vsel %vm5855, %v5762, %v6003
      %v6058 = vsel %vm5855, %v5767, %v6005
      %v6059 = vsel %vm5855, %v5770, %v6007
      %v6060 = vsel %vm5855, %v5775, %v6009
      %v6061 = vsel %vm5855, %v5778, %v6011
      %v6062 = vsel %vm5855, %v5783, %v6013
      %v6063 = vsel %vm5855, %v5786, %v6015
      %v6064 = vsel %vm5855, %v5791, %v6017
      %v6065 = vsel %vm5855, %v5794, %v6019
      %v6066 = vsel %vm5855, %v5799, %v6021
      %v6067 = vsel %vm5855, %v5802, %v6023
      %v6068 = vsel %vm5855, %v5807, %v6025
      %v6069 = vsel %vm5855, %v5810, %v6027
      %v6070 = vsel %vm5855, %v5815, %v6029
      %v6071 = vsel %vm5855, %v5818, %v6031
      %v6072 = vsel %vm5855, %v5823, %v6033
      %v6073 = vsel %vm5855, %v5826, %v6035
      %v6074 = vsel %vm5855, %v5831, %v6037
      %v6075 = vsel %vm5855, %v5834, %v6039
      %v6076 = vsel %vm5855, %v5839, %v6041
      %v6077 = vsel %vm5855, %v5842, %v6043
      %v6078 = vsel %vm5855, %v5847, %v6045
      %v6079 = vsel %vm5855, %v5850, %v6047
      %6080 = vst [vmem:[%s332] sm:$0xff] %v6048
      %6081 = vst [vmem:[%s332 + $0x8] sm:$0xff] %v6049
      %6082 = vst [vmem:[%s332 + $0x10] sm:$0xff] %v6050
      %6083 = vst [vmem:[%s332 + $0x18] sm:$0xff] %v6051
      %6084 = vst [vmem:[%s332 + $0x20] sm:$0xff] %v6052
      %6085 = vst [vmem:[%s332 + $0x28] sm:$0xff] %v6053
      %6086 = vst [vmem:[%s332 + $0x30] sm:$0xff] %v6054
      %6087 = vst [vmem:[%s332 + $0x38] sm:$0xff] %v6055
      %6088 = vst [vmem:[%s332 + $0x40] sm:$0xff] %v6056
      %6089 = vst [vmem:[%s332 + $0x48] sm:$0xff] %v6057
      %6090 = vst [vmem:[%s332 + $0x50] sm:$0xff] %v6058
      %6091 = vst [vmem:[%s332 + $0x58] sm:$0xff] %v6059
      %6092 = vst [vmem:[%s332 + $0x60] sm:$0xff] %v6060
      %6093 = vst [vmem:[%s332 + $0x68] sm:$0xff] %v6061
      %6094 = vst [vmem:[%s332 + $0x70] sm:$0xff] %v6062
      %6095 = vst [vmem:[%s332 + $0x78] sm:$0xff] %v6063
      %6096 = vst [vmem:[%s332 + $0x80] sm:$0xff] %v6064
      %6097 = vst [vmem:[%s332 + $0x88] sm:$0xff] %v6065
      %6098 = vst [vmem:[%s332 + $0x90] sm:$0xff] %v6066
      %6099 = vst [vmem:[%s332 + $0x98] sm:$0xff] %v6067
      %6100 = vst [vmem:[%s332 + $0xa0] sm:$0xff] %v6068
      %6101 = vst [vmem:[%s332 + $0xa8] sm:$0xff] %v6069
      %6102 = vst [vmem:[%s332 + $0xb0] sm:$0xff] %v6070
      %6103 = vst [vmem:[%s332 + $0xb8] sm:$0xff] %v6071
      %6104 = vst [vmem:[%s332 + $0xc0] sm:$0xff] %v6072
      %6105 = vst [vmem:[%s332 + $0xc8] sm:$0xff] %v6073
      %6106 = vst [vmem:[%s332 + $0xd0] sm:$0xff] %v6074
      %6107 = vst [vmem:[%s332 + $0xd8] sm:$0xff] %v6075
      %6108 = vst [vmem:[%s332 + $0xe0] sm:$0xff] %v6076
      %6109 = vst [vmem:[%s332 + $0xe8] sm:$0xff] %v6077
      %6110 = vst [vmem:[%s332 + $0xf0] sm:$0xff] %v6078
      %6111 = vst [vmem:[%s332 + $0xf8] sm:$0xff] %v6079
      %p6112 = scmp.lt.s32.totalorder %s20, 1
      %s6113 = scalar_select %p6112, %s20, 1
      %s6114 = smul.addr %s6113, 32
      %s6115 = smul.addr %s6114, 8
      %s6116 = scalar_lea.vmem %s9, %s6115
      // Predicated region
      $region61: #{_fused_branch.1} parent=55 // pred_check
        %p6117 = pneg %p232
      $region62: #{_fused_branch.1} parent=55 // pred_check_branch
        %6119 = sbr.rel (%p6117) target = $region64
      $region63: #{_fused_branch.1} parent=55 // pred_region
        _
      $region64: #{_fused_branch.1} parent=55 // pred_fallthru
        _
    $region56: #{_fused_branch.1} parent=5 // pred_fallthru
      _
    %p6120 = scmp.le.s32.totalorder 2, %s15
    // Predicated region
    $region65: #{_fused_branch.1} parent=5 // pred_check
      %p6121 = pneg %p6120
    $region66: #{_fused_branch.1} parent=5 // pred_check_branch
      %6123 = sbr.rel (%p6121) target = $region68
    $region67: #{_fused_branch.1} parent=5 // pred_region
      %s6124 = ssub.s32 %s15, 2
      // Predicated region
      $region69: #{_fused_branch.1} parent=67 // pred_check
        %p6125 = pneg %p238
      $region70: #{_fused_branch.1} parent=67 // pred_check_branch
        %6127 = sbr.rel (%p6125) target = $region72
      $region71: #{_fused_branch.1} parent=67 // pred_region
        %p6128 = scmp.lt.s32.totalorder %s21, 1
        %s6129 = scalar_select %p6128, %s21, 1
        %s6130 = smul.addr %s6129, 32
        %s6131 = smul.addr %s6130, 8
        %s6132 = scalar_lea.vmem %s9, %s6131
      $region72: #{_fused_branch.1} parent=67 // pred_fallthru
        _
    $region68: #{_fused_branch.1} parent=5 // pred_fallthru
      _
  $region6: #{_fused_branch.1} parent=0 // loop_footer
    %s19 = sadd.s32 1, %s15
  $region7: #{_fused_branch.1} parent=0 // loop_footer_branch
    %14 = sbr.rel target = $region3
  $region8: #{_fused_branch.1} parent=0 // loop_exit
    _

</llo_original>
